<compile_context>
chip_gen: v7x
topology: tpu7x:2x2x1
jax: 0.10.0
libtpu: 0.0.40
codegen_flags: <defaults>
</compile_context>

<pallas_src>
import functools

import jax
import jax.numpy as jnp
from jax.experimental import pallas as pl
from jax.experimental.pallas import tpu as pltpu

_LANE = 128


def _sisf_kernel(traj_ref, frame0_ref, k_ref, out_ref):
    # traj_ref:   (T_blk, 3, M_blk)  current trajectory tile (M on the 128-lane axis)
    # frame0_ref: (1,     3, M_blk)  frame-0 tile for the same atom window
    # k_ref:      (3, K, 1)          k-vector components, K on sublanes
    # out_ref:    (T_blk, 1) f32     per-frame raw sums; block index does not depend
    #                                on the M grid axis -> resident accumulator
    m_idx = pl.program_id(1)

    @pl.when(m_idx == 0)
    def _():
        out_ref[...] = jnp.zeros_like(out_ref)

    dr = traj_ref[...] - frame0_ref[...]                    # (T_blk, 3, M_blk)
    kk = k_ref[...]                                         # (3, K, 1)

    # 3-wide dot product via broadcast multiply-add; result is lane-dense
    # (T_blk, K, M_blk): K on sublanes (30 -> 32), atoms on lanes.
    dot = (dr[:, 0:1, :] * kk[0:1, :, :]
           + dr[:, 1:2, :] * kk[1:2, :, :]
           + dr[:, 2:3, :] * kk[2:3, :, :])

    c = jnp.cos(dot)                                        # Re(exp(1j * dot))

    partial = jnp.sum(c, axis=-1)                           # (T_blk, K) lane reduce over M
    out_ref[...] += jnp.sum(partial, axis=-1, keepdims=True)  # reduce over K


@functools.partial(jax.jit, static_argnames=("t_blk", "m_blk"))
def self_intermediate_scattering(trajectory, k_vectors, *, t_blk=None, m_blk=None):
    """trajectory: (T, B, N, 3) f32; k_vectors: (K, 3) f32  ->  (T,) f32."""
    T, B, N, C = trajectory.shape
    assert C == 3
    K = k_vectors.shape[0]
    M = B * N

    # Lane-dense layout: (T, B, N, 3) -> (T, 3, M), atoms on the 128-lane axis.
    traj = jnp.transpose(trajectory.reshape(T, M, 3).astype(jnp.float32), (0, 2, 1))

    # Conservative tile sizes: (16, 3, 512) trajectory tiles plus a (16, 32, 512)
    # f32 cos intermediate keep live VMEM well under the scoped-VMEM defaults on
    # v5e (16 MiB), v6e (32 MiB) and v7x (32 MiB) with double-buffering included.
    if t_blk is None:
        t_blk = min(T, 16)
    if m_blk is None:
        m_blk = min(_LANE * pl.cdiv(M, _LANE), 512)

    T_pad = t_blk * pl.cdiv(T, t_blk)
    M_pad = m_blk * pl.cdiv(M, m_blk)
    traj_p = jnp.pad(traj, ((0, T_pad - T), (0, 0), (0, M_pad - M)))
    frame0 = traj_p[0:1]                                    # (1, 3, M_pad)

    k_arr = k_vectors.astype(jnp.float32).T.reshape(3, K, 1)  # K on sublanes

    n_t = T_pad // t_blk
    n_m = M_pad // m_blk

    cost = pl.CostEstimate(
        flops=8 * T_pad * K * M_pad,
        transcendentals=T_pad * K * M_pad,
        bytes_accessed=4 * (traj_p.size + n_t * 3 * M_pad + 3 * K + T_pad),
    )

    raw = pl.pallas_call(
        _sisf_kernel,
        out_shape=jax.ShapeDtypeStruct((T_pad, 1), jnp.float32),
        grid_spec=pltpu.PrefetchScalarGridSpec(
            num_scalar_prefetch=0,
            grid=(n_t, n_m),                                # reduction axis (M) last
            in_specs=[
                pl.BlockSpec((t_blk, 3, m_blk), lambda t, m: (t, 0, m)),
                pl.BlockSpec((1, 3, m_blk), lambda t, m: (0, 0, m)),   # frame 0 tile
                pl.BlockSpec((3, K, 1), lambda t, m: (0, 0, 0)),
            ],
            out_specs=pl.BlockSpec((t_blk, 1), lambda t, m: (t, 0)),
        ),
        compiler_params=pltpu.CompilerParams(
            dimension_semantics=("parallel", "arbitrary")),
        cost_estimate=cost,
    )(traj_p, frame0, k_arr)

    # Zero-padded atom columns have dr == 0, so each contributes cos(0) = 1 for
    # every k-vector; remove that exactly and normalize by the true (M * K) count.
    pad_correction = float((M_pad - M) * K)
    return (raw[:T, 0] - pad_correction) * (1.0 / float(M * K))


def _reference(trajectory, k_vectors):
    # Exact-f32 mirror of the PyTorch broadcast-and-sum forward.
    dr = trajectory - trajectory[0:1]
    dot = jnp.sum(dr[:, :, :, None, :] * k_vectors[None, None, None, :, :], axis=-1)
    return jnp.mean(jnp.cos(dot), axis=(1, 2, 3))


if __name__ == "__main__":
    key = jax.random.PRNGKey(0)
    k_traj, k_rand = jax.random.split(key)

    # Small shapes consistent with the module: T frames, B replicas, N atoms, 3-D coords.
    T, B, N, n_vectors = 8, 2, 16, 30
    rdf_peak = 2.5  # deterministic stand-in for params.rdf_peak

    trajectory = jax.random.normal(k_traj, (T, B, N, 3), dtype=jnp.float32)

    # Module __init__: random unit vectors scaled by k_mag (deterministic here).
    rv = jax.random.normal(k_rand, (n_vectors, 3), dtype=jnp.float32)
    k_vectors = rv / jnp.linalg.norm(rv, axis=1, keepdims=True) * rdf_peak

    out = self_intermediate_scattering(trajectory, k_vectors)
    out = jax.block_until_ready(out)

    ref = _reference(trajectory, k_vectors)
    assert out.shape == (T,)
    assert jnp.allclose(out, ref, atol=1e-4, rtol=1e-4), (out, ref)

    print("KERNEL_OK")
</pallas_src>

<mosaic_0001>
module attributes {stable_mosaic.version = 11 : i64} {
  func.func @_sisf_kernel(%arg0: i32, %arg1: i32, %arg2: memref<8x3x128xf32, #tpu.memory_space<vmem>>, %arg3: memref<1x3x128xf32, #tpu.memory_space<vmem>>, %arg4: memref<3x30x1xf32, #tpu.memory_space<vmem>>, %arg5: memref<8x1xf32, #tpu.memory_space<vmem>>) attributes {dimension_semantics = [#tpu.dimension_semantics<parallel>, #tpu.dimension_semantics<arbitrary>], iteration_bounds = array<i64: 1, 1>, scalar_prefetch = 0 : i64, scratch_operands = 0 : i64, tpu.core_type = #tpu.core_type<tc>, window_params = [{transform_indices = @transform_0, window_bounds = array<i64: 8, 3, 128>}, {transform_indices = @transform_1, window_bounds = array<i64: 1, 3, 128>}, {pipeline_mode = #tpu.pipeline_mode<synchronous>, transform_indices = @transform_2, window_bounds = array<i64: 3, 30, 1>}, {transform_indices = @transform_3, window_bounds = array<i64: 8, 1>}]} {
    %c0_i32 = arith.constant 0 : i32
    %0 = arith.cmpi eq, %arg1, %c0_i32 : i32
    %1 = arith.extui %0 : i1 to i32
    %c0_i32_0 = arith.constant 0 : i32
    %2 = arith.cmpi ne, %1, %c0_i32_0 : i32
    scf.if %2 {
      %cst_14 = arith.constant 0.000000e+00 : f32
      %32 = vector.broadcast %cst_14 : f32 to vector<8x1xf32>
      %c0_15 = arith.constant 0 : index
      %c0_16 = arith.constant 0 : index
      %33 = vector.load %arg5[%c0_15, %c0_16] : memref<8x1xf32, #tpu.memory_space<vmem>>, vector<8x1xf32>
      tpu.vector_store %arg5[%c0_15, %c0_16], %32 {strides = array<i32>} : memref<8x1xf32, #tpu.memory_space<vmem>>, vector<8x1xf32>,
    } else {
    }
    %c0 = arith.constant 0 : index
    %c0_1 = arith.constant 0 : index
    %c0_2 = arith.constant 0 : index
    %3 = vector.load %arg2[%c0, %c0_1, %c0_2] : memref<8x3x128xf32, #tpu.memory_space<vmem>>, vector<8x3x128xf32>
    %c0_3 = arith.constant 0 : index
    %c0_4 = arith.constant 0 : index
    %c0_5 = arith.constant 0 : index
    %4 = vector.load %arg3[%c0_3, %c0_4, %c0_5] : memref<1x3x128xf32, #tpu.memory_space<vmem>>, vector<1x3x128xf32>
    %5 = vector.broadcast %4 : vector<1x3x128xf32> to vector<8x3x128xf32>
    %6 = arith.subf %3, %5 : vector<8x3x128xf32>
    %c0_6 = arith.constant 0 : index
    %c0_7 = arith.constant 0 : index
    %c0_8 = arith.constant 0 : index
    %7 = vector.load %arg4[%c0_6, %c0_7, %c0_8] : memref<3x30x1xf32, #tpu.memory_space<vmem>>, vector<3x30x1xf32>
    %8 = vector.extract_strided_slice %6 {offsets = [0, 0, 0], sizes = [8, 1, 128], strides = [1, 1, 1]} : vector<8x3x128xf32> to vector<8x1x128xf32>
    %9 = vector.extract_strided_slice %7 {offsets = [0, 0, 0], sizes = [1, 30, 1], strides = [1, 1, 1]} : vector<3x30x1xf32> to vector<1x30x1xf32>
    %10 = vector.broadcast %8 : vector<8x1x128xf32> to vector<8x30x128xf32>
    %11 = vector.broadcast %9 : vector<1x30x1xf32> to vector<8x30x128xf32>
    %12 = arith.mulf %10, %11 : vector<8x30x128xf32>
    %13 = vector.extract_strided_slice %6 {offsets = [0, 1, 0], sizes = [8, 1, 128], strides = [1, 1, 1]} : vector<8x3x128xf32> to vector<8x1x128xf32>
    %14 = vector.extract_strided_slice %7 {offsets = [1, 0, 0], sizes = [1, 30, 1], strides = [1, 1, 1]} : vector<3x30x1xf32> to vector<1x30x1xf32>
    %15 = vector.broadcast %13 : vector<8x1x128xf32> to vector<8x30x128xf32>
    %16 = vector.broadcast %14 : vector<1x30x1xf32> to vector<8x30x128xf32>
    %17 = arith.mulf %15, %16 : vector<8x30x128xf32>
    %18 = arith.addf %12, %17 : vector<8x30x128xf32>
    %19 = vector.extract_strided_slice %6 {offsets = [0, 2, 0], sizes = [8, 1, 128], strides = [1, 1, 1]} : vector<8x3x128xf32> to vector<8x1x128xf32>
    %20 = vector.extract_strided_slice %7 {offsets = [2, 0, 0], sizes = [1, 30, 1], strides = [1, 1, 1]} : vector<3x30x1xf32> to vector<1x30x1xf32>
    %21 = vector.broadcast %19 : vector<8x1x128xf32> to vector<8x30x128xf32>
    %22 = vector.broadcast %20 : vector<1x30x1xf32> to vector<8x30x128xf32>
    %23 = arith.mulf %21, %22 : vector<8x30x128xf32>
    %24 = arith.addf %18, %23 : vector<8x30x128xf32>
    %25 = math.cos %24 : vector<8x30x128xf32>
    %cst = arith.constant dense<0.000000e+00> : vector<8x30xf32>
    %26 = vector.multi_reduction <add>, %25, %cst [2] : vector<8x30x128xf32> to vector<8x30xf32>
    %c0_9 = arith.constant 0 : index
    %c0_10 = arith.constant 0 : index
    %27 = vector.load %arg5[%c0_9, %c0_10] : memref<8x1xf32, #tpu.memory_space<vmem>>, vector<8x1xf32>
    %cst_11 = arith.constant dense<0.000000e+00> : vector<8xf32>
    %28 = vector.multi_reduction <add>, %26, %cst_11 [1] : vector<8x30xf32> to vector<8xf32>
    %29 = vector.shape_cast %28 : vector<8xf32> to vector<8x1xf32>
    %30 = arith.addf %27, %29 : vector<8x1xf32>
    %c0_12 = arith.constant 0 : index
    %c0_13 = arith.constant 0 : index
    %31 = vector.load %arg5[%c0_12, %c0_13] : memref<8x1xf32, #tpu.memory_space<vmem>>, vector<8x1xf32>
    tpu.vector_store %arg5[%c0_12, %c0_13], %30 {strides = array<i32>} : memref<8x1xf32, #tpu.memory_space<vmem>>, vector<8x1xf32>,
    return
  }
  func.func @transform_0(%arg0: i32, %arg1: i32) -> (i32, i32, i32) {
    %c0_i32 = arith.constant 0 : i32
    %c0_i32_0 = arith.constant 0 : i32
    return %arg0, %c0_i32, %arg1 : i32, i32, i32
  }
  func.func @transform_1(%arg0: i32, %arg1: i32) -> (i32, i32, i32) {
    %c0_i32 = arith.constant 0 : i32
    %c0_i32_0 = arith.constant 0 : i32
    %c0_i32_1 = arith.constant 0 : i32
    return %c0_i32, %c0_i32_0, %arg1 : i32, i32, i32
  }
  func.func @transform_2(%arg0: i32, %arg1: i32) -> (i32, i32, i32) {
    %c0_i32 = arith.constant 0 : i32
    %c0_i32_0 = arith.constant 0 : i32
    %c0_i32_1 = arith.constant 0 : i32
    %c0_i32_2 = arith.constant 0 : i32
    return %c0_i32, %c0_i32_0, %c0_i32_1 : i32, i32, i32
  }
  func.func @transform_3(%arg0: i32, %arg1: i32) -> (i32, i32) {
    %c0_i32 = arith.constant 0 : i32
    %c0_i32_0 = arith.constant 0 : i32
    return %arg0, %c0_i32 : i32, i32
  }
}

</mosaic_0001>

<llo_original>
// kernel: self_intermediate_scattering.1
$region0: #{self_intermediate_scattering.1}
  #allocation0 [shape = 'u32[]', space=smem, size = 0x4, offset = 0x4, fixed_abs, tag = 'smem constant byte address 0x4 - core index']
  #allocation1 [shape = 'u32[144,128]{1,0:T(1,128)}', space=vmem, size = 0x12000, scoped, tag = 'internal scratch']
  %s0 = inlined_call_operand.vmem [shape: f32[8,3,128], index: 0, kind: input, shape index: {}]
  %s1 = inlined_call_operand.vmem [shape: f32[1,3,128], index: 1, kind: input, shape index: {}]
  %s2 = inlined_call_operand.vmem [shape: f32[3,30,1], index: 2, kind: input, shape index: {}]
  %s3 = inlined_call_operand.vmem [shape: f32[8,1], index: 3, kind: output, shape index: {}]
  %s4 = sld [smem:[#allocation0]]
  $region26: #{self_intermediate_scattering.1} parent=0
    _
  %s6 = ssub.s32 1, %s4
  %s7 = scalar_select 0, %s6, %s4
  // Predicated region
  $region2: #{self_intermediate_scattering.1} parent=0 // pred_check
    _
  $region3: #{self_intermediate_scattering.1} parent=0 // pred_check_branch
    %9 = sbr.rel (0) target = $region5
  $region4: #{self_intermediate_scattering.1} parent=0 // pred_region
    _
  $region5: #{self_intermediate_scattering.1} parent=0 // pred_fallthru
    _
  // Predicated region
  $region6: #{self_intermediate_scattering.1} parent=0 // pred_check
    _
  $region7: #{self_intermediate_scattering.1} parent=0 // pred_check_branch
    %11 = sbr.rel (0) target = $region9
  $region8: #{self_intermediate_scattering.1} parent=0 // pred_region
    _
  $region9: #{self_intermediate_scattering.1} parent=0 // pred_fallthru
    _
  // Predicated region
  $region10: #{self_intermediate_scattering.1} parent=0 // pred_check
    _
  $region11: #{self_intermediate_scattering.1} parent=0 // pred_check_branch
    %13 = sbr.rel (0) target = $region13
  $region12: #{self_intermediate_scattering.1} parent=0 // pred_region
    _
  $region13: #{self_intermediate_scattering.1} parent=0 // pred_fallthru
    _
  %p14 = scmp.eq.s32.totalorder 0, 0
  // Predicated region
  $region14: #{self_intermediate_scattering.1} parent=0 // pred_check
    %p15 = pneg %p14
  $region15: #{self_intermediate_scattering.1} parent=0 // pred_check_branch
    %17 = sbr.rel (%p15) target = $region17
  $region16: #{self_intermediate_scattering.1} parent=0 // pred_region
    %vm18 = vcmask 7168
    %19 = vst.msk [vmem:[%s3] sm:$0xff] %vm18, 0.0
  $region17: #{self_intermediate_scattering.1} parent=0 // pred_fallthru
    _
  %v20 = vld [vmem:[%s0] sm:$0x7]
  %v21 = vld [vmem:[%s0 + $0x4] sm:$0x7]
  %v22 = vld [vmem:[%s0 + $0x8] sm:$0x7]
  %v23 = vld [vmem:[%s0 + $0xc] sm:$0x7]
  %v24 = vld [vmem:[%s0 + $0x10] sm:$0x7]
  %v25 = vld [vmem:[%s0 + $0x14] sm:$0x7]
  %v26 = vld [vmem:[%s0 + $0x18] sm:$0x7]
  %v27 = vld [vmem:[%s0 + $0x1c] sm:$0x7]
  %v28 = vld [vmem:[%s1] sm:$0x7]
  %v29 = vsub.f32 %v20, %v28
  %v30 = vsub.f32 %v21, %v28
  %v31 = vsub.f32 %v22, %v28
  %v32 = vsub.f32 %v23, %v28
  %v33 = vsub.f32 %v24, %v28
  %v34 = vsub.f32 %v25, %v28
  %v35 = vsub.f32 %v26, %v28
  %v36 = vsub.f32 %v27, %v28
  %v37 = vld [vmem:[%s2] sm:$0xff]
  %v38 = vld [vmem:[%s2 + $0x8] sm:$0xff]
  %v39 = vld [vmem:[%s2 + $0x10] sm:$0xff]
  %v40 = vld [vmem:[%s2 + $0x18] sm:$0x3f]
  %v41 = vld [vmem:[%s2 + $0x20] sm:$0xff]
  %v42 = vld [vmem:[%s2 + $0x28] sm:$0xff]
  %v43 = vld [vmem:[%s2 + $0x30] sm:$0xff]
  %v44 = vld [vmem:[%s2 + $0x38] sm:$0x3f]
  %v45 = vld [vmem:[%s2 + $0x40] sm:$0xff]
  %v46 = vld [vmem:[%s2 + $0x48] sm:$0xff]
  %v47 = vld [vmem:[%s2 + $0x50] sm:$0xff]
  %v48 = vld [vmem:[%s2 + $0x58] sm:$0x3f]
  %v49 = vlaneseq
  %v50 = vshrl.u32 %v49, 7
  %v51 = vsub.s32 0, %v50
  %v52 = vrot.slane %v29, %v51
  %v53 = vlaneseq
  %v54 = vshrl.u32 %v53, 7
  %v55 = vsub.s32 0, %v54
  %v56 = vrot.slane %v30, %v55
  %v57 = vlaneseq
  %v58 = vshrl.u32 %v57, 7
  %v59 = vsub.s32 0, %v58
  %v60 = vrot.slane %v31, %v59
  %v61 = vlaneseq
  %v62 = vshrl.u32 %v61, 7
  %v63 = vsub.s32 0, %v62
  %v64 = vrot.slane %v32, %v63
  %v65 = vlaneseq
  %v66 = vshrl.u32 %v65, 7
  %v67 = vsub.s32 0, %v66
  %v68 = vrot.slane %v33, %v67
  %v69 = vlaneseq
  %v70 = vshrl.u32 %v69, 7
  %v71 = vsub.s32 0, %v70
  %v72 = vrot.slane %v34, %v71
  %v73 = vlaneseq
  %v74 = vshrl.u32 %v73, 7
  %v75 = vsub.s32 0, %v74
  %v76 = vrot.slane %v35, %v75
  %v77 = vlaneseq
  %v78 = vshrl.u32 %v77, 7
  %v79 = vsub.s32 0, %v78
  %v80 = vrot.slane %v36, %v79
  %82 = vset.pattern.permute.xlu0 0
  %83 = vperm.xlu0 %82, %v37
  %v84 = vpop.permute.xlu0 %83
  %87 = vset.pattern.permute.xlu0 0
  %88 = vperm.xlu0 %87, %v38
  %v89 = vpop.permute.xlu0 %88
  %92 = vset.pattern.permute.xlu0 0
  %93 = vperm.xlu0 %92, %v39
  %v94 = vpop.permute.xlu0 %93
  %97 = vset.pattern.permute.xlu0 0
  %98 = vperm.xlu0 %97, %v40
  %v99 = vpop.permute.xlu0 %98
  %v101 = vmul.f32 %v52, %v84
  %v102 = vmul.f32 %v52, %v89
  %v103 = vmul.f32 %v52, %v94
  %v104 = vmul.f32 %v52, %v99
  %v105 = vmul.f32 %v56, %v84
  %v106 = vmul.f32 %v56, %v89
  %v107 = vmul.f32 %v56, %v94
  %v108 = vmul.f32 %v56, %v99
  %v109 = vmul.f32 %v60, %v84
  %v110 = vmul.f32 %v60, %v89
  %v111 = vmul.f32 %v60, %v94
  %v112 = vmul.f32 %v60, %v99
  %v113 = vmul.f32 %v64, %v84
  %v114 = vmul.f32 %v64, %v89
  %v115 = vmul.f32 %v64, %v94
  %v116 = vmul.f32 %v64, %v99
  %v117 = vmul.f32 %v68, %v84
  %v118 = vmul.f32 %v68, %v89
  %v119 = vmul.f32 %v68, %v94
  %v120 = vmul.f32 %v68, %v99
  %v121 = vmul.f32 %v72, %v84
  %v122 = vmul.f32 %v72, %v89
  %v123 = vmul.f32 %v72, %v94
  %v124 = vmul.f32 %v72, %v99
  %v125 = vmul.f32 %v76, %v84
  %v126 = vmul.f32 %v76, %v89
  %v127 = vmul.f32 %v76, %v94
  %v128 = vmul.f32 %v76, %v99
  %v129 = vmul.f32 %v80, %v84
  %v130 = vmul.f32 %v80, %v89
  %v131 = vmul.f32 %v80, %v94
  %v132 = vmul.f32 %v80, %v99
  %v133 = vlaneseq
  %v134 = vshrl.u32 %v133, 7
  %v135 = vsub.s32 1, %v134
  %v136 = vrot.slane %v29, %v135
  %v137 = vlaneseq
  %v138 = vshrl.u32 %v137, 7
  %v139 = vsub.s32 1, %v138
  %v140 = vrot.slane %v30, %v139
  %v141 = vlaneseq
  %v142 = vshrl.u32 %v141, 7
  %v143 = vsub.s32 1, %v142
  %v144 = vrot.slane %v31, %v143
  %v145 = vlaneseq
  %v146 = vshrl.u32 %v145, 7
  %v147 = vsub.s32 1, %v146
  %v148 = vrot.slane %v32, %v147
  %v149 = vlaneseq
  %v150 = vshrl.u32 %v149, 7
  %v151 = vsub.s32 1, %v150
  %v152 = vrot.slane %v33, %v151
  %v153 = vlaneseq
  %v154 = vshrl.u32 %v153, 7
  %v155 = vsub.s32 1, %v154
  %v156 = vrot.slane %v34, %v155
  %v157 = vlaneseq
  %v158 = vshrl.u32 %v157, 7
  %v159 = vsub.s32 1, %v158
  %v160 = vrot.slane %v35, %v159
  %v161 = vlaneseq
  %v162 = vshrl.u32 %v161, 7
  %v163 = vsub.s32 1, %v162
  %v164 = vrot.slane %v36, %v163
  %166 = vset.pattern.permute.xlu0 0
  %167 = vperm.xlu0 %166, %v41
  %v168 = vpop.permute.xlu0 %167
  %171 = vset.pattern.permute.xlu0 0
  %172 = vperm.xlu0 %171, %v42
  %v173 = vpop.permute.xlu0 %172
  %176 = vset.pattern.permute.xlu0 0
  %177 = vperm.xlu0 %176, %v43
  %v178 = vpop.permute.xlu0 %177
  %181 = vset.pattern.permute.xlu0 0
  %182 = vperm.xlu0 %181, %v44
  %v183 = vpop.permute.xlu0 %182
  %v185 = vmul.f32 %v136, %v168
  %v186 = vmul.f32 %v136, %v173
  %v187 = vmul.f32 %v136, %v178
  %v188 = vmul.f32 %v136, %v183
  %v189 = vmul.f32 %v140, %v168
  %v190 = vmul.f32 %v140, %v173
  %v191 = vmul.f32 %v140, %v178
  %v192 = vmul.f32 %v140, %v183
  %v193 = vmul.f32 %v144, %v168
  %v194 = vmul.f32 %v144, %v173
  %v195 = vmul.f32 %v144, %v178
  %v196 = vmul.f32 %v144, %v183
  %v197 = vmul.f32 %v148, %v168
  %v198 = vmul.f32 %v148, %v173
  %v199 = vmul.f32 %v148, %v178
  %v200 = vmul.f32 %v148, %v183
  %v201 = vmul.f32 %v152, %v168
  %v202 = vmul.f32 %v152, %v173
  %v203 = vmul.f32 %v152, %v178
  %v204 = vmul.f32 %v152, %v183
  %v205 = vmul.f32 %v156, %v168
  %v206 = vmul.f32 %v156, %v173
  %v207 = vmul.f32 %v156, %v178
  %v208 = vmul.f32 %v156, %v183
  %v209 = vmul.f32 %v160, %v168
  %v210 = vmul.f32 %v160, %v173
  %v211 = vmul.f32 %v160, %v178
  %v212 = vmul.f32 %v160, %v183
  %v213 = vmul.f32 %v164, %v168
  %v214 = vmul.f32 %v164, %v173
  %v215 = vmul.f32 %v164, %v178
  %v216 = vmul.f32 %v164, %v183
  %v217 = vadd.f32 %v101, %v185
  %v218 = vadd.f32 %v102, %v186
  %v219 = vadd.f32 %v103, %v187
  %v220 = vadd.f32 %v104, %v188
  %v221 = vadd.f32 %v105, %v189
  %v222 = vadd.f32 %v106, %v190
  %v223 = vadd.f32 %v107, %v191
  %v224 = vadd.f32 %v108, %v192
  %v225 = vadd.f32 %v109, %v193
  %v226 = vadd.f32 %v110, %v194
  %v227 = vadd.f32 %v111, %v195
  %v228 = vadd.f32 %v112, %v196
  %v229 = vadd.f32 %v113, %v197
  %v230 = vadd.f32 %v114, %v198
  %v231 = vadd.f32 %v115, %v199
  %v232 = vadd.f32 %v116, %v200
  %v233 = vadd.f32 %v117, %v201
  %v234 = vadd.f32 %v118, %v202
  %v235 = vadd.f32 %v119, %v203
  %v236 = vadd.f32 %v120, %v204
  %v237 = vadd.f32 %v121, %v205
  %v238 = vadd.f32 %v122, %v206
  %v239 = vadd.f32 %v123, %v207
  %v240 = vadd.f32 %v124, %v208
  %v241 = vadd.f32 %v125, %v209
  %v242 = vadd.f32 %v126, %v210
  %v243 = vadd.f32 %v127, %v211
  %v244 = vadd.f32 %v128, %v212
  %v245 = vadd.f32 %v129, %v213
  %v246 = vadd.f32 %v130, %v214
  %v247 = vadd.f32 %v131, %v215
  %v248 = vadd.f32 %v132, %v216
  %v249 = vlaneseq
  %v250 = vshrl.u32 %v249, 7
  %v251 = vsub.s32 2, %v250
  %v252 = vrot.slane %v29, %v251
  %v253 = vlaneseq
  %v254 = vshrl.u32 %v253, 7
  %v255 = vsub.s32 2, %v254
  %v256 = vrot.slane %v30, %v255
  %v257 = vlaneseq
  %v258 = vshrl.u32 %v257, 7
  %v259 = vsub.s32 2, %v258
  %v260 = vrot.slane %v31, %v259
  %v261 = vlaneseq
  %v262 = vshrl.u32 %v261, 7
  %v263 = vsub.s32 2, %v262
  %v264 = vrot.slane %v32, %v263
  %v265 = vlaneseq
  %v266 = vshrl.u32 %v265, 7
  %v267 = vsub.s32 2, %v266
  %v268 = vrot.slane %v33, %v267
  %v269 = vlaneseq
  %v270 = vshrl.u32 %v269, 7
  %v271 = vsub.s32 2, %v270
  %v272 = vrot.slane %v34, %v271
  %v273 = vlaneseq
  %v274 = vshrl.u32 %v273, 7
  %v275 = vsub.s32 2, %v274
  %v276 = vrot.slane %v35, %v275
  %v277 = vlaneseq
  %v278 = vshrl.u32 %v277, 7
  %v279 = vsub.s32 2, %v278
  %v280 = vrot.slane %v36, %v279
  %282 = vset.pattern.permute.xlu0 0
  %283 = vperm.xlu0 %282, %v45
  %v284 = vpop.permute.xlu0 %283
  %287 = vset.pattern.permute.xlu0 0
  %288 = vperm.xlu0 %287, %v46
  %v289 = vpop.permute.xlu0 %288
  %292 = vset.pattern.permute.xlu0 0
  %293 = vperm.xlu0 %292, %v47
  %v294 = vpop.permute.xlu0 %293
  %297 = vset.pattern.permute.xlu0 0
  %298 = vperm.xlu0 %297, %v48
  %v299 = vpop.permute.xlu0 %298
  %v301 = vmul.f32 %v252, %v284
  %v302 = vmul.f32 %v252, %v289
  %v303 = vmul.f32 %v252, %v294
  %v304 = vmul.f32 %v252, %v299
  %v305 = vmul.f32 %v256, %v284
  %v306 = vmul.f32 %v256, %v289
  %v307 = vmul.f32 %v256, %v294
  %v308 = vmul.f32 %v256, %v299
  %v309 = vmul.f32 %v260, %v284
  %v310 = vmul.f32 %v260, %v289
  %v311 = vmul.f32 %v260, %v294
  %v312 = vmul.f32 %v260, %v299
  %v313 = vmul.f32 %v264, %v284
  %v314 = vmul.f32 %v264, %v289
  %v315 = vmul.f32 %v264, %v294
  %v316 = vmul.f32 %v264, %v299
  %v317 = vmul.f32 %v268, %v284
  %v318 = vmul.f32 %v268, %v289
  %v319 = vmul.f32 %v268, %v294
  %v320 = vmul.f32 %v268, %v299
  %v321 = vmul.f32 %v272, %v284
  %v322 = vmul.f32 %v272, %v289
  %v323 = vmul.f32 %v272, %v294
  %v324 = vmul.f32 %v272, %v299
  %v325 = vmul.f32 %v276, %v284
  %v326 = vmul.f32 %v276, %v289
  %v327 = vmul.f32 %v276, %v294
  %v328 = vmul.f32 %v276, %v299
  %v329 = vmul.f32 %v280, %v284
  %v330 = vmul.f32 %v280, %v289
  %v331 = vmul.f32 %v280, %v294
  %v332 = vmul.f32 %v280, %v299
  %v333 = vadd.f32 %v217, %v301
  %v334 = vadd.f32 %v218, %v302
  %v335 = vadd.f32 %v219, %v303
  %v336 = vadd.f32 %v220, %v304
  %v337 = vadd.f32 %v221, %v305
  %v338 = vadd.f32 %v222, %v306
  %v339 = vadd.f32 %v223, %v307
  %v340 = vadd.f32 %v224, %v308
  %v341 = vadd.f32 %v225, %v309
  %v342 = vadd.f32 %v226, %v310
  %v343 = vadd.f32 %v227, %v311
  %v344 = vadd.f32 %v228, %v312
  %v345 = vadd.f32 %v229, %v313
  %v346 = vadd.f32 %v230, %v314
  %v347 = vadd.f32 %v231, %v315
  %v348 = vadd.f32 %v232, %v316
  %v349 = vadd.f32 %v233, %v317
  %v350 = vadd.f32 %v234, %v318
  %v351 = vadd.f32 %v235, %v319
  %v352 = vadd.f32 %v236, %v320
  %v353 = vadd.f32 %v237, %v321
  %v354 = vadd.f32 %v238, %v322
  %v355 = vadd.f32 %v239, %v323
  %v356 = vadd.f32 %v240, %v324
  %v357 = vadd.f32 %v241, %v325
  %v358 = vadd.f32 %v242, %v326
  %v359 = vadd.f32 %v243, %v327
  %v360 = vadd.f32 %v244, %v328
  %v361 = vadd.f32 %v245, %v329
  %v362 = vadd.f32 %v246, %v330
  %v363 = vadd.f32 %v247, %v331
  %v364 = vadd.f32 %v248, %v332
  %v365 = vand.u32 2147483647, %v333
  %vm366 = vcmp.le.f32.partialorder %v365, 0.7853982
  %vm367 = vcmp.lt.s32.totalorder %v333, 0
  %v368 = vand.u32 %v333, 2139095040
  %v369 = vshrl.u32 %v368, 23
  %v370 = vsub.s32 %v369, 127
  %v371 = vand.u32 2147483647, %v333
  %v372 = vand.u32 %v371, 8388607
  %v373 = vor.u32 %v372, 8388608
  %v374 = vsub.s32 0, %v373
  %v375 = vadd.s32 %v370, 1
  %vm376 = vcmp.gt.s32.totalorder %v375, 0
  %v377 = vsel %vm376, %v375, 0
  %v378 = vshrl.u32 %v377, 5
  %v379 = vand.u32 %v377, 31
  %v380 = vsub.s32 32, %v379
  %v381 = vshrl.u32 683565275, %v380
  %v382 = vshll.u32 683565275, %v379
  %v383 = vshrl.u32 2475754826, %v380
  %v384 = vor.u32 %v382, %v383
  %v385 = vshll.u32 2475754826, %v379
  %v386 = vshrl.u32 2131351028, %v380
  %v387 = vor.u32 %v385, %v386
  %v388 = vshll.u32 2131351028, %v379
  %v389 = vshrl.u32 2102212464, %v380
  %v390 = vor.u32 %v388, %v389
  %v391 = vshll.u32 2102212464, %v379
  %v392 = vshrl.u32 920167782, %v380
  %v393 = vor.u32 %v391, %v392
  %v394 = vshll.u32 920167782, %v379
  %v395 = vshrl.u32 1326507024, %v380
  %v396 = vor.u32 %v394, %v395
  %vm397 = vcmp.lt.s32.totalorder %v378, 1
  %vm398 = vcmp.lt.s32.totalorder %v378, 2
  %vm399 = vcmp.lt.s32.totalorder %v378, 3
  %vm400 = vcmp.lt.s32.totalorder %v378, 4
  %v401 = vsel %vm397, %v381, %v384
  %v402 = vsel %vm400, %v390, 2102212464
  %v403 = vsel %vm399, %v387, %v402
  %v404 = vsel %vm398, %v401, %v403
  %v405 = vsel %vm397, %v384, %v387
  %v406 = vsel %vm400, %v393, 920167782
  %v407 = vsel %vm399, %v390, %v406
  %v408 = vsel %vm398, %v405, %v407
  %v409 = vsel %vm397, %v387, %v390
  %v410 = vsel %vm400, %v396, 1326507024
  %v411 = vsel %vm399, %v393, %v410
  %v412 = vsel %vm398, %v409, %v411
  %v413 = vshll.u32 %v373, 8
  %v414 = vmul.u32.u64.compose %v413, %v412
  %v415 = vextract.low.u32 %v414
  %v416 = vextract.high.u32 %v414
  %v417 = vmul.u32.u64.compose %v413, %v408
  %v418 = vextract.low.u32 %v417
  %v419 = vextract.high.u32 %v417
  %v420 = vmul.u32 %v413, %v404
  %v421 = vadd.s32 %v416, %v418
  %vm422 = vc.u32 %v416, %v418
  %v423 = vadd.s32 %v419, 1
  %v424 = vsel %vm422, %v423, %v419
  %v425 = vadd.s32 %v420, %v424
  %v426 = vadd.s32 %v425, 536870912
  %v427 = vshrl.u32 %v426, 30
  %v428 = vshll.u32 %v427, 30
  %v429 = vsub.s32 %v425, %v428
  %vm430 = vcmp.lt.s32.totalorder %v429, 0
  %v431 = vsub.s32 0, %v429
  %v432 = vsel %vm430, %v431, %v429
  %v433 = vclz %v432
  %v434 = vsub.s32 %v433, 2
  %vm435 = vcmp.gt.s32.totalorder 0, %v434
  %v436 = vsel %vm435, 0, %v434
  %v437 = vsub.s32 32, %v436
  %v438 = vshll.u32 %v429, %v436
  %v439 = vshrl.u32 %v421, %v437
  %v440 = vor.u32 %v438, %v439
  %v441 = vsub.s32 4294967266, %v436
  %v442 = vadd.s32 %v441, 127
  %v443 = vshll.u32 %v442, 23
  %v444 = vor.u32 4788187, %v443
  %v445 = vand.u32 2147483647, %v444
  %v447 = vcvt.s32.f32 %v440
  %v448 = vmul.f32 %v447, %v445
  %v449 = vxor.u32 %v448, 2147483648
  %v450 = vsel %vm367, %v449, %v448
  %v451 = vsub.s32 4, %v427
  %v452 = vsel %vm367, %v451, %v427
  %v453 = vsel %vm366, %v333, %v450
  %v454 = vsel %vm366, 0, %v452
  %v455 = vcosq.f32.pop %v453
  %v456 = vsinq.f32.pop %v453
  %vm457 = vweird.f32 %v333
  %v458 = vand.u32 %v454, 3
  %vm459 = vcmp.lt.s32.totalorder %v458, 2
  %vm460 = vcmp.eq.s32.totalorder %v458, 0
  %v461 = vxor.u32 %v456, 2147483648
  %v462 = vsel %vm460, %v455, %v461
  %vm463 = vcmp.eq.s32.totalorder %v458, 2
  %v464 = vxor.u32 %v455, 2147483648
  %v465 = vsel %vm463, %v464, %v456
  %v466 = vsel %vm459, %v462, %v465
  %v467 = vsel %vm457, nan, %v466
  %v468 = vand.u32 2147483647, %v334
  %vm469 = vcmp.le.f32.partialorder %v468, 0.7853982
  %vm470 = vcmp.lt.s32.totalorder %v334, 0
  %v471 = vand.u32 %v334, 2139095040
  %v472 = vshrl.u32 %v471, 23
  %v473 = vsub.s32 %v472, 127
  %v474 = vand.u32 2147483647, %v334
  %v475 = vand.u32 %v474, 8388607
  %v476 = vor.u32 %v475, 8388608
  %v477 = vsub.s32 0, %v476
  %v478 = vadd.s32 %v473, 1
  %vm479 = vcmp.gt.s32.totalorder %v478, 0
  %v480 = vsel %vm479, %v478, 0
  %v481 = vshrl.u32 %v480, 5
  %v482 = vand.u32 %v480, 31
  %v483 = vsub.s32 32, %v482
  %v484 = vshrl.u32 683565275, %v483
  %v485 = vshll.u32 683565275, %v482
  %v486 = vshrl.u32 2475754826, %v483
  %v487 = vor.u32 %v485, %v486
  %v488 = vshll.u32 2475754826, %v482
  %v489 = vshrl.u32 2131351028, %v483
  %v490 = vor.u32 %v488, %v489
  %v491 = vshll.u32 2131351028, %v482
  %v492 = vshrl.u32 2102212464, %v483
  %v493 = vor.u32 %v491, %v492
  %v494 = vshll.u32 2102212464, %v482
  %v495 = vshrl.u32 920167782, %v483
  %v496 = vor.u32 %v494, %v495
  %v497 = vshll.u32 920167782, %v482
  %v498 = vshrl.u32 1326507024, %v483
  %v499 = vor.u32 %v497, %v498
  %vm500 = vcmp.lt.s32.totalorder %v481, 1
  %vm501 = vcmp.lt.s32.totalorder %v481, 2
  %vm502 = vcmp.lt.s32.totalorder %v481, 3
  %vm503 = vcmp.lt.s32.totalorder %v481, 4
  %v504 = vsel %vm500, %v484, %v487
  %v505 = vsel %vm503, %v493, 2102212464
  %v506 = vsel %vm502, %v490, %v505
  %v507 = vsel %vm501, %v504, %v506
  %v508 = vsel %vm500, %v487, %v490
  %v509 = vsel %vm503, %v496, 920167782
  %v510 = vsel %vm502, %v493, %v509
  %v511 = vsel %vm501, %v508, %v510
  %v512 = vsel %vm500, %v490, %v493
  %v513 = vsel %vm503, %v499, 1326507024
  %v514 = vsel %vm502, %v496, %v513
  %v515 = vsel %vm501, %v512, %v514
  %v516 = vshll.u32 %v476, 8
  %v517 = vmul.u32.u64.compose %v516, %v515
  %v518 = vextract.low.u32 %v517
  %v519 = vextract.high.u32 %v517
  %v520 = vmul.u32.u64.compose %v516, %v511
  %v521 = vextract.low.u32 %v520
  %v522 = vextract.high.u32 %v520
  %v523 = vmul.u32 %v516, %v507
  %v524 = vadd.s32 %v519, %v521
  %vm525 = vc.u32 %v519, %v521
  %v526 = vadd.s32 %v522, 1
  %v527 = vsel %vm525, %v526, %v522
  %v528 = vadd.s32 %v523, %v527
  %v529 = vadd.s32 %v528, 536870912
  %v530 = vshrl.u32 %v529, 30
  %v531 = vshll.u32 %v530, 30
  %v532 = vsub.s32 %v528, %v531
  %vm533 = vcmp.lt.s32.totalorder %v532, 0
  %v534 = vsub.s32 0, %v532
  %v535 = vsel %vm533, %v534, %v532
  %v536 = vclz %v535
  %v537 = vsub.s32 %v536, 2
  %vm538 = vcmp.gt.s32.totalorder 0, %v537
  %v539 = vsel %vm538, 0, %v537
  %v540 = vsub.s32 32, %v539
  %v541 = vshll.u32 %v532, %v539
  %v542 = vshrl.u32 %v524, %v540
  %v543 = vor.u32 %v541, %v542
  %v544 = vsub.s32 4294967266, %v539
  %v545 = vadd.s32 %v544, 127
  %v546 = vshll.u32 %v545, 23
  %v547 = vor.u32 4788187, %v546
  %v548 = vand.u32 2147483647, %v547
  %v550 = vcvt.s32.f32 %v543
  %v551 = vmul.f32 %v550, %v548
  %v552 = vxor.u32 %v551, 2147483648
  %v553 = vsel %vm470, %v552, %v551
  %v554 = vsub.s32 4, %v530
  %v555 = vsel %vm470, %v554, %v530
  %v556 = vsel %vm469, %v334, %v553
  %v557 = vsel %vm469, 0, %v555
  %v558 = vcosq.f32.pop %v556
  %v559 = vsinq.f32.pop %v556
  %vm560 = vweird.f32 %v334
  %v561 = vand.u32 %v557, 3
  %vm562 = vcmp.lt.s32.totalorder %v561, 2
  %vm563 = vcmp.eq.s32.totalorder %v561, 0
  %v564 = vxor.u32 %v559, 2147483648
  %v565 = vsel %vm563, %v558, %v564
  %vm566 = vcmp.eq.s32.totalorder %v561, 2
  %v567 = vxor.u32 %v558, 2147483648
  %v568 = vsel %vm566, %v567, %v559
  %v569 = vsel %vm562, %v565, %v568
  %v570 = vsel %vm560, nan, %v569
  %v571 = vand.u32 2147483647, %v335
  %vm572 = vcmp.le.f32.partialorder %v571, 0.7853982
  %vm573 = vcmp.lt.s32.totalorder %v335, 0
  %v574 = vand.u32 %v335, 2139095040
  %v575 = vshrl.u32 %v574, 23
  %v576 = vsub.s32 %v575, 127
  %v577 = vand.u32 2147483647, %v335
  %v578 = vand.u32 %v577, 8388607
  %v579 = vor.u32 %v578, 8388608
  %v580 = vsub.s32 0, %v579
  %v581 = vadd.s32 %v576, 1
  %vm582 = vcmp.gt.s32.totalorder %v581, 0
  %v583 = vsel %vm582, %v581, 0
  %v584 = vshrl.u32 %v583, 5
  %v585 = vand.u32 %v583, 31
  %v586 = vsub.s32 32, %v585
  %v587 = vshrl.u32 683565275, %v586
  %v588 = vshll.u32 683565275, %v585
  %v589 = vshrl.u32 2475754826, %v586
  %v590 = vor.u32 %v588, %v589
  %v591 = vshll.u32 2475754826, %v585
  %v592 = vshrl.u32 2131351028, %v586
  %v593 = vor.u32 %v591, %v592
  %v594 = vshll.u32 2131351028, %v585
  %v595 = vshrl.u32 2102212464, %v586
  %v596 = vor.u32 %v594, %v595
  %v597 = vshll.u32 2102212464, %v585
  %v598 = vshrl.u32 920167782, %v586
  %v599 = vor.u32 %v597, %v598
  %v600 = vshll.u32 920167782, %v585
  %v601 = vshrl.u32 1326507024, %v586
  %v602 = vor.u32 %v600, %v601
  %vm603 = vcmp.lt.s32.totalorder %v584, 1
  %vm604 = vcmp.lt.s32.totalorder %v584, 2
  %vm605 = vcmp.lt.s32.totalorder %v584, 3
  %vm606 = vcmp.lt.s32.totalorder %v584, 4
  %v607 = vsel %vm603, %v587, %v590
  %v608 = vsel %vm606, %v596, 2102212464
  %v609 = vsel %vm605, %v593, %v608
  %v610 = vsel %vm604, %v607, %v609
  %v611 = vsel %vm603, %v590, %v593
  %v612 = vsel %vm606, %v599, 920167782
  %v613 = vsel %vm605, %v596, %v612
  %v614 = vsel %vm604, %v611, %v613
  %v615 = vsel %vm603, %v593, %v596
  %v616 = vsel %vm606, %v602, 1326507024
  %v617 = vsel %vm605, %v599, %v616
  %v618 = vsel %vm604, %v615, %v617
  %v619 = vshll.u32 %v579, 8
  %v620 = vmul.u32.u64.compose %v619, %v618
  %v621 = vextract.low.u32 %v620
  %v622 = vextract.high.u32 %v620
  %v623 = vmul.u32.u64.compose %v619, %v614
  %v624 = vextract.low.u32 %v623
  %v625 = vextract.high.u32 %v623
  %v626 = vmul.u32 %v619, %v610
  %v627 = vadd.s32 %v622, %v624
  %vm628 = vc.u32 %v622, %v624
  %v629 = vadd.s32 %v625, 1
  %v630 = vsel %vm628, %v629, %v625
  %v631 = vadd.s32 %v626, %v630
  %v632 = vadd.s32 %v631, 536870912
  %v633 = vshrl.u32 %v632, 30
  %v634 = vshll.u32 %v633, 30
  %v635 = vsub.s32 %v631, %v634
  %vm636 = vcmp.lt.s32.totalorder %v635, 0
  %v637 = vsub.s32 0, %v635
  %v638 = vsel %vm636, %v637, %v635
  %v639 = vclz %v638
  %v640 = vsub.s32 %v639, 2
  %vm641 = vcmp.gt.s32.totalorder 0, %v640
  %v642 = vsel %vm641, 0, %v640
  %v643 = vsub.s32 32, %v642
  %v644 = vshll.u32 %v635, %v642
  %v645 = vshrl.u32 %v627, %v643
  %v646 = vor.u32 %v644, %v645
  %v647 = vsub.s32 4294967266, %v642
  %v648 = vadd.s32 %v647, 127
  %v649 = vshll.u32 %v648, 23
  %v650 = vor.u32 4788187, %v649
  %v651 = vand.u32 2147483647, %v650
  %v653 = vcvt.s32.f32 %v646
  %v654 = vmul.f32 %v653, %v651
  %v655 = vxor.u32 %v654, 2147483648
  %v656 = vsel %vm573, %v655, %v654
  %v657 = vsub.s32 4, %v633
  %v658 = vsel %vm573, %v657, %v633
  %v659 = vsel %vm572, %v335, %v656
  %v660 = vsel %vm572, 0, %v658
  %v661 = vcosq.f32.pop %v659
  %v662 = vsinq.f32.pop %v659
  %vm663 = vweird.f32 %v335
  %v664 = vand.u32 %v660, 3
  %vm665 = vcmp.lt.s32.totalorder %v664, 2
  %vm666 = vcmp.eq.s32.totalorder %v664, 0
  %v667 = vxor.u32 %v662, 2147483648
  %v668 = vsel %vm666, %v661, %v667
  %vm669 = vcmp.eq.s32.totalorder %v664, 2
  %v670 = vxor.u32 %v661, 2147483648
  %v671 = vsel %vm669, %v670, %v662
  %v672 = vsel %vm665, %v668, %v671
  %v673 = vsel %vm663, nan, %v672
  %v674 = vand.u32 2147483647, %v336
  %vm675 = vcmp.le.f32.partialorder %v674, 0.7853982
  %vm676 = vcmp.lt.s32.totalorder %v336, 0
  %v677 = vand.u32 %v336, 2139095040
  %v678 = vshrl.u32 %v677, 23
  %v679 = vsub.s32 %v678, 127
  %v680 = vand.u32 2147483647, %v336
  %v681 = vand.u32 %v680, 8388607
  %v682 = vor.u32 %v681, 8388608
  %v683 = vsub.s32 0, %v682
  %v684 = vadd.s32 %v679, 1
  %vm685 = vcmp.gt.s32.totalorder %v684, 0
  %v686 = vsel %vm685, %v684, 0
  %v687 = vshrl.u32 %v686, 5
  %v688 = vand.u32 %v686, 31
  %v689 = vsub.s32 32, %v688
  %v690 = vshrl.u32 683565275, %v689
  %v691 = vshll.u32 683565275, %v688
  %v692 = vshrl.u32 2475754826, %v689
  %v693 = vor.u32 %v691, %v692
  %v694 = vshll.u32 2475754826, %v688
  %v695 = vshrl.u32 2131351028, %v689
  %v696 = vor.u32 %v694, %v695
  %v697 = vshll.u32 2131351028, %v688
  %v698 = vshrl.u32 2102212464, %v689
  %v699 = vor.u32 %v697, %v698
  %v700 = vshll.u32 2102212464, %v688
  %v701 = vshrl.u32 920167782, %v689
  %v702 = vor.u32 %v700, %v701
  %v703 = vshll.u32 920167782, %v688
  %v704 = vshrl.u32 1326507024, %v689
  %v705 = vor.u32 %v703, %v704
  %vm706 = vcmp.lt.s32.totalorder %v687, 1
  %vm707 = vcmp.lt.s32.totalorder %v687, 2
  %vm708 = vcmp.lt.s32.totalorder %v687, 3
  %vm709 = vcmp.lt.s32.totalorder %v687, 4
  %v710 = vsel %vm706, %v690, %v693
  %v711 = vsel %vm709, %v699, 2102212464
  %v712 = vsel %vm708, %v696, %v711
  %v713 = vsel %vm707, %v710, %v712
  %v714 = vsel %vm706, %v693, %v696
  %v715 = vsel %vm709, %v702, 920167782
  %v716 = vsel %vm708, %v699, %v715
  %v717 = vsel %vm707, %v714, %v716
  %v718 = vsel %vm706, %v696, %v699
  %v719 = vsel %vm709, %v705, 1326507024
  %v720 = vsel %vm708, %v702, %v719
  %v721 = vsel %vm707, %v718, %v720
  %v722 = vshll.u32 %v682, 8
  %v723 = vmul.u32.u64.compose %v722, %v721
  %v724 = vextract.low.u32 %v723
  %v725 = vextract.high.u32 %v723
  %v726 = vmul.u32.u64.compose %v722, %v717
  %v727 = vextract.low.u32 %v726
  %v728 = vextract.high.u32 %v726
  %v729 = vmul.u32 %v722, %v713
  %v730 = vadd.s32 %v725, %v727
  %vm731 = vc.u32 %v725, %v727
  %v732 = vadd.s32 %v728, 1
  %v733 = vsel %vm731, %v732, %v728
  %v734 = vadd.s32 %v729, %v733
  %v735 = vadd.s32 %v734, 536870912
  %v736 = vshrl.u32 %v735, 30
  %v737 = vshll.u32 %v736, 30
  %v738 = vsub.s32 %v734, %v737
  %vm739 = vcmp.lt.s32.totalorder %v738, 0
  %v740 = vsub.s32 0, %v738
  %v741 = vsel %vm739, %v740, %v738
  %v742 = vclz %v741
  %v743 = vsub.s32 %v742, 2
  %vm744 = vcmp.gt.s32.totalorder 0, %v743
  %v745 = vsel %vm744, 0, %v743
  %v746 = vsub.s32 32, %v745
  %v747 = vshll.u32 %v738, %v745
  %v748 = vshrl.u32 %v730, %v746
  %v749 = vor.u32 %v747, %v748
  %v750 = vsub.s32 4294967266, %v745
  %v751 = vadd.s32 %v750, 127
  %v752 = vshll.u32 %v751, 23
  %v753 = vor.u32 4788187, %v752
  %v754 = vand.u32 2147483647, %v753
  %v756 = vcvt.s32.f32 %v749
  %v757 = vmul.f32 %v756, %v754
  %v758 = vxor.u32 %v757, 2147483648
  %v759 = vsel %vm676, %v758, %v757
  %v760 = vsub.s32 4, %v736
  %v761 = vsel %vm676, %v760, %v736
  %v762 = vsel %vm675, %v336, %v759
  %v763 = vsel %vm675, 0, %v761
  %v764 = vcosq.f32.pop %v762
  %v765 = vsinq.f32.pop %v762
  %vm766 = vweird.f32 %v336
  %v767 = vand.u32 %v763, 3
  %vm768 = vcmp.lt.s32.totalorder %v767, 2
  %vm769 = vcmp.eq.s32.totalorder %v767, 0
  %v770 = vxor.u32 %v765, 2147483648
  %v771 = vsel %vm769, %v764, %v770
  %vm772 = vcmp.eq.s32.totalorder %v767, 2
  %v773 = vxor.u32 %v764, 2147483648
  %v774 = vsel %vm772, %v773, %v765
  %v775 = vsel %vm768, %v771, %v774
  %v776 = vsel %vm766, nan, %v775
  %v777 = vand.u32 2147483647, %v337
  %vm778 = vcmp.le.f32.partialorder %v777, 0.7853982
  %vm779 = vcmp.lt.s32.totalorder %v337, 0
  %v780 = vand.u32 %v337, 2139095040
  %v781 = vshrl.u32 %v780, 23
  %v782 = vsub.s32 %v781, 127
  %v783 = vand.u32 2147483647, %v337
  %v784 = vand.u32 %v783, 8388607
  %v785 = vor.u32 %v784, 8388608
  %v786 = vsub.s32 0, %v785
  %v787 = vadd.s32 %v782, 1
  %vm788 = vcmp.gt.s32.totalorder %v787, 0
  %v789 = vsel %vm788, %v787, 0
  %v790 = vshrl.u32 %v789, 5
  %v791 = vand.u32 %v789, 31
  %v792 = vsub.s32 32, %v791
  %v793 = vshrl.u32 683565275, %v792
  %v794 = vshll.u32 683565275, %v791
  %v795 = vshrl.u32 2475754826, %v792
  %v796 = vor.u32 %v794, %v795
  %v797 = vshll.u32 2475754826, %v791
  %v798 = vshrl.u32 2131351028, %v792
  %v799 = vor.u32 %v797, %v798
  %v800 = vshll.u32 2131351028, %v791
  %v801 = vshrl.u32 2102212464, %v792
  %v802 = vor.u32 %v800, %v801
  %v803 = vshll.u32 2102212464, %v791
  %v804 = vshrl.u32 920167782, %v792
  %v805 = vor.u32 %v803, %v804
  %v806 = vshll.u32 920167782, %v791
  %v807 = vshrl.u32 1326507024, %v792
  %v808 = vor.u32 %v806, %v807
  %vm809 = vcmp.lt.s32.totalorder %v790, 1
  %vm810 = vcmp.lt.s32.totalorder %v790, 2
  %vm811 = vcmp.lt.s32.totalorder %v790, 3
  %vm812 = vcmp.lt.s32.totalorder %v790, 4
  %v813 = vsel %vm809, %v793, %v796
  %v814 = vsel %vm812, %v802, 2102212464
  %v815 = vsel %vm811, %v799, %v814
  %v816 = vsel %vm810, %v813, %v815
  %v817 = vsel %vm809, %v796, %v799
  %v818 = vsel %vm812, %v805, 920167782
  %v819 = vsel %vm811, %v802, %v818
  %v820 = vsel %vm810, %v817, %v819
  %v821 = vsel %vm809, %v799, %v802
  %v822 = vsel %vm812, %v808, 1326507024
  %v823 = vsel %vm811, %v805, %v822
  %v824 = vsel %vm810, %v821, %v823
  %v825 = vshll.u32 %v785, 8
  %v826 = vmul.u32.u64.compose %v825, %v824
  %v827 = vextract.low.u32 %v826
  %v828 = vextract.high.u32 %v826
  %v829 = vmul.u32.u64.compose %v825, %v820
  %v830 = vextract.low.u32 %v829
  %v831 = vextract.high.u32 %v829
  %v832 = vmul.u32 %v825, %v816
  %v833 = vadd.s32 %v828, %v830
  %vm834 = vc.u32 %v828, %v830
  %v835 = vadd.s32 %v831, 1
  %v836 = vsel %vm834, %v835, %v831
  %v837 = vadd.s32 %v832, %v836
  %v838 = vadd.s32 %v837, 536870912
  %v839 = vshrl.u32 %v838, 30
  %v840 = vshll.u32 %v839, 30
  %v841 = vsub.s32 %v837, %v840
  %vm842 = vcmp.lt.s32.totalorder %v841, 0
  %v843 = vsub.s32 0, %v841
  %v844 = vsel %vm842, %v843, %v841
  %v845 = vclz %v844
  %v846 = vsub.s32 %v845, 2
  %vm847 = vcmp.gt.s32.totalorder 0, %v846
  %v848 = vsel %vm847, 0, %v846
  %v849 = vsub.s32 32, %v848
  %v850 = vshll.u32 %v841, %v848
  %v851 = vshrl.u32 %v833, %v849
  %v852 = vor.u32 %v850, %v851
  %v853 = vsub.s32 4294967266, %v848
  %v854 = vadd.s32 %v853, 127
  %v855 = vshll.u32 %v854, 23
  %v856 = vor.u32 4788187, %v855
  %v857 = vand.u32 2147483647, %v856
  %v859 = vcvt.s32.f32 %v852
  %v860 = vmul.f32 %v859, %v857
  %v861 = vxor.u32 %v860, 2147483648
  %v862 = vsel %vm779, %v861, %v860
  %v863 = vsub.s32 4, %v839
  %v864 = vsel %vm779, %v863, %v839
  %v865 = vsel %vm778, %v337, %v862
  %v866 = vsel %vm778, 0, %v864
  %v867 = vcosq.f32.pop %v865
  %v868 = vsinq.f32.pop %v865
  %vm869 = vweird.f32 %v337
  %v870 = vand.u32 %v866, 3
  %vm871 = vcmp.lt.s32.totalorder %v870, 2
  %vm872 = vcmp.eq.s32.totalorder %v870, 0
  %v873 = vxor.u32 %v868, 2147483648
  %v874 = vsel %vm872, %v867, %v873
  %vm875 = vcmp.eq.s32.totalorder %v870, 2
  %v876 = vxor.u32 %v867, 2147483648
  %v877 = vsel %vm875, %v876, %v868
  %v878 = vsel %vm871, %v874, %v877
  %v879 = vsel %vm869, nan, %v878
  %v880 = vand.u32 2147483647, %v338
  %vm881 = vcmp.le.f32.partialorder %v880, 0.7853982
  %vm882 = vcmp.lt.s32.totalorder %v338, 0
  %v883 = vand.u32 %v338, 2139095040
  %v884 = vshrl.u32 %v883, 23
  %v885 = vsub.s32 %v884, 127
  %v886 = vand.u32 2147483647, %v338
  %v887 = vand.u32 %v886, 8388607
  %v888 = vor.u32 %v887, 8388608
  %v889 = vsub.s32 0, %v888
  %v890 = vadd.s32 %v885, 1
  %vm891 = vcmp.gt.s32.totalorder %v890, 0
  %v892 = vsel %vm891, %v890, 0
  %v893 = vshrl.u32 %v892, 5
  %v894 = vand.u32 %v892, 31
  %v895 = vsub.s32 32, %v894
  %v896 = vshrl.u32 683565275, %v895
  %v897 = vshll.u32 683565275, %v894
  %v898 = vshrl.u32 2475754826, %v895
  %v899 = vor.u32 %v897, %v898
  %v900 = vshll.u32 2475754826, %v894
  %v901 = vshrl.u32 2131351028, %v895
  %v902 = vor.u32 %v900, %v901
  %v903 = vshll.u32 2131351028, %v894
  %v904 = vshrl.u32 2102212464, %v895
  %v905 = vor.u32 %v903, %v904
  %v906 = vshll.u32 2102212464, %v894
  %v907 = vshrl.u32 920167782, %v895
  %v908 = vor.u32 %v906, %v907
  %v909 = vshll.u32 920167782, %v894
  %v910 = vshrl.u32 1326507024, %v895
  %v911 = vor.u32 %v909, %v910
  %vm912 = vcmp.lt.s32.totalorder %v893, 1
  %vm913 = vcmp.lt.s32.totalorder %v893, 2
  %vm914 = vcmp.lt.s32.totalorder %v893, 3
  %vm915 = vcmp.lt.s32.totalorder %v893, 4
  %v916 = vsel %vm912, %v896, %v899
  %v917 = vsel %vm915, %v905, 2102212464
  %v918 = vsel %vm914, %v902, %v917
  %v919 = vsel %vm913, %v916, %v918
  %v920 = vsel %vm912, %v899, %v902
  %v921 = vsel %vm915, %v908, 920167782
  %v922 = vsel %vm914, %v905, %v921
  %v923 = vsel %vm913, %v920, %v922
  %v924 = vsel %vm912, %v902, %v905
  %v925 = vsel %vm915, %v911, 1326507024
  %v926 = vsel %vm914, %v908, %v925
  %v927 = vsel %vm913, %v924, %v926
  %v928 = vshll.u32 %v888, 8
  %v929 = vmul.u32.u64.compose %v928, %v927
  %v930 = vextract.low.u32 %v929
  %v931 = vextract.high.u32 %v929
  %v932 = vmul.u32.u64.compose %v928, %v923
  %v933 = vextract.low.u32 %v932
  %v934 = vextract.high.u32 %v932
  %v935 = vmul.u32 %v928, %v919
  %v936 = vadd.s32 %v931, %v933
  %vm937 = vc.u32 %v931, %v933
  %v938 = vadd.s32 %v934, 1
  %v939 = vsel %vm937, %v938, %v934
  %v940 = vadd.s32 %v935, %v939
  %v941 = vadd.s32 %v940, 536870912
  %v942 = vshrl.u32 %v941, 30
  %v943 = vshll.u32 %v942, 30
  %v944 = vsub.s32 %v940, %v943
  %vm945 = vcmp.lt.s32.totalorder %v944, 0
  %v946 = vsub.s32 0, %v944
  %v947 = vsel %vm945, %v946, %v944
  %v948 = vclz %v947
  %v949 = vsub.s32 %v948, 2
  %vm950 = vcmp.gt.s32.totalorder 0, %v949
  %v951 = vsel %vm950, 0, %v949
  %v952 = vsub.s32 32, %v951
  %v953 = vshll.u32 %v944, %v951
  %v954 = vshrl.u32 %v936, %v952
  %v955 = vor.u32 %v953, %v954
  %v956 = vsub.s32 4294967266, %v951
  %v957 = vadd.s32 %v956, 127
  %v958 = vshll.u32 %v957, 23
  %v959 = vor.u32 4788187, %v958
  %v960 = vand.u32 2147483647, %v959
  %v962 = vcvt.s32.f32 %v955
  %v963 = vmul.f32 %v962, %v960
  %v964 = vxor.u32 %v963, 2147483648
  %v965 = vsel %vm882, %v964, %v963
  %v966 = vsub.s32 4, %v942
  %v967 = vsel %vm882, %v966, %v942
  %v968 = vsel %vm881, %v338, %v965
  %v969 = vsel %vm881, 0, %v967
  %v970 = vcosq.f32.pop %v968
  %v971 = vsinq.f32.pop %v968
  %vm972 = vweird.f32 %v338
  %v973 = vand.u32 %v969, 3
  %vm974 = vcmp.lt.s32.totalorder %v973, 2
  %vm975 = vcmp.eq.s32.totalorder %v973, 0
  %v976 = vxor.u32 %v971, 2147483648
  %v977 = vsel %vm975, %v970, %v976
  %vm978 = vcmp.eq.s32.totalorder %v973, 2
  %v979 = vxor.u32 %v970, 2147483648
  %v980 = vsel %vm978, %v979, %v971
  %v981 = vsel %vm974, %v977, %v980
  %v982 = vsel %vm972, nan, %v981
  %v983 = vand.u32 2147483647, %v339
  %vm984 = vcmp.le.f32.partialorder %v983, 0.7853982
  %vm985 = vcmp.lt.s32.totalorder %v339, 0
  %v986 = vand.u32 %v339, 2139095040
  %v987 = vshrl.u32 %v986, 23
  %v988 = vsub.s32 %v987, 127
  %v989 = vand.u32 2147483647, %v339
  %v990 = vand.u32 %v989, 8388607
  %v991 = vor.u32 %v990, 8388608
  %v992 = vsub.s32 0, %v991
  %v993 = vadd.s32 %v988, 1
  %vm994 = vcmp.gt.s32.totalorder %v993, 0
  %v995 = vsel %vm994, %v993, 0
  %v996 = vshrl.u32 %v995, 5
  %v997 = vand.u32 %v995, 31
  %v998 = vsub.s32 32, %v997
  %v999 = vshrl.u32 683565275, %v998
  %v1000 = vshll.u32 683565275, %v997
  %v1001 = vshrl.u32 2475754826, %v998
  %v1002 = vor.u32 %v1000, %v1001
  %v1003 = vshll.u32 2475754826, %v997
  %v1004 = vshrl.u32 2131351028, %v998
  %v1005 = vor.u32 %v1003, %v1004
  %v1006 = vshll.u32 2131351028, %v997
  %v1007 = vshrl.u32 2102212464, %v998
  %v1008 = vor.u32 %v1006, %v1007
  %v1009 = vshll.u32 2102212464, %v997
  %v1010 = vshrl.u32 920167782, %v998
  %v1011 = vor.u32 %v1009, %v1010
  %v1012 = vshll.u32 920167782, %v997
  %v1013 = vshrl.u32 1326507024, %v998
  %v1014 = vor.u32 %v1012, %v1013
  %vm1015 = vcmp.lt.s32.totalorder %v996, 1
  %vm1016 = vcmp.lt.s32.totalorder %v996, 2
  %vm1017 = vcmp.lt.s32.totalorder %v996, 3
  %vm1018 = vcmp.lt.s32.totalorder %v996, 4
  %v1019 = vsel %vm1015, %v999, %v1002
  %v1020 = vsel %vm1018, %v1008, 2102212464
  %v1021 = vsel %vm1017, %v1005, %v1020
  %v1022 = vsel %vm1016, %v1019, %v1021
  %v1023 = vsel %vm1015, %v1002, %v1005
  %v1024 = vsel %vm1018, %v1011, 920167782
  %v1025 = vsel %vm1017, %v1008, %v1024
  %v1026 = vsel %vm1016, %v1023, %v1025
  %v1027 = vsel %vm1015, %v1005, %v1008
  %v1028 = vsel %vm1018, %v1014, 1326507024
  %v1029 = vsel %vm1017, %v1011, %v1028
  %v1030 = vsel %vm1016, %v1027, %v1029
  %v1031 = vshll.u32 %v991, 8
  %v1032 = vmul.u32.u64.compose %v1031, %v1030
  %v1033 = vextract.low.u32 %v1032
  %v1034 = vextract.high.u32 %v1032
  %v1035 = vmul.u32.u64.compose %v1031, %v1026
  %v1036 = vextract.low.u32 %v1035
  %v1037 = vextract.high.u32 %v1035
  %v1038 = vmul.u32 %v1031, %v1022
  %v1039 = vadd.s32 %v1034, %v1036
  %vm1040 = vc.u32 %v1034, %v1036
  %v1041 = vadd.s32 %v1037, 1
  %v1042 = vsel %vm1040, %v1041, %v1037
  %v1043 = vadd.s32 %v1038, %v1042
  %v1044 = vadd.s32 %v1043, 536870912
  %v1045 = vshrl.u32 %v1044, 30
  %v1046 = vshll.u32 %v1045, 30
  %v1047 = vsub.s32 %v1043, %v1046
  %vm1048 = vcmp.lt.s32.totalorder %v1047, 0
  %v1049 = vsub.s32 0, %v1047
  %v1050 = vsel %vm1048, %v1049, %v1047
  %v1051 = vclz %v1050
  %v1052 = vsub.s32 %v1051, 2
  %vm1053 = vcmp.gt.s32.totalorder 0, %v1052
  %v1054 = vsel %vm1053, 0, %v1052
  %v1055 = vsub.s32 32, %v1054
  %v1056 = vshll.u32 %v1047, %v1054
  %v1057 = vshrl.u32 %v1039, %v1055
  %v1058 = vor.u32 %v1056, %v1057
  %v1059 = vsub.s32 4294967266, %v1054
  %v1060 = vadd.s32 %v1059, 127
  %v1061 = vshll.u32 %v1060, 23
  %v1062 = vor.u32 4788187, %v1061
  %v1063 = vand.u32 2147483647, %v1062
  %v1065 = vcvt.s32.f32 %v1058
  %v1066 = vmul.f32 %v1065, %v1063
  %v1067 = vxor.u32 %v1066, 2147483648
  %v1068 = vsel %vm985, %v1067, %v1066
  %v1069 = vsub.s32 4, %v1045
  %v1070 = vsel %vm985, %v1069, %v1045
  %v1071 = vsel %vm984, %v339, %v1068
  %v1072 = vsel %vm984, 0, %v1070
  %v1073 = vcosq.f32.pop %v1071
  %v1074 = vsinq.f32.pop %v1071
  %vm1075 = vweird.f32 %v339
  %v1076 = vand.u32 %v1072, 3
  %vm1077 = vcmp.lt.s32.totalorder %v1076, 2
  %vm1078 = vcmp.eq.s32.totalorder %v1076, 0
  %v1079 = vxor.u32 %v1074, 2147483648
  %v1080 = vsel %vm1078, %v1073, %v1079
  %vm1081 = vcmp.eq.s32.totalorder %v1076, 2
  %v1082 = vxor.u32 %v1073, 2147483648
  %v1083 = vsel %vm1081, %v1082, %v1074
  %v1084 = vsel %vm1077, %v1080, %v1083
  %v1085 = vsel %vm1075, nan, %v1084
  %v1086 = vand.u32 2147483647, %v340
  %vm1087 = vcmp.le.f32.partialorder %v1086, 0.7853982
  %vm1088 = vcmp.lt.s32.totalorder %v340, 0
  %v1089 = vand.u32 %v340, 2139095040
  %v1090 = vshrl.u32 %v1089, 23
  %v1091 = vsub.s32 %v1090, 127
  %v1092 = vand.u32 2147483647, %v340
  %v1093 = vand.u32 %v1092, 8388607
  %v1094 = vor.u32 %v1093, 8388608
  %v1095 = vsub.s32 0, %v1094
  %v1096 = vadd.s32 %v1091, 1
  %vm1097 = vcmp.gt.s32.totalorder %v1096, 0
  %v1098 = vsel %vm1097, %v1096, 0
  %v1099 = vshrl.u32 %v1098, 5
  %v1100 = vand.u32 %v1098, 31
  %v1101 = vsub.s32 32, %v1100
  %v1102 = vshrl.u32 683565275, %v1101
  %v1103 = vshll.u32 683565275, %v1100
  %v1104 = vshrl.u32 2475754826, %v1101
  %v1105 = vor.u32 %v1103, %v1104
  %v1106 = vshll.u32 2475754826, %v1100
  %v1107 = vshrl.u32 2131351028, %v1101
  %v1108 = vor.u32 %v1106, %v1107
  %v1109 = vshll.u32 2131351028, %v1100
  %v1110 = vshrl.u32 2102212464, %v1101
  %v1111 = vor.u32 %v1109, %v1110
  %v1112 = vshll.u32 2102212464, %v1100
  %v1113 = vshrl.u32 920167782, %v1101
  %v1114 = vor.u32 %v1112, %v1113
  %v1115 = vshll.u32 920167782, %v1100
  %v1116 = vshrl.u32 1326507024, %v1101
  %v1117 = vor.u32 %v1115, %v1116
  %vm1118 = vcmp.lt.s32.totalorder %v1099, 1
  %vm1119 = vcmp.lt.s32.totalorder %v1099, 2
  %vm1120 = vcmp.lt.s32.totalorder %v1099, 3
  %vm1121 = vcmp.lt.s32.totalorder %v1099, 4
  %v1122 = vsel %vm1118, %v1102, %v1105
  %v1123 = vsel %vm1121, %v1111, 2102212464
  %v1124 = vsel %vm1120, %v1108, %v1123
  %v1125 = vsel %vm1119, %v1122, %v1124
  %v1126 = vsel %vm1118, %v1105, %v1108
  %v1127 = vsel %vm1121, %v1114, 920167782
  %v1128 = vsel %vm1120, %v1111, %v1127
  %v1129 = vsel %vm1119, %v1126, %v1128
  %v1130 = vsel %vm1118, %v1108, %v1111
  %v1131 = vsel %vm1121, %v1117, 1326507024
  %v1132 = vsel %vm1120, %v1114, %v1131
  %v1133 = vsel %vm1119, %v1130, %v1132
  %v1134 = vshll.u32 %v1094, 8
  %v1135 = vmul.u32.u64.compose %v1134, %v1133
  %v1136 = vextract.low.u32 %v1135
  %v1137 = vextract.high.u32 %v1135
  %v1138 = vmul.u32.u64.compose %v1134, %v1129
  %v1139 = vextract.low.u32 %v1138
  %v1140 = vextract.high.u32 %v1138
  %v1141 = vmul.u32 %v1134, %v1125
  %v1142 = vadd.s32 %v1137, %v1139
  %vm1143 = vc.u32 %v1137, %v1139
  %v1144 = vadd.s32 %v1140, 1
  %v1145 = vsel %vm1143, %v1144, %v1140
  %v1146 = vadd.s32 %v1141, %v1145
  %v1147 = vadd.s32 %v1146, 536870912
  %v1148 = vshrl.u32 %v1147, 30
  %v1149 = vshll.u32 %v1148, 30
  %v1150 = vsub.s32 %v1146, %v1149
  %vm1151 = vcmp.lt.s32.totalorder %v1150, 0
  %v1152 = vsub.s32 0, %v1150
  %v1153 = vsel %vm1151, %v1152, %v1150
  %v1154 = vclz %v1153
  %v1155 = vsub.s32 %v1154, 2
  %vm1156 = vcmp.gt.s32.totalorder 0, %v1155
  %v1157 = vsel %vm1156, 0, %v1155
  %v1158 = vsub.s32 32, %v1157
  %v1159 = vshll.u32 %v1150, %v1157
  %v1160 = vshrl.u32 %v1142, %v1158
  %v1161 = vor.u32 %v1159, %v1160
  %v1162 = vsub.s32 4294967266, %v1157
  %v1163 = vadd.s32 %v1162, 127
  %v1164 = vshll.u32 %v1163, 23
  %v1165 = vor.u32 4788187, %v1164
  %v1166 = vand.u32 2147483647, %v1165
  %v1168 = vcvt.s32.f32 %v1161
  %v1169 = vmul.f32 %v1168, %v1166
  %v1170 = vxor.u32 %v1169, 2147483648
  %v1171 = vsel %vm1088, %v1170, %v1169
  %v1172 = vsub.s32 4, %v1148
  %v1173 = vsel %vm1088, %v1172, %v1148
  %v1174 = vsel %vm1087, %v340, %v1171
  %v1175 = vsel %vm1087, 0, %v1173
  %v1176 = vcosq.f32.pop %v1174
  %v1177 = vsinq.f32.pop %v1174
  %vm1178 = vweird.f32 %v340
  %v1179 = vand.u32 %v1175, 3
  %vm1180 = vcmp.lt.s32.totalorder %v1179, 2
  %vm1181 = vcmp.eq.s32.totalorder %v1179, 0
  %v1182 = vxor.u32 %v1177, 2147483648
  %v1183 = vsel %vm1181, %v1176, %v1182
  %vm1184 = vcmp.eq.s32.totalorder %v1179, 2
  %v1185 = vxor.u32 %v1176, 2147483648
  %v1186 = vsel %vm1184, %v1185, %v1177
  %v1187 = vsel %vm1180, %v1183, %v1186
  %v1188 = vsel %vm1178, nan, %v1187
  %v1189 = vand.u32 2147483647, %v341
  %vm1190 = vcmp.le.f32.partialorder %v1189, 0.7853982
  %vm1191 = vcmp.lt.s32.totalorder %v341, 0
  %v1192 = vand.u32 %v341, 2139095040
  %v1193 = vshrl.u32 %v1192, 23
  %v1194 = vsub.s32 %v1193, 127
  %v1195 = vand.u32 2147483647, %v341
  %v1196 = vand.u32 %v1195, 8388607
  %v1197 = vor.u32 %v1196, 8388608
  %v1198 = vsub.s32 0, %v1197
  %v1199 = vadd.s32 %v1194, 1
  %vm1200 = vcmp.gt.s32.totalorder %v1199, 0
  %v1201 = vsel %vm1200, %v1199, 0
  %v1202 = vshrl.u32 %v1201, 5
  %v1203 = vand.u32 %v1201, 31
  %v1204 = vsub.s32 32, %v1203
  %v1205 = vshrl.u32 683565275, %v1204
  %v1206 = vshll.u32 683565275, %v1203
  %v1207 = vshrl.u32 2475754826, %v1204
  %v1208 = vor.u32 %v1206, %v1207
  %v1209 = vshll.u32 2475754826, %v1203
  %v1210 = vshrl.u32 2131351028, %v1204
  %v1211 = vor.u32 %v1209, %v1210
  %v1212 = vshll.u32 2131351028, %v1203
  %v1213 = vshrl.u32 2102212464, %v1204
  %v1214 = vor.u32 %v1212, %v1213
  %v1215 = vshll.u32 2102212464, %v1203
  %v1216 = vshrl.u32 920167782, %v1204
  %v1217 = vor.u32 %v1215, %v1216
  %v1218 = vshll.u32 920167782, %v1203
  %v1219 = vshrl.u32 1326507024, %v1204
  %v1220 = vor.u32 %v1218, %v1219
  %vm1221 = vcmp.lt.s32.totalorder %v1202, 1
  %vm1222 = vcmp.lt.s32.totalorder %v1202, 2
  %vm1223 = vcmp.lt.s32.totalorder %v1202, 3
  %vm1224 = vcmp.lt.s32.totalorder %v1202, 4
  %v1225 = vsel %vm1221, %v1205, %v1208
  %v1226 = vsel %vm1224, %v1214, 2102212464
  %v1227 = vsel %vm1223, %v1211, %v1226
  %v1228 = vsel %vm1222, %v1225, %v1227
  %v1229 = vsel %vm1221, %v1208, %v1211
  %v1230 = vsel %vm1224, %v1217, 920167782
  %v1231 = vsel %vm1223, %v1214, %v1230
  %v1232 = vsel %vm1222, %v1229, %v1231
  %v1233 = vsel %vm1221, %v1211, %v1214
  %v1234 = vsel %vm1224, %v1220, 1326507024
  %v1235 = vsel %vm1223, %v1217, %v1234
  %v1236 = vsel %vm1222, %v1233, %v1235
  %v1237 = vshll.u32 %v1197, 8
  %v1238 = vmul.u32.u64.compose %v1237, %v1236
  %v1239 = vextract.low.u32 %v1238
  %v1240 = vextract.high.u32 %v1238
  %v1241 = vmul.u32.u64.compose %v1237, %v1232
  %v1242 = vextract.low.u32 %v1241
  %v1243 = vextract.high.u32 %v1241
  %v1244 = vmul.u32 %v1237, %v1228
  %v1245 = vadd.s32 %v1240, %v1242
  %vm1246 = vc.u32 %v1240, %v1242
  %v1247 = vadd.s32 %v1243, 1
  %v1248 = vsel %vm1246, %v1247, %v1243
  %v1249 = vadd.s32 %v1244, %v1248
  %v1250 = vadd.s32 %v1249, 536870912
  %v1251 = vshrl.u32 %v1250, 30
  %v1252 = vshll.u32 %v1251, 30
  %v1253 = vsub.s32 %v1249, %v1252
  %vm1254 = vcmp.lt.s32.totalorder %v1253, 0
  %v1255 = vsub.s32 0, %v1253
  %v1256 = vsel %vm1254, %v1255, %v1253
  %v1257 = vclz %v1256
  %v1258 = vsub.s32 %v1257, 2
  %vm1259 = vcmp.gt.s32.totalorder 0, %v1258
  %v1260 = vsel %vm1259, 0, %v1258
  %v1261 = vsub.s32 32, %v1260
  %v1262 = vshll.u32 %v1253, %v1260
  %v1263 = vshrl.u32 %v1245, %v1261
  %v1264 = vor.u32 %v1262, %v1263
  %v1265 = vsub.s32 4294967266, %v1260
  %v1266 = vadd.s32 %v1265, 127
  %v1267 = vshll.u32 %v1266, 23
  %v1268 = vor.u32 4788187, %v1267
  %v1269 = vand.u32 2147483647, %v1268
  %v1271 = vcvt.s32.f32 %v1264
  %v1272 = vmul.f32 %v1271, %v1269
  %v1273 = vxor.u32 %v1272, 2147483648
  %v1274 = vsel %vm1191, %v1273, %v1272
  %v1275 = vsub.s32 4, %v1251
  %v1276 = vsel %vm1191, %v1275, %v1251
  %v1277 = vsel %vm1190, %v341, %v1274
  %v1278 = vsel %vm1190, 0, %v1276
  %v1279 = vcosq.f32.pop %v1277
  %v1280 = vsinq.f32.pop %v1277
  %vm1281 = vweird.f32 %v341
  %v1282 = vand.u32 %v1278, 3
  %vm1283 = vcmp.lt.s32.totalorder %v1282, 2
  %vm1284 = vcmp.eq.s32.totalorder %v1282, 0
  %v1285 = vxor.u32 %v1280, 2147483648
  %v1286 = vsel %vm1284, %v1279, %v1285
  %vm1287 = vcmp.eq.s32.totalorder %v1282, 2
  %v1288 = vxor.u32 %v1279, 2147483648
  %v1289 = vsel %vm1287, %v1288, %v1280
  %v1290 = vsel %vm1283, %v1286, %v1289
  %v1291 = vsel %vm1281, nan, %v1290
  %v1292 = vand.u32 2147483647, %v342
  %vm1293 = vcmp.le.f32.partialorder %v1292, 0.7853982
  %vm1294 = vcmp.lt.s32.totalorder %v342, 0
  %v1295 = vand.u32 %v342, 2139095040
  %v1296 = vshrl.u32 %v1295, 23
  %v1297 = vsub.s32 %v1296, 127
  %v1298 = vand.u32 2147483647, %v342
  %v1299 = vand.u32 %v1298, 8388607
  %v1300 = vor.u32 %v1299, 8388608
  %v1301 = vsub.s32 0, %v1300
  %v1302 = vadd.s32 %v1297, 1
  %vm1303 = vcmp.gt.s32.totalorder %v1302, 0
  %v1304 = vsel %vm1303, %v1302, 0
  %v1305 = vshrl.u32 %v1304, 5
  %v1306 = vand.u32 %v1304, 31
  %v1307 = vsub.s32 32, %v1306
  %v1308 = vshrl.u32 683565275, %v1307
  %v1309 = vshll.u32 683565275, %v1306
  %v1310 = vshrl.u32 2475754826, %v1307
  %v1311 = vor.u32 %v1309, %v1310
  %v1312 = vshll.u32 2475754826, %v1306
  %v1313 = vshrl.u32 2131351028, %v1307
  %v1314 = vor.u32 %v1312, %v1313
  %v1315 = vshll.u32 2131351028, %v1306
  %v1316 = vshrl.u32 2102212464, %v1307
  %v1317 = vor.u32 %v1315, %v1316
  %v1318 = vshll.u32 2102212464, %v1306
  %v1319 = vshrl.u32 920167782, %v1307
  %v1320 = vor.u32 %v1318, %v1319
  %v1321 = vshll.u32 920167782, %v1306
  %v1322 = vshrl.u32 1326507024, %v1307
  %v1323 = vor.u32 %v1321, %v1322
  %vm1324 = vcmp.lt.s32.totalorder %v1305, 1
  %vm1325 = vcmp.lt.s32.totalorder %v1305, 2
  %vm1326 = vcmp.lt.s32.totalorder %v1305, 3
  %vm1327 = vcmp.lt.s32.totalorder %v1305, 4
  %v1328 = vsel %vm1324, %v1308, %v1311
  %v1329 = vsel %vm1327, %v1317, 2102212464
  %v1330 = vsel %vm1326, %v1314, %v1329
  %v1331 = vsel %vm1325, %v1328, %v1330
  %v1332 = vsel %vm1324, %v1311, %v1314
  %v1333 = vsel %vm1327, %v1320, 920167782
  %v1334 = vsel %vm1326, %v1317, %v1333
  %v1335 = vsel %vm1325, %v1332, %v1334
  %v1336 = vsel %vm1324, %v1314, %v1317
  %v1337 = vsel %vm1327, %v1323, 1326507024
  %v1338 = vsel %vm1326, %v1320, %v1337
  %v1339 = vsel %vm1325, %v1336, %v1338
  %v1340 = vshll.u32 %v1300, 8
  %v1341 = vmul.u32.u64.compose %v1340, %v1339
  %v1342 = vextract.low.u32 %v1341
  %v1343 = vextract.high.u32 %v1341
  %v1344 = vmul.u32.u64.compose %v1340, %v1335
  %v1345 = vextract.low.u32 %v1344
  %v1346 = vextract.high.u32 %v1344
  %v1347 = vmul.u32 %v1340, %v1331
  %v1348 = vadd.s32 %v1343, %v1345
  %vm1349 = vc.u32 %v1343, %v1345
  %v1350 = vadd.s32 %v1346, 1
  %v1351 = vsel %vm1349, %v1350, %v1346
  %v1352 = vadd.s32 %v1347, %v1351
  %v1353 = vadd.s32 %v1352, 536870912
  %v1354 = vshrl.u32 %v1353, 30
  %v1355 = vshll.u32 %v1354, 30
  %v1356 = vsub.s32 %v1352, %v1355
  %vm1357 = vcmp.lt.s32.totalorder %v1356, 0
  %v1358 = vsub.s32 0, %v1356
  %v1359 = vsel %vm1357, %v1358, %v1356
  %v1360 = vclz %v1359
  %v1361 = vsub.s32 %v1360, 2
  %vm1362 = vcmp.gt.s32.totalorder 0, %v1361
  %v1363 = vsel %vm1362, 0, %v1361
  %v1364 = vsub.s32 32, %v1363
  %v1365 = vshll.u32 %v1356, %v1363
  %v1366 = vshrl.u32 %v1348, %v1364
  %v1367 = vor.u32 %v1365, %v1366
  %v1368 = vsub.s32 4294967266, %v1363
  %v1369 = vadd.s32 %v1368, 127
  %v1370 = vshll.u32 %v1369, 23
  %v1371 = vor.u32 4788187, %v1370
  %v1372 = vand.u32 2147483647, %v1371
  %v1374 = vcvt.s32.f32 %v1367
  %v1375 = vmul.f32 %v1374, %v1372
  %v1376 = vxor.u32 %v1375, 2147483648
  %v1377 = vsel %vm1294, %v1376, %v1375
  %v1378 = vsub.s32 4, %v1354
  %v1379 = vsel %vm1294, %v1378, %v1354
  %v1380 = vsel %vm1293, %v342, %v1377
  %v1381 = vsel %vm1293, 0, %v1379
  %v1382 = vcosq.f32.pop %v1380
  %v1383 = vsinq.f32.pop %v1380
  %vm1384 = vweird.f32 %v342
  %v1385 = vand.u32 %v1381, 3
  %vm1386 = vcmp.lt.s32.totalorder %v1385, 2
  %vm1387 = vcmp.eq.s32.totalorder %v1385, 0
  %v1388 = vxor.u32 %v1383, 2147483648
  %v1389 = vsel %vm1387, %v1382, %v1388
  %vm1390 = vcmp.eq.s32.totalorder %v1385, 2
  %v1391 = vxor.u32 %v1382, 2147483648
  %v1392 = vsel %vm1390, %v1391, %v1383
  %v1393 = vsel %vm1386, %v1389, %v1392
  %v1394 = vsel %vm1384, nan, %v1393
  %v1395 = vand.u32 2147483647, %v343
  %vm1396 = vcmp.le.f32.partialorder %v1395, 0.7853982
  %vm1397 = vcmp.lt.s32.totalorder %v343, 0
  %v1398 = vand.u32 %v343, 2139095040
  %v1399 = vshrl.u32 %v1398, 23
  %v1400 = vsub.s32 %v1399, 127
  %v1401 = vand.u32 2147483647, %v343
  %v1402 = vand.u32 %v1401, 8388607
  %v1403 = vor.u32 %v1402, 8388608
  %v1404 = vsub.s32 0, %v1403
  %v1405 = vadd.s32 %v1400, 1
  %vm1406 = vcmp.gt.s32.totalorder %v1405, 0
  %v1407 = vsel %vm1406, %v1405, 0
  %v1408 = vshrl.u32 %v1407, 5
  %v1409 = vand.u32 %v1407, 31
  %v1410 = vsub.s32 32, %v1409
  %v1411 = vshrl.u32 683565275, %v1410
  %v1412 = vshll.u32 683565275, %v1409
  %v1413 = vshrl.u32 2475754826, %v1410
  %v1414 = vor.u32 %v1412, %v1413
  %v1415 = vshll.u32 2475754826, %v1409
  %v1416 = vshrl.u32 2131351028, %v1410
  %v1417 = vor.u32 %v1415, %v1416
  %v1418 = vshll.u32 2131351028, %v1409
  %v1419 = vshrl.u32 2102212464, %v1410
  %v1420 = vor.u32 %v1418, %v1419
  %v1421 = vshll.u32 2102212464, %v1409
  %v1422 = vshrl.u32 920167782, %v1410
  %v1423 = vor.u32 %v1421, %v1422
  %v1424 = vshll.u32 920167782, %v1409
  %v1425 = vshrl.u32 1326507024, %v1410
  %v1426 = vor.u32 %v1424, %v1425
  %vm1427 = vcmp.lt.s32.totalorder %v1408, 1
  %vm1428 = vcmp.lt.s32.totalorder %v1408, 2
  %vm1429 = vcmp.lt.s32.totalorder %v1408, 3
  %vm1430 = vcmp.lt.s32.totalorder %v1408, 4
  %v1431 = vsel %vm1427, %v1411, %v1414
  %v1432 = vsel %vm1430, %v1420, 2102212464
  %v1433 = vsel %vm1429, %v1417, %v1432
  %v1434 = vsel %vm1428, %v1431, %v1433
  %v1435 = vsel %vm1427, %v1414, %v1417
  %v1436 = vsel %vm1430, %v1423, 920167782
  %v1437 = vsel %vm1429, %v1420, %v1436
  %v1438 = vsel %vm1428, %v1435, %v1437
  %v1439 = vsel %vm1427, %v1417, %v1420
  %v1440 = vsel %vm1430, %v1426, 1326507024
  %v1441 = vsel %vm1429, %v1423, %v1440
  %v1442 = vsel %vm1428, %v1439, %v1441
  %v1443 = vshll.u32 %v1403, 8
  %v1444 = vmul.u32.u64.compose %v1443, %v1442
  %v1445 = vextract.low.u32 %v1444
  %v1446 = vextract.high.u32 %v1444
  %v1447 = vmul.u32.u64.compose %v1443, %v1438
  %v1448 = vextract.low.u32 %v1447
  %v1449 = vextract.high.u32 %v1447
  %v1450 = vmul.u32 %v1443, %v1434
  %v1451 = vadd.s32 %v1446, %v1448
  %vm1452 = vc.u32 %v1446, %v1448
  %v1453 = vadd.s32 %v1449, 1
  %v1454 = vsel %vm1452, %v1453, %v1449
  %v1455 = vadd.s32 %v1450, %v1454
  %v1456 = vadd.s32 %v1455, 536870912
  %v1457 = vshrl.u32 %v1456, 30
  %v1458 = vshll.u32 %v1457, 30
  %v1459 = vsub.s32 %v1455, %v1458
  %vm1460 = vcmp.lt.s32.totalorder %v1459, 0
  %v1461 = vsub.s32 0, %v1459
  %v1462 = vsel %vm1460, %v1461, %v1459
  %v1463 = vclz %v1462
  %v1464 = vsub.s32 %v1463, 2
  %vm1465 = vcmp.gt.s32.totalorder 0, %v1464
  %v1466 = vsel %vm1465, 0, %v1464
  %v1467 = vsub.s32 32, %v1466
  %v1468 = vshll.u32 %v1459, %v1466
  %v1469 = vshrl.u32 %v1451, %v1467
  %v1470 = vor.u32 %v1468, %v1469
  %v1471 = vsub.s32 4294967266, %v1466
  %v1472 = vadd.s32 %v1471, 127
  %v1473 = vshll.u32 %v1472, 23
  %v1474 = vor.u32 4788187, %v1473
  %v1475 = vand.u32 2147483647, %v1474
  %v1477 = vcvt.s32.f32 %v1470
  %v1478 = vmul.f32 %v1477, %v1475
  %v1479 = vxor.u32 %v1478, 2147483648
  %v1480 = vsel %vm1397, %v1479, %v1478
  %v1481 = vsub.s32 4, %v1457
  %v1482 = vsel %vm1397, %v1481, %v1457
  %v1483 = vsel %vm1396, %v343, %v1480
  %v1484 = vsel %vm1396, 0, %v1482
  %v1485 = vcosq.f32.pop %v1483
  %v1486 = vsinq.f32.pop %v1483
  %vm1487 = vweird.f32 %v343
  %v1488 = vand.u32 %v1484, 3
  %vm1489 = vcmp.lt.s32.totalorder %v1488, 2
  %vm1490 = vcmp.eq.s32.totalorder %v1488, 0
  %v1491 = vxor.u32 %v1486, 2147483648
  %v1492 = vsel %vm1490, %v1485, %v1491
  %vm1493 = vcmp.eq.s32.totalorder %v1488, 2
  %v1494 = vxor.u32 %v1485, 2147483648
  %v1495 = vsel %vm1493, %v1494, %v1486
  %v1496 = vsel %vm1489, %v1492, %v1495
  %v1497 = vsel %vm1487, nan, %v1496
  %v1498 = vand.u32 2147483647, %v344
  %vm1499 = vcmp.le.f32.partialorder %v1498, 0.7853982
  %vm1500 = vcmp.lt.s32.totalorder %v344, 0
  %v1501 = vand.u32 %v344, 2139095040
  %v1502 = vshrl.u32 %v1501, 23
  %v1503 = vsub.s32 %v1502, 127
  %v1504 = vand.u32 2147483647, %v344
  %v1505 = vand.u32 %v1504, 8388607
  %v1506 = vor.u32 %v1505, 8388608
  %v1507 = vsub.s32 0, %v1506
  %v1508 = vadd.s32 %v1503, 1
  %vm1509 = vcmp.gt.s32.totalorder %v1508, 0
  %v1510 = vsel %vm1509, %v1508, 0
  %v1511 = vshrl.u32 %v1510, 5
  %v1512 = vand.u32 %v1510, 31
  %v1513 = vsub.s32 32, %v1512
  %v1514 = vshrl.u32 683565275, %v1513
  %v1515 = vshll.u32 683565275, %v1512
  %v1516 = vshrl.u32 2475754826, %v1513
  %v1517 = vor.u32 %v1515, %v1516
  %v1518 = vshll.u32 2475754826, %v1512
  %v1519 = vshrl.u32 2131351028, %v1513
  %v1520 = vor.u32 %v1518, %v1519
  %v1521 = vshll.u32 2131351028, %v1512
  %v1522 = vshrl.u32 2102212464, %v1513
  %v1523 = vor.u32 %v1521, %v1522
  %v1524 = vshll.u32 2102212464, %v1512
  %v1525 = vshrl.u32 920167782, %v1513
  %v1526 = vor.u32 %v1524, %v1525
  %v1527 = vshll.u32 920167782, %v1512
  %v1528 = vshrl.u32 1326507024, %v1513
  %v1529 = vor.u32 %v1527, %v1528
  %vm1530 = vcmp.lt.s32.totalorder %v1511, 1
  %vm1531 = vcmp.lt.s32.totalorder %v1511, 2
  %vm1532 = vcmp.lt.s32.totalorder %v1511, 3
  %vm1533 = vcmp.lt.s32.totalorder %v1511, 4
  %v1534 = vsel %vm1530, %v1514, %v1517
  %v1535 = vsel %vm1533, %v1523, 2102212464
  %v1536 = vsel %vm1532, %v1520, %v1535
  %v1537 = vsel %vm1531, %v1534, %v1536
  %v1538 = vsel %vm1530, %v1517, %v1520
  %v1539 = vsel %vm1533, %v1526, 920167782
  %v1540 = vsel %vm1532, %v1523, %v1539
  %v1541 = vsel %vm1531, %v1538, %v1540
  %v1542 = vsel %vm1530, %v1520, %v1523
  %v1543 = vsel %vm1533, %v1529, 1326507024
  %v1544 = vsel %vm1532, %v1526, %v1543
  %v1545 = vsel %vm1531, %v1542, %v1544
  %v1546 = vshll.u32 %v1506, 8
  %v1547 = vmul.u32.u64.compose %v1546, %v1545
  %v1548 = vextract.low.u32 %v1547
  %v1549 = vextract.high.u32 %v1547
  %v1550 = vmul.u32.u64.compose %v1546, %v1541
  %v1551 = vextract.low.u32 %v1550
  %v1552 = vextract.high.u32 %v1550
  %v1553 = vmul.u32 %v1546, %v1537
  %v1554 = vadd.s32 %v1549, %v1551
  %vm1555 = vc.u32 %v1549, %v1551
  %v1556 = vadd.s32 %v1552, 1
  %v1557 = vsel %vm1555, %v1556, %v1552
  %v1558 = vadd.s32 %v1553, %v1557
  %v1559 = vadd.s32 %v1558, 536870912
  %v1560 = vshrl.u32 %v1559, 30
  %v1561 = vshll.u32 %v1560, 30
  %v1562 = vsub.s32 %v1558, %v1561
  %vm1563 = vcmp.lt.s32.totalorder %v1562, 0
  %v1564 = vsub.s32 0, %v1562
  %v1565 = vsel %vm1563, %v1564, %v1562
  %v1566 = vclz %v1565
  %v1567 = vsub.s32 %v1566, 2
  %vm1568 = vcmp.gt.s32.totalorder 0, %v1567
  %v1569 = vsel %vm1568, 0, %v1567
  %v1570 = vsub.s32 32, %v1569
  %v1571 = vshll.u32 %v1562, %v1569
  %v1572 = vshrl.u32 %v1554, %v1570
  %v1573 = vor.u32 %v1571, %v1572
  %v1574 = vsub.s32 4294967266, %v1569
  %v1575 = vadd.s32 %v1574, 127
  %v1576 = vshll.u32 %v1575, 23
  %v1577 = vor.u32 4788187, %v1576
  %v1578 = vand.u32 2147483647, %v1577
  %v1580 = vcvt.s32.f32 %v1573
  %v1581 = vmul.f32 %v1580, %v1578
  %v1582 = vxor.u32 %v1581, 2147483648
  %v1583 = vsel %vm1500, %v1582, %v1581
  %v1584 = vsub.s32 4, %v1560
  %v1585 = vsel %vm1500, %v1584, %v1560
  %v1586 = vsel %vm1499, %v344, %v1583
  %v1587 = vsel %vm1499, 0, %v1585
  %v1588 = vcosq.f32.pop %v1586
  %v1589 = vsinq.f32.pop %v1586
  %vm1590 = vweird.f32 %v344
  %v1591 = vand.u32 %v1587, 3
  %vm1592 = vcmp.lt.s32.totalorder %v1591, 2
  %vm1593 = vcmp.eq.s32.totalorder %v1591, 0
  %v1594 = vxor.u32 %v1589, 2147483648
  %v1595 = vsel %vm1593, %v1588, %v1594
  %vm1596 = vcmp.eq.s32.totalorder %v1591, 2
  %v1597 = vxor.u32 %v1588, 2147483648
  %v1598 = vsel %vm1596, %v1597, %v1589
  %v1599 = vsel %vm1592, %v1595, %v1598
  %v1600 = vsel %vm1590, nan, %v1599
  %v1601 = vand.u32 2147483647, %v345
  %vm1602 = vcmp.le.f32.partialorder %v1601, 0.7853982
  %vm1603 = vcmp.lt.s32.totalorder %v345, 0
  %v1604 = vand.u32 %v345, 2139095040
  %v1605 = vshrl.u32 %v1604, 23
  %v1606 = vsub.s32 %v1605, 127
  %v1607 = vand.u32 2147483647, %v345
  %v1608 = vand.u32 %v1607, 8388607
  %v1609 = vor.u32 %v1608, 8388608
  %v1610 = vsub.s32 0, %v1609
  %v1611 = vadd.s32 %v1606, 1
  %vm1612 = vcmp.gt.s32.totalorder %v1611, 0
  %v1613 = vsel %vm1612, %v1611, 0
  %v1614 = vshrl.u32 %v1613, 5
  %v1615 = vand.u32 %v1613, 31
  %v1616 = vsub.s32 32, %v1615
  %v1617 = vshrl.u32 683565275, %v1616
  %v1618 = vshll.u32 683565275, %v1615
  %v1619 = vshrl.u32 2475754826, %v1616
  %v1620 = vor.u32 %v1618, %v1619
  %v1621 = vshll.u32 2475754826, %v1615
  %v1622 = vshrl.u32 2131351028, %v1616
  %v1623 = vor.u32 %v1621, %v1622
  %v1624 = vshll.u32 2131351028, %v1615
  %v1625 = vshrl.u32 2102212464, %v1616
  %v1626 = vor.u32 %v1624, %v1625
  %v1627 = vshll.u32 2102212464, %v1615
  %v1628 = vshrl.u32 920167782, %v1616
  %v1629 = vor.u32 %v1627, %v1628
  %v1630 = vshll.u32 920167782, %v1615
  %v1631 = vshrl.u32 1326507024, %v1616
  %v1632 = vor.u32 %v1630, %v1631
  %vm1633 = vcmp.lt.s32.totalorder %v1614, 1
  %vm1634 = vcmp.lt.s32.totalorder %v1614, 2
  %vm1635 = vcmp.lt.s32.totalorder %v1614, 3
  %vm1636 = vcmp.lt.s32.totalorder %v1614, 4
  %v1637 = vsel %vm1633, %v1617, %v1620
  %v1638 = vsel %vm1636, %v1626, 2102212464
  %v1639 = vsel %vm1635, %v1623, %v1638
  %v1640 = vsel %vm1634, %v1637, %v1639
  %v1641 = vsel %vm1633, %v1620, %v1623
  %v1642 = vsel %vm1636, %v1629, 920167782
  %v1643 = vsel %vm1635, %v1626, %v1642
  %v1644 = vsel %vm1634, %v1641, %v1643
  %v1645 = vsel %vm1633, %v1623, %v1626
  %v1646 = vsel %vm1636, %v1632, 1326507024
  %v1647 = vsel %vm1635, %v1629, %v1646
  %v1648 = vsel %vm1634, %v1645, %v1647
  %v1649 = vshll.u32 %v1609, 8
  %v1650 = vmul.u32.u64.compose %v1649, %v1648
  %v1651 = vextract.low.u32 %v1650
  %v1652 = vextract.high.u32 %v1650
  %v1653 = vmul.u32.u64.compose %v1649, %v1644
  %v1654 = vextract.low.u32 %v1653
  %v1655 = vextract.high.u32 %v1653
  %v1656 = vmul.u32 %v1649, %v1640
  %v1657 = vadd.s32 %v1652, %v1654
  %vm1658 = vc.u32 %v1652, %v1654
  %v1659 = vadd.s32 %v1655, 1
  %v1660 = vsel %vm1658, %v1659, %v1655
  %v1661 = vadd.s32 %v1656, %v1660
  %v1662 = vadd.s32 %v1661, 536870912
  %v1663 = vshrl.u32 %v1662, 30
  %v1664 = vshll.u32 %v1663, 30
  %v1665 = vsub.s32 %v1661, %v1664
  %vm1666 = vcmp.lt.s32.totalorder %v1665, 0
  %v1667 = vsub.s32 0, %v1665
  %v1668 = vsel %vm1666, %v1667, %v1665
  %v1669 = vclz %v1668
  %v1670 = vsub.s32 %v1669, 2
  %vm1671 = vcmp.gt.s32.totalorder 0, %v1670
  %v1672 = vsel %vm1671, 0, %v1670
  %v1673 = vsub.s32 32, %v1672
  %v1674 = vshll.u32 %v1665, %v1672
  %v1675 = vshrl.u32 %v1657, %v1673
  %v1676 = vor.u32 %v1674, %v1675
  %v1677 = vsub.s32 4294967266, %v1672
  %v1678 = vadd.s32 %v1677, 127
  %v1679 = vshll.u32 %v1678, 23
  %v1680 = vor.u32 4788187, %v1679
  %v1681 = vand.u32 2147483647, %v1680
  %v1683 = vcvt.s32.f32 %v1676
  %v1684 = vmul.f32 %v1683, %v1681
  %v1685 = vxor.u32 %v1684, 2147483648
  %v1686 = vsel %vm1603, %v1685, %v1684
  %v1687 = vsub.s32 4, %v1663
  %v1688 = vsel %vm1603, %v1687, %v1663
  %v1689 = vsel %vm1602, %v345, %v1686
  %v1690 = vsel %vm1602, 0, %v1688
  %v1691 = vcosq.f32.pop %v1689
  %v1692 = vsinq.f32.pop %v1689
  %vm1693 = vweird.f32 %v345
  %v1694 = vand.u32 %v1690, 3
  %vm1695 = vcmp.lt.s32.totalorder %v1694, 2
  %vm1696 = vcmp.eq.s32.totalorder %v1694, 0
  %v1697 = vxor.u32 %v1692, 2147483648
  %v1698 = vsel %vm1696, %v1691, %v1697
  %vm1699 = vcmp.eq.s32.totalorder %v1694, 2
  %v1700 = vxor.u32 %v1691, 2147483648
  %v1701 = vsel %vm1699, %v1700, %v1692
  %v1702 = vsel %vm1695, %v1698, %v1701
  %v1703 = vsel %vm1693, nan, %v1702
  %v1704 = vand.u32 2147483647, %v346
  %vm1705 = vcmp.le.f32.partialorder %v1704, 0.7853982
  %vm1706 = vcmp.lt.s32.totalorder %v346, 0
  %v1707 = vand.u32 %v346, 2139095040
  %v1708 = vshrl.u32 %v1707, 23
  %v1709 = vsub.s32 %v1708, 127
  %v1710 = vand.u32 2147483647, %v346
  %v1711 = vand.u32 %v1710, 8388607
  %v1712 = vor.u32 %v1711, 8388608
  %v1713 = vsub.s32 0, %v1712
  %v1714 = vadd.s32 %v1709, 1
  %vm1715 = vcmp.gt.s32.totalorder %v1714, 0
  %v1716 = vsel %vm1715, %v1714, 0
  %v1717 = vshrl.u32 %v1716, 5
  %v1718 = vand.u32 %v1716, 31
  %v1719 = vsub.s32 32, %v1718
  %v1720 = vshrl.u32 683565275, %v1719
  %v1721 = vshll.u32 683565275, %v1718
  %v1722 = vshrl.u32 2475754826, %v1719
  %v1723 = vor.u32 %v1721, %v1722
  %v1724 = vshll.u32 2475754826, %v1718
  %v1725 = vshrl.u32 2131351028, %v1719
  %v1726 = vor.u32 %v1724, %v1725
  %v1727 = vshll.u32 2131351028, %v1718
  %v1728 = vshrl.u32 2102212464, %v1719
  %v1729 = vor.u32 %v1727, %v1728
  %v1730 = vshll.u32 2102212464, %v1718
  %v1731 = vshrl.u32 920167782, %v1719
  %v1732 = vor.u32 %v1730, %v1731
  %v1733 = vshll.u32 920167782, %v1718
  %v1734 = vshrl.u32 1326507024, %v1719
  %v1735 = vor.u32 %v1733, %v1734
  %vm1736 = vcmp.lt.s32.totalorder %v1717, 1
  %vm1737 = vcmp.lt.s32.totalorder %v1717, 2
  %vm1738 = vcmp.lt.s32.totalorder %v1717, 3
  %vm1739 = vcmp.lt.s32.totalorder %v1717, 4
  %v1740 = vsel %vm1736, %v1720, %v1723
  %v1741 = vsel %vm1739, %v1729, 2102212464
  %v1742 = vsel %vm1738, %v1726, %v1741
  %v1743 = vsel %vm1737, %v1740, %v1742
  %v1744 = vsel %vm1736, %v1723, %v1726
  %v1745 = vsel %vm1739, %v1732, 920167782
  %v1746 = vsel %vm1738, %v1729, %v1745
  %v1747 = vsel %vm1737, %v1744, %v1746
  %v1748 = vsel %vm1736, %v1726, %v1729
  %v1749 = vsel %vm1739, %v1735, 1326507024
  %v1750 = vsel %vm1738, %v1732, %v1749
  %v1751 = vsel %vm1737, %v1748, %v1750
  %v1752 = vshll.u32 %v1712, 8
  %v1753 = vmul.u32.u64.compose %v1752, %v1751
  %v1754 = vextract.low.u32 %v1753
  %v1755 = vextract.high.u32 %v1753
  %v1756 = vmul.u32.u64.compose %v1752, %v1747
  %v1757 = vextract.low.u32 %v1756
  %v1758 = vextract.high.u32 %v1756
  %v1759 = vmul.u32 %v1752, %v1743
  %v1760 = vadd.s32 %v1755, %v1757
  %vm1761 = vc.u32 %v1755, %v1757
  %v1762 = vadd.s32 %v1758, 1
  %v1763 = vsel %vm1761, %v1762, %v1758
  %v1764 = vadd.s32 %v1759, %v1763
  %v1765 = vadd.s32 %v1764, 536870912
  %v1766 = vshrl.u32 %v1765, 30
  %v1767 = vshll.u32 %v1766, 30
  %v1768 = vsub.s32 %v1764, %v1767
  %vm1769 = vcmp.lt.s32.totalorder %v1768, 0
  %v1770 = vsub.s32 0, %v1768
  %v1771 = vsel %vm1769, %v1770, %v1768
  %v1772 = vclz %v1771
  %v1773 = vsub.s32 %v1772, 2
  %vm1774 = vcmp.gt.s32.totalorder 0, %v1773
  %v1775 = vsel %vm1774, 0, %v1773
  %v1776 = vsub.s32 32, %v1775
  %v1777 = vshll.u32 %v1768, %v1775
  %v1778 = vshrl.u32 %v1760, %v1776
  %v1779 = vor.u32 %v1777, %v1778
  %v1780 = vsub.s32 4294967266, %v1775
  %v1781 = vadd.s32 %v1780, 127
  %v1782 = vshll.u32 %v1781, 23
  %v1783 = vor.u32 4788187, %v1782
  %v1784 = vand.u32 2147483647, %v1783
  %v1786 = vcvt.s32.f32 %v1779
  %v1787 = vmul.f32 %v1786, %v1784
  %v1788 = vxor.u32 %v1787, 2147483648
  %v1789 = vsel %vm1706, %v1788, %v1787
  %v1790 = vsub.s32 4, %v1766
  %v1791 = vsel %vm1706, %v1790, %v1766
  %v1792 = vsel %vm1705, %v346, %v1789
  %v1793 = vsel %vm1705, 0, %v1791
  %v1794 = vcosq.f32.pop %v1792
  %v1795 = vsinq.f32.pop %v1792
  %vm1796 = vweird.f32 %v346
  %v1797 = vand.u32 %v1793, 3
  %vm1798 = vcmp.lt.s32.totalorder %v1797, 2
  %vm1799 = vcmp.eq.s32.totalorder %v1797, 0
  %v1800 = vxor.u32 %v1795, 2147483648
  %v1801 = vsel %vm1799, %v1794, %v1800
  %vm1802 = vcmp.eq.s32.totalorder %v1797, 2
  %v1803 = vxor.u32 %v1794, 2147483648
  %v1804 = vsel %vm1802, %v1803, %v1795
  %v1805 = vsel %vm1798, %v1801, %v1804
  %v1806 = vsel %vm1796, nan, %v1805
  %v1807 = vand.u32 2147483647, %v347
  %vm1808 = vcmp.le.f32.partialorder %v1807, 0.7853982
  %vm1809 = vcmp.lt.s32.totalorder %v347, 0
  %v1810 = vand.u32 %v347, 2139095040
  %v1811 = vshrl.u32 %v1810, 23
  %v1812 = vsub.s32 %v1811, 127
  %v1813 = vand.u32 2147483647, %v347
  %v1814 = vand.u32 %v1813, 8388607
  %v1815 = vor.u32 %v1814, 8388608
  %v1816 = vsub.s32 0, %v1815
  %v1817 = vadd.s32 %v1812, 1
  %vm1818 = vcmp.gt.s32.totalorder %v1817, 0
  %v1819 = vsel %vm1818, %v1817, 0
  %v1820 = vshrl.u32 %v1819, 5
  %v1821 = vand.u32 %v1819, 31
  %v1822 = vsub.s32 32, %v1821
  %v1823 = vshrl.u32 683565275, %v1822
  %v1824 = vshll.u32 683565275, %v1821
  %v1825 = vshrl.u32 2475754826, %v1822
  %v1826 = vor.u32 %v1824, %v1825
  %v1827 = vshll.u32 2475754826, %v1821
  %v1828 = vshrl.u32 2131351028, %v1822
  %v1829 = vor.u32 %v1827, %v1828
  %v1830 = vshll.u32 2131351028, %v1821
  %v1831 = vshrl.u32 2102212464, %v1822
  %v1832 = vor.u32 %v1830, %v1831
  %v1833 = vshll.u32 2102212464, %v1821
  %v1834 = vshrl.u32 920167782, %v1822
  %v1835 = vor.u32 %v1833, %v1834
  %v1836 = vshll.u32 920167782, %v1821
  %v1837 = vshrl.u32 1326507024, %v1822
  %v1838 = vor.u32 %v1836, %v1837
  %vm1839 = vcmp.lt.s32.totalorder %v1820, 1
  %vm1840 = vcmp.lt.s32.totalorder %v1820, 2
  %vm1841 = vcmp.lt.s32.totalorder %v1820, 3
  %vm1842 = vcmp.lt.s32.totalorder %v1820, 4
  %v1843 = vsel %vm1839, %v1823, %v1826
  %v1844 = vsel %vm1842, %v1832, 2102212464
  %v1845 = vsel %vm1841, %v1829, %v1844
  %v1846 = vsel %vm1840, %v1843, %v1845
  %v1847 = vsel %vm1839, %v1826, %v1829
  %v1848 = vsel %vm1842, %v1835, 920167782
  %v1849 = vsel %vm1841, %v1832, %v1848
  %v1850 = vsel %vm1840, %v1847, %v1849
  %v1851 = vsel %vm1839, %v1829, %v1832
  %v1852 = vsel %vm1842, %v1838, 1326507024
  %v1853 = vsel %vm1841, %v1835, %v1852
  %v1854 = vsel %vm1840, %v1851, %v1853
  %v1855 = vshll.u32 %v1815, 8
  %v1856 = vmul.u32.u64.compose %v1855, %v1854
  %v1857 = vextract.low.u32 %v1856
  %v1858 = vextract.high.u32 %v1856
  %v1859 = vmul.u32.u64.compose %v1855, %v1850
  %v1860 = vextract.low.u32 %v1859
  %v1861 = vextract.high.u32 %v1859
  %v1862 = vmul.u32 %v1855, %v1846
  %v1863 = vadd.s32 %v1858, %v1860
  %vm1864 = vc.u32 %v1858, %v1860
  %v1865 = vadd.s32 %v1861, 1
  %v1866 = vsel %vm1864, %v1865, %v1861
  %v1867 = vadd.s32 %v1862, %v1866
  %v1868 = vadd.s32 %v1867, 536870912
  %v1869 = vshrl.u32 %v1868, 30
  %v1870 = vshll.u32 %v1869, 30
  %v1871 = vsub.s32 %v1867, %v1870
  %vm1872 = vcmp.lt.s32.totalorder %v1871, 0
  %v1873 = vsub.s32 0, %v1871
  %v1874 = vsel %vm1872, %v1873, %v1871
  %v1875 = vclz %v1874
  %v1876 = vsub.s32 %v1875, 2
  %vm1877 = vcmp.gt.s32.totalorder 0, %v1876
  %v1878 = vsel %vm1877, 0, %v1876
  %v1879 = vsub.s32 32, %v1878
  %v1880 = vshll.u32 %v1871, %v1878
  %v1881 = vshrl.u32 %v1863, %v1879
  %v1882 = vor.u32 %v1880, %v1881
  %v1883 = vsub.s32 4294967266, %v1878
  %v1884 = vadd.s32 %v1883, 127
  %v1885 = vshll.u32 %v1884, 23
  %v1886 = vor.u32 4788187, %v1885
  %v1887 = vand.u32 2147483647, %v1886
  %v1889 = vcvt.s32.f32 %v1882
  %v1890 = vmul.f32 %v1889, %v1887
  %v1891 = vxor.u32 %v1890, 2147483648
  %v1892 = vsel %vm1809, %v1891, %v1890
  %v1893 = vsub.s32 4, %v1869
  %v1894 = vsel %vm1809, %v1893, %v1869
  %v1895 = vsel %vm1808, %v347, %v1892
  %v1896 = vsel %vm1808, 0, %v1894
  %v1897 = vcosq.f32.pop %v1895
  %v1898 = vsinq.f32.pop %v1895
  %vm1899 = vweird.f32 %v347
  %v1900 = vand.u32 %v1896, 3
  %vm1901 = vcmp.lt.s32.totalorder %v1900, 2
  %vm1902 = vcmp.eq.s32.totalorder %v1900, 0
  %v1903 = vxor.u32 %v1898, 2147483648
  %v1904 = vsel %vm1902, %v1897, %v1903
  %vm1905 = vcmp.eq.s32.totalorder %v1900, 2
  %v1906 = vxor.u32 %v1897, 2147483648
  %v1907 = vsel %vm1905, %v1906, %v1898
  %v1908 = vsel %vm1901, %v1904, %v1907
  %v1909 = vsel %vm1899, nan, %v1908
  %v1910 = vand.u32 2147483647, %v348
  %vm1911 = vcmp.le.f32.partialorder %v1910, 0.7853982
  %vm1912 = vcmp.lt.s32.totalorder %v348, 0
  %v1913 = vand.u32 %v348, 2139095040
  %v1914 = vshrl.u32 %v1913, 23
  %v1915 = vsub.s32 %v1914, 127
  %v1916 = vand.u32 2147483647, %v348
  %v1917 = vand.u32 %v1916, 8388607
  %v1918 = vor.u32 %v1917, 8388608
  %v1919 = vsub.s32 0, %v1918
  %v1920 = vadd.s32 %v1915, 1
  %vm1921 = vcmp.gt.s32.totalorder %v1920, 0
  %v1922 = vsel %vm1921, %v1920, 0
  %v1923 = vshrl.u32 %v1922, 5
  %v1924 = vand.u32 %v1922, 31
  %v1925 = vsub.s32 32, %v1924
  %v1926 = vshrl.u32 683565275, %v1925
  %v1927 = vshll.u32 683565275, %v1924
  %v1928 = vshrl.u32 2475754826, %v1925
  %v1929 = vor.u32 %v1927, %v1928
  %v1930 = vshll.u32 2475754826, %v1924
  %v1931 = vshrl.u32 2131351028, %v1925
  %v1932 = vor.u32 %v1930, %v1931
  %v1933 = vshll.u32 2131351028, %v1924
  %v1934 = vshrl.u32 2102212464, %v1925
  %v1935 = vor.u32 %v1933, %v1934
  %v1936 = vshll.u32 2102212464, %v1924
  %v1937 = vshrl.u32 920167782, %v1925
  %v1938 = vor.u32 %v1936, %v1937
  %v1939 = vshll.u32 920167782, %v1924
  %v1940 = vshrl.u32 1326507024, %v1925
  %v1941 = vor.u32 %v1939, %v1940
  %vm1942 = vcmp.lt.s32.totalorder %v1923, 1
  %vm1943 = vcmp.lt.s32.totalorder %v1923, 2
  %vm1944 = vcmp.lt.s32.totalorder %v1923, 3
  %vm1945 = vcmp.lt.s32.totalorder %v1923, 4
  %v1946 = vsel %vm1942, %v1926, %v1929
  %v1947 = vsel %vm1945, %v1935, 2102212464
  %v1948 = vsel %vm1944, %v1932, %v1947
  %v1949 = vsel %vm1943, %v1946, %v1948
  %v1950 = vsel %vm1942, %v1929, %v1932
  %v1951 = vsel %vm1945, %v1938, 920167782
  %v1952 = vsel %vm1944, %v1935, %v1951
  %v1953 = vsel %vm1943, %v1950, %v1952
  %v1954 = vsel %vm1942, %v1932, %v1935
  %v1955 = vsel %vm1945, %v1941, 1326507024
  %v1956 = vsel %vm1944, %v1938, %v1955
  %v1957 = vsel %vm1943, %v1954, %v1956
  %v1958 = vshll.u32 %v1918, 8
  %v1959 = vmul.u32.u64.compose %v1958, %v1957
  %v1960 = vextract.low.u32 %v1959
  %v1961 = vextract.high.u32 %v1959
  %v1962 = vmul.u32.u64.compose %v1958, %v1953
  %v1963 = vextract.low.u32 %v1962
  %v1964 = vextract.high.u32 %v1962
  %v1965 = vmul.u32 %v1958, %v1949
  %v1966 = vadd.s32 %v1961, %v1963
  %vm1967 = vc.u32 %v1961, %v1963
  %v1968 = vadd.s32 %v1964, 1
  %v1969 = vsel %vm1967, %v1968, %v1964
  %v1970 = vadd.s32 %v1965, %v1969
  %v1971 = vadd.s32 %v1970, 536870912
  %v1972 = vshrl.u32 %v1971, 30
  %v1973 = vshll.u32 %v1972, 30
  %v1974 = vsub.s32 %v1970, %v1973
  %vm1975 = vcmp.lt.s32.totalorder %v1974, 0
  %v1976 = vsub.s32 0, %v1974
  %v1977 = vsel %vm1975, %v1976, %v1974
  %v1978 = vclz %v1977
  %v1979 = vsub.s32 %v1978, 2
  %vm1980 = vcmp.gt.s32.totalorder 0, %v1979
  %v1981 = vsel %vm1980, 0, %v1979
  %v1982 = vsub.s32 32, %v1981
  %v1983 = vshll.u32 %v1974, %v1981
  %v1984 = vshrl.u32 %v1966, %v1982
  %v1985 = vor.u32 %v1983, %v1984
  %v1986 = vsub.s32 4294967266, %v1981
  %v1987 = vadd.s32 %v1986, 127
  %v1988 = vshll.u32 %v1987, 23
  %v1989 = vor.u32 4788187, %v1988
  %v1990 = vand.u32 2147483647, %v1989
  %v1992 = vcvt.s32.f32 %v1985
  %v1993 = vmul.f32 %v1992, %v1990
  %v1994 = vxor.u32 %v1993, 2147483648
  %v1995 = vsel %vm1912, %v1994, %v1993
  %v1996 = vsub.s32 4, %v1972
  %v1997 = vsel %vm1912, %v1996, %v1972
  %v1998 = vsel %vm1911, %v348, %v1995
  %v1999 = vsel %vm1911, 0, %v1997
  %v2000 = vcosq.f32.pop %v1998
  %v2001 = vsinq.f32.pop %v1998
  %vm2002 = vweird.f32 %v348
  %v2003 = vand.u32 %v1999, 3
  %vm2004 = vcmp.lt.s32.totalorder %v2003, 2
  %vm2005 = vcmp.eq.s32.totalorder %v2003, 0
  %v2006 = vxor.u32 %v2001, 2147483648
  %v2007 = vsel %vm2005, %v2000, %v2006
  %vm2008 = vcmp.eq.s32.totalorder %v2003, 2
  %v2009 = vxor.u32 %v2000, 2147483648
  %v2010 = vsel %vm2008, %v2009, %v2001
  %v2011 = vsel %vm2004, %v2007, %v2010
  %v2012 = vsel %vm2002, nan, %v2011
  %v2013 = vand.u32 2147483647, %v349
  %vm2014 = vcmp.le.f32.partialorder %v2013, 0.7853982
  %vm2015 = vcmp.lt.s32.totalorder %v349, 0
  %v2016 = vand.u32 %v349, 2139095040
  %v2017 = vshrl.u32 %v2016, 23
  %v2018 = vsub.s32 %v2017, 127
  %v2019 = vand.u32 2147483647, %v349
  %v2020 = vand.u32 %v2019, 8388607
  %v2021 = vor.u32 %v2020, 8388608
  %v2022 = vsub.s32 0, %v2021
  %v2023 = vadd.s32 %v2018, 1
  %vm2024 = vcmp.gt.s32.totalorder %v2023, 0
  %v2025 = vsel %vm2024, %v2023, 0
  %v2026 = vshrl.u32 %v2025, 5
  %v2027 = vand.u32 %v2025, 31
  %v2028 = vsub.s32 32, %v2027
  %v2029 = vshrl.u32 683565275, %v2028
  %v2030 = vshll.u32 683565275, %v2027
  %v2031 = vshrl.u32 2475754826, %v2028
  %v2032 = vor.u32 %v2030, %v2031
  %v2033 = vshll.u32 2475754826, %v2027
  %v2034 = vshrl.u32 2131351028, %v2028
  %v2035 = vor.u32 %v2033, %v2034
  %v2036 = vshll.u32 2131351028, %v2027
  %v2037 = vshrl.u32 2102212464, %v2028
  %v2038 = vor.u32 %v2036, %v2037
  %v2039 = vshll.u32 2102212464, %v2027
  %v2040 = vshrl.u32 920167782, %v2028
  %v2041 = vor.u32 %v2039, %v2040
  %v2042 = vshll.u32 920167782, %v2027
  %v2043 = vshrl.u32 1326507024, %v2028
  %v2044 = vor.u32 %v2042, %v2043
  %vm2045 = vcmp.lt.s32.totalorder %v2026, 1
  %vm2046 = vcmp.lt.s32.totalorder %v2026, 2
  %vm2047 = vcmp.lt.s32.totalorder %v2026, 3
  %vm2048 = vcmp.lt.s32.totalorder %v2026, 4
  %v2049 = vsel %vm2045, %v2029, %v2032
  %v2050 = vsel %vm2048, %v2038, 2102212464
  %v2051 = vsel %vm2047, %v2035, %v2050
  %v2052 = vsel %vm2046, %v2049, %v2051
  %v2053 = vsel %vm2045, %v2032, %v2035
  %v2054 = vsel %vm2048, %v2041, 920167782
  %v2055 = vsel %vm2047, %v2038, %v2054
  %v2056 = vsel %vm2046, %v2053, %v2055
  %v2057 = vsel %vm2045, %v2035, %v2038
  %v2058 = vsel %vm2048, %v2044, 1326507024
  %v2059 = vsel %vm2047, %v2041, %v2058
  %v2060 = vsel %vm2046, %v2057, %v2059
  %v2061 = vshll.u32 %v2021, 8
  %v2062 = vmul.u32.u64.compose %v2061, %v2060
  %v2063 = vextract.low.u32 %v2062
  %v2064 = vextract.high.u32 %v2062
  %v2065 = vmul.u32.u64.compose %v2061, %v2056
  %v2066 = vextract.low.u32 %v2065
  %v2067 = vextract.high.u32 %v2065
  %v2068 = vmul.u32 %v2061, %v2052
  %v2069 = vadd.s32 %v2064, %v2066
  %vm2070 = vc.u32 %v2064, %v2066
  %v2071 = vadd.s32 %v2067, 1
  %v2072 = vsel %vm2070, %v2071, %v2067
  %v2073 = vadd.s32 %v2068, %v2072
  %v2074 = vadd.s32 %v2073, 536870912
  %v2075 = vshrl.u32 %v2074, 30
  %v2076 = vshll.u32 %v2075, 30
  %v2077 = vsub.s32 %v2073, %v2076
  %vm2078 = vcmp.lt.s32.totalorder %v2077, 0
  %v2079 = vsub.s32 0, %v2077
  %v2080 = vsel %vm2078, %v2079, %v2077
  %v2081 = vclz %v2080
  %v2082 = vsub.s32 %v2081, 2
  %vm2083 = vcmp.gt.s32.totalorder 0, %v2082
  %v2084 = vsel %vm2083, 0, %v2082
  %v2085 = vsub.s32 32, %v2084
  %v2086 = vshll.u32 %v2077, %v2084
  %v2087 = vshrl.u32 %v2069, %v2085
  %v2088 = vor.u32 %v2086, %v2087
  %v2089 = vsub.s32 4294967266, %v2084
  %v2090 = vadd.s32 %v2089, 127
  %v2091 = vshll.u32 %v2090, 23
  %v2092 = vor.u32 4788187, %v2091
  %v2093 = vand.u32 2147483647, %v2092
  %v2095 = vcvt.s32.f32 %v2088
  %v2096 = vmul.f32 %v2095, %v2093
  %v2097 = vxor.u32 %v2096, 2147483648
  %v2098 = vsel %vm2015, %v2097, %v2096
  %v2099 = vsub.s32 4, %v2075
  %v2100 = vsel %vm2015, %v2099, %v2075
  %v2101 = vsel %vm2014, %v349, %v2098
  %v2102 = vsel %vm2014, 0, %v2100
  %v2103 = vcosq.f32.pop %v2101
  %v2104 = vsinq.f32.pop %v2101
  %vm2105 = vweird.f32 %v349
  %v2106 = vand.u32 %v2102, 3
  %vm2107 = vcmp.lt.s32.totalorder %v2106, 2
  %vm2108 = vcmp.eq.s32.totalorder %v2106, 0
  %v2109 = vxor.u32 %v2104, 2147483648
  %v2110 = vsel %vm2108, %v2103, %v2109
  %vm2111 = vcmp.eq.s32.totalorder %v2106, 2
  %v2112 = vxor.u32 %v2103, 2147483648
  %v2113 = vsel %vm2111, %v2112, %v2104
  %v2114 = vsel %vm2107, %v2110, %v2113
  %v2115 = vsel %vm2105, nan, %v2114
  %v2116 = vand.u32 2147483647, %v350
  %vm2117 = vcmp.le.f32.partialorder %v2116, 0.7853982
  %vm2118 = vcmp.lt.s32.totalorder %v350, 0
  %v2119 = vand.u32 %v350, 2139095040
  %v2120 = vshrl.u32 %v2119, 23
  %v2121 = vsub.s32 %v2120, 127
  %v2122 = vand.u32 2147483647, %v350
  %v2123 = vand.u32 %v2122, 8388607
  %v2124 = vor.u32 %v2123, 8388608
  %v2125 = vsub.s32 0, %v2124
  %v2126 = vadd.s32 %v2121, 1
  %vm2127 = vcmp.gt.s32.totalorder %v2126, 0
  %v2128 = vsel %vm2127, %v2126, 0
  %v2129 = vshrl.u32 %v2128, 5
  %v2130 = vand.u32 %v2128, 31
  %v2131 = vsub.s32 32, %v2130
  %v2132 = vshrl.u32 683565275, %v2131
  %v2133 = vshll.u32 683565275, %v2130
  %v2134 = vshrl.u32 2475754826, %v2131
  %v2135 = vor.u32 %v2133, %v2134
  %v2136 = vshll.u32 2475754826, %v2130
  %v2137 = vshrl.u32 2131351028, %v2131
  %v2138 = vor.u32 %v2136, %v2137
  %v2139 = vshll.u32 2131351028, %v2130
  %v2140 = vshrl.u32 2102212464, %v2131
  %v2141 = vor.u32 %v2139, %v2140
  %v2142 = vshll.u32 2102212464, %v2130
  %v2143 = vshrl.u32 920167782, %v2131
  %v2144 = vor.u32 %v2142, %v2143
  %v2145 = vshll.u32 920167782, %v2130
  %v2146 = vshrl.u32 1326507024, %v2131
  %v2147 = vor.u32 %v2145, %v2146
  %vm2148 = vcmp.lt.s32.totalorder %v2129, 1
  %vm2149 = vcmp.lt.s32.totalorder %v2129, 2
  %vm2150 = vcmp.lt.s32.totalorder %v2129, 3
  %vm2151 = vcmp.lt.s32.totalorder %v2129, 4
  %v2152 = vsel %vm2148, %v2132, %v2135
  %v2153 = vsel %vm2151, %v2141, 2102212464
  %v2154 = vsel %vm2150, %v2138, %v2153
  %v2155 = vsel %vm2149, %v2152, %v2154
  %v2156 = vsel %vm2148, %v2135, %v2138
  %v2157 = vsel %vm2151, %v2144, 920167782
  %v2158 = vsel %vm2150, %v2141, %v2157
  %v2159 = vsel %vm2149, %v2156, %v2158
  %v2160 = vsel %vm2148, %v2138, %v2141
  %v2161 = vsel %vm2151, %v2147, 1326507024
  %v2162 = vsel %vm2150, %v2144, %v2161
  %v2163 = vsel %vm2149, %v2160, %v2162
  %v2164 = vshll.u32 %v2124, 8
  %v2165 = vmul.u32.u64.compose %v2164, %v2163
  %v2166 = vextract.low.u32 %v2165
  %v2167 = vextract.high.u32 %v2165
  %v2168 = vmul.u32.u64.compose %v2164, %v2159
  %v2169 = vextract.low.u32 %v2168
  %v2170 = vextract.high.u32 %v2168
  %v2171 = vmul.u32 %v2164, %v2155
  %v2172 = vadd.s32 %v2167, %v2169
  %vm2173 = vc.u32 %v2167, %v2169
  %v2174 = vadd.s32 %v2170, 1
  %v2175 = vsel %vm2173, %v2174, %v2170
  %v2176 = vadd.s32 %v2171, %v2175
  %v2177 = vadd.s32 %v2176, 536870912
  %v2178 = vshrl.u32 %v2177, 30
  %v2179 = vshll.u32 %v2178, 30
  %v2180 = vsub.s32 %v2176, %v2179
  %vm2181 = vcmp.lt.s32.totalorder %v2180, 0
  %v2182 = vsub.s32 0, %v2180
  %v2183 = vsel %vm2181, %v2182, %v2180
  %v2184 = vclz %v2183
  %v2185 = vsub.s32 %v2184, 2
  %vm2186 = vcmp.gt.s32.totalorder 0, %v2185
  %v2187 = vsel %vm2186, 0, %v2185
  %v2188 = vsub.s32 32, %v2187
  %v2189 = vshll.u32 %v2180, %v2187
  %v2190 = vshrl.u32 %v2172, %v2188
  %v2191 = vor.u32 %v2189, %v2190
  %v2192 = vsub.s32 4294967266, %v2187
  %v2193 = vadd.s32 %v2192, 127
  %v2194 = vshll.u32 %v2193, 23
  %v2195 = vor.u32 4788187, %v2194
  %v2196 = vand.u32 2147483647, %v2195
  %v2198 = vcvt.s32.f32 %v2191
  %v2199 = vmul.f32 %v2198, %v2196
  %v2200 = vxor.u32 %v2199, 2147483648
  %v2201 = vsel %vm2118, %v2200, %v2199
  %v2202 = vsub.s32 4, %v2178
  %v2203 = vsel %vm2118, %v2202, %v2178
  %v2204 = vsel %vm2117, %v350, %v2201
  %v2205 = vsel %vm2117, 0, %v2203
  %v2206 = vcosq.f32.pop %v2204
  %v2207 = vsinq.f32.pop %v2204
  %vm2208 = vweird.f32 %v350
  %v2209 = vand.u32 %v2205, 3
  %vm2210 = vcmp.lt.s32.totalorder %v2209, 2
  %vm2211 = vcmp.eq.s32.totalorder %v2209, 0
  %v2212 = vxor.u32 %v2207, 2147483648
  %v2213 = vsel %vm2211, %v2206, %v2212
  %vm2214 = vcmp.eq.s32.totalorder %v2209, 2
  %v2215 = vxor.u32 %v2206, 2147483648
  %v2216 = vsel %vm2214, %v2215, %v2207
  %v2217 = vsel %vm2210, %v2213, %v2216
  %v2218 = vsel %vm2208, nan, %v2217
  %v2219 = vand.u32 2147483647, %v351
  %vm2220 = vcmp.le.f32.partialorder %v2219, 0.7853982
  %vm2221 = vcmp.lt.s32.totalorder %v351, 0
  %v2222 = vand.u32 %v351, 2139095040
  %v2223 = vshrl.u32 %v2222, 23
  %v2224 = vsub.s32 %v2223, 127
  %v2225 = vand.u32 2147483647, %v351
  %v2226 = vand.u32 %v2225, 8388607
  %v2227 = vor.u32 %v2226, 8388608
  %v2228 = vsub.s32 0, %v2227
  %v2229 = vadd.s32 %v2224, 1
  %vm2230 = vcmp.gt.s32.totalorder %v2229, 0
  %v2231 = vsel %vm2230, %v2229, 0
  %v2232 = vshrl.u32 %v2231, 5
  %v2233 = vand.u32 %v2231, 31
  %v2234 = vsub.s32 32, %v2233
  %v2235 = vshrl.u32 683565275, %v2234
  %v2236 = vshll.u32 683565275, %v2233
  %v2237 = vshrl.u32 2475754826, %v2234
  %v2238 = vor.u32 %v2236, %v2237
  %v2239 = vshll.u32 2475754826, %v2233
  %v2240 = vshrl.u32 2131351028, %v2234
  %v2241 = vor.u32 %v2239, %v2240
  %v2242 = vshll.u32 2131351028, %v2233
  %v2243 = vshrl.u32 2102212464, %v2234
  %v2244 = vor.u32 %v2242, %v2243
  %v2245 = vshll.u32 2102212464, %v2233
  %v2246 = vshrl.u32 920167782, %v2234
  %v2247 = vor.u32 %v2245, %v2246
  %v2248 = vshll.u32 920167782, %v2233
  %v2249 = vshrl.u32 1326507024, %v2234
  %v2250 = vor.u32 %v2248, %v2249
  %vm2251 = vcmp.lt.s32.totalorder %v2232, 1
  %vm2252 = vcmp.lt.s32.totalorder %v2232, 2
  %vm2253 = vcmp.lt.s32.totalorder %v2232, 3
  %vm2254 = vcmp.lt.s32.totalorder %v2232, 4
  %v2255 = vsel %vm2251, %v2235, %v2238
  %v2256 = vsel %vm2254, %v2244, 2102212464
  %v2257 = vsel %vm2253, %v2241, %v2256
  %v2258 = vsel %vm2252, %v2255, %v2257
  %v2259 = vsel %vm2251, %v2238, %v2241
  %v2260 = vsel %vm2254, %v2247, 920167782
  %v2261 = vsel %vm2253, %v2244, %v2260
  %v2262 = vsel %vm2252, %v2259, %v2261
  %v2263 = vsel %vm2251, %v2241, %v2244
  %v2264 = vsel %vm2254, %v2250, 1326507024
  %v2265 = vsel %vm2253, %v2247, %v2264
  %v2266 = vsel %vm2252, %v2263, %v2265
  %v2267 = vshll.u32 %v2227, 8
  %v2268 = vmul.u32.u64.compose %v2267, %v2266
  %v2269 = vextract.low.u32 %v2268
  %v2270 = vextract.high.u32 %v2268
  %v2271 = vmul.u32.u64.compose %v2267, %v2262
  %v2272 = vextract.low.u32 %v2271
  %v2273 = vextract.high.u32 %v2271
  %v2274 = vmul.u32 %v2267, %v2258
  %v2275 = vadd.s32 %v2270, %v2272
  %vm2276 = vc.u32 %v2270, %v2272
  %v2277 = vadd.s32 %v2273, 1
  %v2278 = vsel %vm2276, %v2277, %v2273
  %v2279 = vadd.s32 %v2274, %v2278
  %v2280 = vadd.s32 %v2279, 536870912
  %v2281 = vshrl.u32 %v2280, 30
  %v2282 = vshll.u32 %v2281, 30
  %v2283 = vsub.s32 %v2279, %v2282
  %vm2284 = vcmp.lt.s32.totalorder %v2283, 0
  %v2285 = vsub.s32 0, %v2283
  %v2286 = vsel %vm2284, %v2285, %v2283
  %v2287 = vclz %v2286
  %v2288 = vsub.s32 %v2287, 2
  %vm2289 = vcmp.gt.s32.totalorder 0, %v2288
  %v2290 = vsel %vm2289, 0, %v2288
  %v2291 = vsub.s32 32, %v2290
  %v2292 = vshll.u32 %v2283, %v2290
  %v2293 = vshrl.u32 %v2275, %v2291
  %v2294 = vor.u32 %v2292, %v2293
  %v2295 = vsub.s32 4294967266, %v2290
  %v2296 = vadd.s32 %v2295, 127
  %v2297 = vshll.u32 %v2296, 23
  %v2298 = vor.u32 4788187, %v2297
  %v2299 = vand.u32 2147483647, %v2298
  %v2301 = vcvt.s32.f32 %v2294
  %v2302 = vmul.f32 %v2301, %v2299
  %v2303 = vxor.u32 %v2302, 2147483648
  %v2304 = vsel %vm2221, %v2303, %v2302
  %v2305 = vsub.s32 4, %v2281
  %v2306 = vsel %vm2221, %v2305, %v2281
  %v2307 = vsel %vm2220, %v351, %v2304
  %v2308 = vsel %vm2220, 0, %v2306
  %v2309 = vcosq.f32.pop %v2307
  %v2310 = vsinq.f32.pop %v2307
  %vm2311 = vweird.f32 %v351
  %v2312 = vand.u32 %v2308, 3
  %vm2313 = vcmp.lt.s32.totalorder %v2312, 2
  %vm2314 = vcmp.eq.s32.totalorder %v2312, 0
  %v2315 = vxor.u32 %v2310, 2147483648
  %v2316 = vsel %vm2314, %v2309, %v2315
  %vm2317 = vcmp.eq.s32.totalorder %v2312, 2
  %v2318 = vxor.u32 %v2309, 2147483648
  %v2319 = vsel %vm2317, %v2318, %v2310
  %v2320 = vsel %vm2313, %v2316, %v2319
  %v2321 = vsel %vm2311, nan, %v2320
  %v2322 = vand.u32 2147483647, %v352
  %vm2323 = vcmp.le.f32.partialorder %v2322, 0.7853982
  %vm2324 = vcmp.lt.s32.totalorder %v352, 0
  %v2325 = vand.u32 %v352, 2139095040
  %v2326 = vshrl.u32 %v2325, 23
  %v2327 = vsub.s32 %v2326, 127
  %v2328 = vand.u32 2147483647, %v352
  %v2329 = vand.u32 %v2328, 8388607
  %v2330 = vor.u32 %v2329, 8388608
  %v2331 = vsub.s32 0, %v2330
  %v2332 = vadd.s32 %v2327, 1
  %vm2333 = vcmp.gt.s32.totalorder %v2332, 0
  %v2334 = vsel %vm2333, %v2332, 0
  %v2335 = vshrl.u32 %v2334, 5
  %v2336 = vand.u32 %v2334, 31
  %v2337 = vsub.s32 32, %v2336
  %v2338 = vshrl.u32 683565275, %v2337
  %v2339 = vshll.u32 683565275, %v2336
  %v2340 = vshrl.u32 2475754826, %v2337
  %v2341 = vor.u32 %v2339, %v2340
  %v2342 = vshll.u32 2475754826, %v2336
  %v2343 = vshrl.u32 2131351028, %v2337
  %v2344 = vor.u32 %v2342, %v2343
  %v2345 = vshll.u32 2131351028, %v2336
  %v2346 = vshrl.u32 2102212464, %v2337
  %v2347 = vor.u32 %v2345, %v2346
  %v2348 = vshll.u32 2102212464, %v2336
  %v2349 = vshrl.u32 920167782, %v2337
  %v2350 = vor.u32 %v2348, %v2349
  %v2351 = vshll.u32 920167782, %v2336
  %v2352 = vshrl.u32 1326507024, %v2337
  %v2353 = vor.u32 %v2351, %v2352
  %vm2354 = vcmp.lt.s32.totalorder %v2335, 1
  %vm2355 = vcmp.lt.s32.totalorder %v2335, 2
  %vm2356 = vcmp.lt.s32.totalorder %v2335, 3
  %vm2357 = vcmp.lt.s32.totalorder %v2335, 4
  %v2358 = vsel %vm2354, %v2338, %v2341
  %v2359 = vsel %vm2357, %v2347, 2102212464
  %v2360 = vsel %vm2356, %v2344, %v2359
  %v2361 = vsel %vm2355, %v2358, %v2360
  %v2362 = vsel %vm2354, %v2341, %v2344
  %v2363 = vsel %vm2357, %v2350, 920167782
  %v2364 = vsel %vm2356, %v2347, %v2363
  %v2365 = vsel %vm2355, %v2362, %v2364
  %v2366 = vsel %vm2354, %v2344, %v2347
  %v2367 = vsel %vm2357, %v2353, 1326507024
  %v2368 = vsel %vm2356, %v2350, %v2367
  %v2369 = vsel %vm2355, %v2366, %v2368
  %v2370 = vshll.u32 %v2330, 8
  %v2371 = vmul.u32.u64.compose %v2370, %v2369
  %v2372 = vextract.low.u32 %v2371
  %v2373 = vextract.high.u32 %v2371
  %v2374 = vmul.u32.u64.compose %v2370, %v2365
  %v2375 = vextract.low.u32 %v2374
  %v2376 = vextract.high.u32 %v2374
  %v2377 = vmul.u32 %v2370, %v2361
  %v2378 = vadd.s32 %v2373, %v2375
  %vm2379 = vc.u32 %v2373, %v2375
  %v2380 = vadd.s32 %v2376, 1
  %v2381 = vsel %vm2379, %v2380, %v2376
  %v2382 = vadd.s32 %v2377, %v2381
  %v2383 = vadd.s32 %v2382, 536870912
  %v2384 = vshrl.u32 %v2383, 30
  %v2385 = vshll.u32 %v2384, 30
  %v2386 = vsub.s32 %v2382, %v2385
  %vm2387 = vcmp.lt.s32.totalorder %v2386, 0
  %v2388 = vsub.s32 0, %v2386
  %v2389 = vsel %vm2387, %v2388, %v2386
  %v2390 = vclz %v2389
  %v2391 = vsub.s32 %v2390, 2
  %vm2392 = vcmp.gt.s32.totalorder 0, %v2391
  %v2393 = vsel %vm2392, 0, %v2391
  %v2394 = vsub.s32 32, %v2393
  %v2395 = vshll.u32 %v2386, %v2393
  %v2396 = vshrl.u32 %v2378, %v2394
  %v2397 = vor.u32 %v2395, %v2396
  %v2398 = vsub.s32 4294967266, %v2393
  %v2399 = vadd.s32 %v2398, 127
  %v2400 = vshll.u32 %v2399, 23
  %v2401 = vor.u32 4788187, %v2400
  %v2402 = vand.u32 2147483647, %v2401
  %v2404 = vcvt.s32.f32 %v2397
  %v2405 = vmul.f32 %v2404, %v2402
  %v2406 = vxor.u32 %v2405, 2147483648
  %v2407 = vsel %vm2324, %v2406, %v2405
  %v2408 = vsub.s32 4, %v2384
  %v2409 = vsel %vm2324, %v2408, %v2384
  %v2410 = vsel %vm2323, %v352, %v2407
  %v2411 = vsel %vm2323, 0, %v2409
  %v2412 = vcosq.f32.pop %v2410
  %v2413 = vsinq.f32.pop %v2410
  %vm2414 = vweird.f32 %v352
  %v2415 = vand.u32 %v2411, 3
  %vm2416 = vcmp.lt.s32.totalorder %v2415, 2
  %vm2417 = vcmp.eq.s32.totalorder %v2415, 0
  %v2418 = vxor.u32 %v2413, 2147483648
  %v2419 = vsel %vm2417, %v2412, %v2418
  %vm2420 = vcmp.eq.s32.totalorder %v2415, 2
  %v2421 = vxor.u32 %v2412, 2147483648
  %v2422 = vsel %vm2420, %v2421, %v2413
  %v2423 = vsel %vm2416, %v2419, %v2422
  %v2424 = vsel %vm2414, nan, %v2423
  %v2425 = vand.u32 2147483647, %v353
  %vm2426 = vcmp.le.f32.partialorder %v2425, 0.7853982
  %vm2427 = vcmp.lt.s32.totalorder %v353, 0
  %v2428 = vand.u32 %v353, 2139095040
  %v2429 = vshrl.u32 %v2428, 23
  %v2430 = vsub.s32 %v2429, 127
  %v2431 = vand.u32 2147483647, %v353
  %v2432 = vand.u32 %v2431, 8388607
  %v2433 = vor.u32 %v2432, 8388608
  %v2434 = vsub.s32 0, %v2433
  %v2435 = vadd.s32 %v2430, 1
  %vm2436 = vcmp.gt.s32.totalorder %v2435, 0
  %v2437 = vsel %vm2436, %v2435, 0
  %v2438 = vshrl.u32 %v2437, 5
  %v2439 = vand.u32 %v2437, 31
  %v2440 = vsub.s32 32, %v2439
  %v2441 = vshrl.u32 683565275, %v2440
  %v2442 = vshll.u32 683565275, %v2439
  %v2443 = vshrl.u32 2475754826, %v2440
  %v2444 = vor.u32 %v2442, %v2443
  %v2445 = vshll.u32 2475754826, %v2439
  %v2446 = vshrl.u32 2131351028, %v2440
  %v2447 = vor.u32 %v2445, %v2446
  %v2448 = vshll.u32 2131351028, %v2439
  %v2449 = vshrl.u32 2102212464, %v2440
  %v2450 = vor.u32 %v2448, %v2449
  %v2451 = vshll.u32 2102212464, %v2439
  %v2452 = vshrl.u32 920167782, %v2440
  %v2453 = vor.u32 %v2451, %v2452
  %v2454 = vshll.u32 920167782, %v2439
  %v2455 = vshrl.u32 1326507024, %v2440
  %v2456 = vor.u32 %v2454, %v2455
  %vm2457 = vcmp.lt.s32.totalorder %v2438, 1
  %vm2458 = vcmp.lt.s32.totalorder %v2438, 2
  %vm2459 = vcmp.lt.s32.totalorder %v2438, 3
  %vm2460 = vcmp.lt.s32.totalorder %v2438, 4
  %v2461 = vsel %vm2457, %v2441, %v2444
  %v2462 = vsel %vm2460, %v2450, 2102212464
  %v2463 = vsel %vm2459, %v2447, %v2462
  %v2464 = vsel %vm2458, %v2461, %v2463
  %v2465 = vsel %vm2457, %v2444, %v2447
  %v2466 = vsel %vm2460, %v2453, 920167782
  %v2467 = vsel %vm2459, %v2450, %v2466
  %v2468 = vsel %vm2458, %v2465, %v2467
  %v2469 = vsel %vm2457, %v2447, %v2450
  %v2470 = vsel %vm2460, %v2456, 1326507024
  %v2471 = vsel %vm2459, %v2453, %v2470
  %v2472 = vsel %vm2458, %v2469, %v2471
  %v2473 = vshll.u32 %v2433, 8
  %v2474 = vmul.u32.u64.compose %v2473, %v2472
  %v2475 = vextract.low.u32 %v2474
  %v2476 = vextract.high.u32 %v2474
  %v2477 = vmul.u32.u64.compose %v2473, %v2468
  %v2478 = vextract.low.u32 %v2477
  %v2479 = vextract.high.u32 %v2477
  %v2480 = vmul.u32 %v2473, %v2464
  %v2481 = vadd.s32 %v2476, %v2478
  %vm2482 = vc.u32 %v2476, %v2478
  %v2483 = vadd.s32 %v2479, 1
  %v2484 = vsel %vm2482, %v2483, %v2479
  %v2485 = vadd.s32 %v2480, %v2484
  %v2486 = vadd.s32 %v2485, 536870912
  %v2487 = vshrl.u32 %v2486, 30
  %v2488 = vshll.u32 %v2487, 30
  %v2489 = vsub.s32 %v2485, %v2488
  %vm2490 = vcmp.lt.s32.totalorder %v2489, 0
  %v2491 = vsub.s32 0, %v2489
  %v2492 = vsel %vm2490, %v2491, %v2489
  %v2493 = vclz %v2492
  %v2494 = vsub.s32 %v2493, 2
  %vm2495 = vcmp.gt.s32.totalorder 0, %v2494
  %v2496 = vsel %vm2495, 0, %v2494
  %v2497 = vsub.s32 32, %v2496
  %v2498 = vshll.u32 %v2489, %v2496
  %v2499 = vshrl.u32 %v2481, %v2497
  %v2500 = vor.u32 %v2498, %v2499
  %v2501 = vsub.s32 4294967266, %v2496
  %v2502 = vadd.s32 %v2501, 127
  %v2503 = vshll.u32 %v2502, 23
  %v2504 = vor.u32 4788187, %v2503
  %v2505 = vand.u32 2147483647, %v2504
  %v2507 = vcvt.s32.f32 %v2500
  %v2508 = vmul.f32 %v2507, %v2505
  %v2509 = vxor.u32 %v2508, 2147483648
  %v2510 = vsel %vm2427, %v2509, %v2508
  %v2511 = vsub.s32 4, %v2487
  %v2512 = vsel %vm2427, %v2511, %v2487
  %v2513 = vsel %vm2426, %v353, %v2510
  %v2514 = vsel %vm2426, 0, %v2512
  %v2515 = vcosq.f32.pop %v2513
  %v2516 = vsinq.f32.pop %v2513
  %vm2517 = vweird.f32 %v353
  %v2518 = vand.u32 %v2514, 3
  %vm2519 = vcmp.lt.s32.totalorder %v2518, 2
  %vm2520 = vcmp.eq.s32.totalorder %v2518, 0
  %v2521 = vxor.u32 %v2516, 2147483648
  %v2522 = vsel %vm2520, %v2515, %v2521
  %vm2523 = vcmp.eq.s32.totalorder %v2518, 2
  %v2524 = vxor.u32 %v2515, 2147483648
  %v2525 = vsel %vm2523, %v2524, %v2516
  %v2526 = vsel %vm2519, %v2522, %v2525
  %v2527 = vsel %vm2517, nan, %v2526
  %v2528 = vand.u32 2147483647, %v354
  %vm2529 = vcmp.le.f32.partialorder %v2528, 0.7853982
  %vm2530 = vcmp.lt.s32.totalorder %v354, 0
  %v2531 = vand.u32 %v354, 2139095040
  %v2532 = vshrl.u32 %v2531, 23
  %v2533 = vsub.s32 %v2532, 127
  %v2534 = vand.u32 2147483647, %v354
  %v2535 = vand.u32 %v2534, 8388607
  %v2536 = vor.u32 %v2535, 8388608
  %v2537 = vsub.s32 0, %v2536
  %v2538 = vadd.s32 %v2533, 1
  %vm2539 = vcmp.gt.s32.totalorder %v2538, 0
  %v2540 = vsel %vm2539, %v2538, 0
  %v2541 = vshrl.u32 %v2540, 5
  %v2542 = vand.u32 %v2540, 31
  %v2543 = vsub.s32 32, %v2542
  %v2544 = vshrl.u32 683565275, %v2543
  %v2545 = vshll.u32 683565275, %v2542
  %v2546 = vshrl.u32 2475754826, %v2543
  %v2547 = vor.u32 %v2545, %v2546
  %v2548 = vshll.u32 2475754826, %v2542
  %v2549 = vshrl.u32 2131351028, %v2543
  %v2550 = vor.u32 %v2548, %v2549
  %v2551 = vshll.u32 2131351028, %v2542
  %v2552 = vshrl.u32 2102212464, %v2543
  %v2553 = vor.u32 %v2551, %v2552
  %v2554 = vshll.u32 2102212464, %v2542
  %v2555 = vshrl.u32 920167782, %v2543
  %v2556 = vor.u32 %v2554, %v2555
  %v2557 = vshll.u32 920167782, %v2542
  %v2558 = vshrl.u32 1326507024, %v2543
  %v2559 = vor.u32 %v2557, %v2558
  %vm2560 = vcmp.lt.s32.totalorder %v2541, 1
  %vm2561 = vcmp.lt.s32.totalorder %v2541, 2
  %vm2562 = vcmp.lt.s32.totalorder %v2541, 3
  %vm2563 = vcmp.lt.s32.totalorder %v2541, 4
  %v2564 = vsel %vm2560, %v2544, %v2547
  %v2565 = vsel %vm2563, %v2553, 2102212464
  %v2566 = vsel %vm2562, %v2550, %v2565
  %v2567 = vsel %vm2561, %v2564, %v2566
  %v2568 = vsel %vm2560, %v2547, %v2550
  %v2569 = vsel %vm2563, %v2556, 920167782
  %v2570 = vsel %vm2562, %v2553, %v2569
  %v2571 = vsel %vm2561, %v2568, %v2570
  %v2572 = vsel %vm2560, %v2550, %v2553
  %v2573 = vsel %vm2563, %v2559, 1326507024
  %v2574 = vsel %vm2562, %v2556, %v2573
  %v2575 = vsel %vm2561, %v2572, %v2574
  %v2576 = vshll.u32 %v2536, 8
  %v2577 = vmul.u32.u64.compose %v2576, %v2575
  %v2578 = vextract.low.u32 %v2577
  %v2579 = vextract.high.u32 %v2577
  %v2580 = vmul.u32.u64.compose %v2576, %v2571
  %v2581 = vextract.low.u32 %v2580
  %v2582 = vextract.high.u32 %v2580
  %v2583 = vmul.u32 %v2576, %v2567
  %v2584 = vadd.s32 %v2579, %v2581
  %vm2585 = vc.u32 %v2579, %v2581
  %v2586 = vadd.s32 %v2582, 1
  %v2587 = vsel %vm2585, %v2586, %v2582
  %v2588 = vadd.s32 %v2583, %v2587
  %v2589 = vadd.s32 %v2588, 536870912
  %v2590 = vshrl.u32 %v2589, 30
  %v2591 = vshll.u32 %v2590, 30
  %v2592 = vsub.s32 %v2588, %v2591
  %vm2593 = vcmp.lt.s32.totalorder %v2592, 0
  %v2594 = vsub.s32 0, %v2592
  %v2595 = vsel %vm2593, %v2594, %v2592
  %v2596 = vclz %v2595
  %v2597 = vsub.s32 %v2596, 2
  %vm2598 = vcmp.gt.s32.totalorder 0, %v2597
  %v2599 = vsel %vm2598, 0, %v2597
  %v2600 = vsub.s32 32, %v2599
  %v2601 = vshll.u32 %v2592, %v2599
  %v2602 = vshrl.u32 %v2584, %v2600
  %v2603 = vor.u32 %v2601, %v2602
  %v2604 = vsub.s32 4294967266, %v2599
  %v2605 = vadd.s32 %v2604, 127
  %v2606 = vshll.u32 %v2605, 23
  %v2607 = vor.u32 4788187, %v2606
  %v2608 = vand.u32 2147483647, %v2607
  %v2610 = vcvt.s32.f32 %v2603
  %v2611 = vmul.f32 %v2610, %v2608
  %v2612 = vxor.u32 %v2611, 2147483648
  %v2613 = vsel %vm2530, %v2612, %v2611
  %v2614 = vsub.s32 4, %v2590
  %v2615 = vsel %vm2530, %v2614, %v2590
  %v2616 = vsel %vm2529, %v354, %v2613
  %v2617 = vsel %vm2529, 0, %v2615
  %v2618 = vcosq.f32.pop %v2616
  %v2619 = vsinq.f32.pop %v2616
  %vm2620 = vweird.f32 %v354
  %v2621 = vand.u32 %v2617, 3
  %vm2622 = vcmp.lt.s32.totalorder %v2621, 2
  %vm2623 = vcmp.eq.s32.totalorder %v2621, 0
  %v2624 = vxor.u32 %v2619, 2147483648
  %v2625 = vsel %vm2623, %v2618, %v2624
  %vm2626 = vcmp.eq.s32.totalorder %v2621, 2
  %v2627 = vxor.u32 %v2618, 2147483648
  %v2628 = vsel %vm2626, %v2627, %v2619
  %v2629 = vsel %vm2622, %v2625, %v2628
  %v2630 = vsel %vm2620, nan, %v2629
  %v2631 = vand.u32 2147483647, %v355
  %vm2632 = vcmp.le.f32.partialorder %v2631, 0.7853982
  %vm2633 = vcmp.lt.s32.totalorder %v355, 0
  %v2634 = vand.u32 %v355, 2139095040
  %v2635 = vshrl.u32 %v2634, 23
  %v2636 = vsub.s32 %v2635, 127
  %v2637 = vand.u32 2147483647, %v355
  %v2638 = vand.u32 %v2637, 8388607
  %v2639 = vor.u32 %v2638, 8388608
  %v2640 = vsub.s32 0, %v2639
  %v2641 = vadd.s32 %v2636, 1
  %vm2642 = vcmp.gt.s32.totalorder %v2641, 0
  %v2643 = vsel %vm2642, %v2641, 0
  %v2644 = vshrl.u32 %v2643, 5
  %v2645 = vand.u32 %v2643, 31
  %v2646 = vsub.s32 32, %v2645
  %v2647 = vshrl.u32 683565275, %v2646
  %v2648 = vshll.u32 683565275, %v2645
  %v2649 = vshrl.u32 2475754826, %v2646
  %v2650 = vor.u32 %v2648, %v2649
  %v2651 = vshll.u32 2475754826, %v2645
  %v2652 = vshrl.u32 2131351028, %v2646
  %v2653 = vor.u32 %v2651, %v2652
  %v2654 = vshll.u32 2131351028, %v2645
  %v2655 = vshrl.u32 2102212464, %v2646
  %v2656 = vor.u32 %v2654, %v2655
  %v2657 = vshll.u32 2102212464, %v2645
  %v2658 = vshrl.u32 920167782, %v2646
  %v2659 = vor.u32 %v2657, %v2658
  %v2660 = vshll.u32 920167782, %v2645
  %v2661 = vshrl.u32 1326507024, %v2646
  %v2662 = vor.u32 %v2660, %v2661
  %vm2663 = vcmp.lt.s32.totalorder %v2644, 1
  %vm2664 = vcmp.lt.s32.totalorder %v2644, 2
  %vm2665 = vcmp.lt.s32.totalorder %v2644, 3
  %vm2666 = vcmp.lt.s32.totalorder %v2644, 4
  %v2667 = vsel %vm2663, %v2647, %v2650
  %v2668 = vsel %vm2666, %v2656, 2102212464
  %v2669 = vsel %vm2665, %v2653, %v2668
  %v2670 = vsel %vm2664, %v2667, %v2669
  %v2671 = vsel %vm2663, %v2650, %v2653
  %v2672 = vsel %vm2666, %v2659, 920167782
  %v2673 = vsel %vm2665, %v2656, %v2672
  %v2674 = vsel %vm2664, %v2671, %v2673
  %v2675 = vsel %vm2663, %v2653, %v2656
  %v2676 = vsel %vm2666, %v2662, 1326507024
  %v2677 = vsel %vm2665, %v2659, %v2676
  %v2678 = vsel %vm2664, %v2675, %v2677
  %v2679 = vshll.u32 %v2639, 8
  %v2680 = vmul.u32.u64.compose %v2679, %v2678
  %v2681 = vextract.low.u32 %v2680
  %v2682 = vextract.high.u32 %v2680
  %v2683 = vmul.u32.u64.compose %v2679, %v2674
  %v2684 = vextract.low.u32 %v2683
  %v2685 = vextract.high.u32 %v2683
  %v2686 = vmul.u32 %v2679, %v2670
  %v2687 = vadd.s32 %v2682, %v2684
  %vm2688 = vc.u32 %v2682, %v2684
  %v2689 = vadd.s32 %v2685, 1
  %v2690 = vsel %vm2688, %v2689, %v2685
  %v2691 = vadd.s32 %v2686, %v2690
  %v2692 = vadd.s32 %v2691, 536870912
  %v2693 = vshrl.u32 %v2692, 30
  %v2694 = vshll.u32 %v2693, 30
  %v2695 = vsub.s32 %v2691, %v2694
  %vm2696 = vcmp.lt.s32.totalorder %v2695, 0
  %v2697 = vsub.s32 0, %v2695
  %v2698 = vsel %vm2696, %v2697, %v2695
  %v2699 = vclz %v2698
  %v2700 = vsub.s32 %v2699, 2
  %vm2701 = vcmp.gt.s32.totalorder 0, %v2700
  %v2702 = vsel %vm2701, 0, %v2700
  %v2703 = vsub.s32 32, %v2702
  %v2704 = vshll.u32 %v2695, %v2702
  %v2705 = vshrl.u32 %v2687, %v2703
  %v2706 = vor.u32 %v2704, %v2705
  %v2707 = vsub.s32 4294967266, %v2702
  %v2708 = vadd.s32 %v2707, 127
  %v2709 = vshll.u32 %v2708, 23
  %v2710 = vor.u32 4788187, %v2709
  %v2711 = vand.u32 2147483647, %v2710
  %v2713 = vcvt.s32.f32 %v2706
  %v2714 = vmul.f32 %v2713, %v2711
  %v2715 = vxor.u32 %v2714, 2147483648
  %v2716 = vsel %vm2633, %v2715, %v2714
  %v2717 = vsub.s32 4, %v2693
  %v2718 = vsel %vm2633, %v2717, %v2693
  %v2719 = vsel %vm2632, %v355, %v2716
  %v2720 = vsel %vm2632, 0, %v2718
  %v2721 = vcosq.f32.pop %v2719
  %v2722 = vsinq.f32.pop %v2719
  %vm2723 = vweird.f32 %v355
  %v2724 = vand.u32 %v2720, 3
  %vm2725 = vcmp.lt.s32.totalorder %v2724, 2
  %vm2726 = vcmp.eq.s32.totalorder %v2724, 0
  %v2727 = vxor.u32 %v2722, 2147483648
  %v2728 = vsel %vm2726, %v2721, %v2727
  %vm2729 = vcmp.eq.s32.totalorder %v2724, 2
  %v2730 = vxor.u32 %v2721, 2147483648
  %v2731 = vsel %vm2729, %v2730, %v2722
  %v2732 = vsel %vm2725, %v2728, %v2731
  %v2733 = vsel %vm2723, nan, %v2732
  %v2734 = vand.u32 2147483647, %v356
  %vm2735 = vcmp.le.f32.partialorder %v2734, 0.7853982
  %vm2736 = vcmp.lt.s32.totalorder %v356, 0
  %v2737 = vand.u32 %v356, 2139095040
  %v2738 = vshrl.u32 %v2737, 23
  %v2739 = vsub.s32 %v2738, 127
  %v2740 = vand.u32 2147483647, %v356
  %v2741 = vand.u32 %v2740, 8388607
  %v2742 = vor.u32 %v2741, 8388608
  %v2743 = vsub.s32 0, %v2742
  %v2744 = vadd.s32 %v2739, 1
  %vm2745 = vcmp.gt.s32.totalorder %v2744, 0
  %v2746 = vsel %vm2745, %v2744, 0
  %v2747 = vshrl.u32 %v2746, 5
  %v2748 = vand.u32 %v2746, 31
  %v2749 = vsub.s32 32, %v2748
  %v2750 = vshrl.u32 683565275, %v2749
  %v2751 = vshll.u32 683565275, %v2748
  %v2752 = vshrl.u32 2475754826, %v2749
  %v2753 = vor.u32 %v2751, %v2752
  %v2754 = vshll.u32 2475754826, %v2748
  %v2755 = vshrl.u32 2131351028, %v2749
  %v2756 = vor.u32 %v2754, %v2755
  %v2757 = vshll.u32 2131351028, %v2748
  %v2758 = vshrl.u32 2102212464, %v2749
  %v2759 = vor.u32 %v2757, %v2758
  %v2760 = vshll.u32 2102212464, %v2748
  %v2761 = vshrl.u32 920167782, %v2749
  %v2762 = vor.u32 %v2760, %v2761
  %v2763 = vshll.u32 920167782, %v2748
  %v2764 = vshrl.u32 1326507024, %v2749
  %v2765 = vor.u32 %v2763, %v2764
  %vm2766 = vcmp.lt.s32.totalorder %v2747, 1
  %vm2767 = vcmp.lt.s32.totalorder %v2747, 2
  %vm2768 = vcmp.lt.s32.totalorder %v2747, 3
  %vm2769 = vcmp.lt.s32.totalorder %v2747, 4
  %v2770 = vsel %vm2766, %v2750, %v2753
  %v2771 = vsel %vm2769, %v2759, 2102212464
  %v2772 = vsel %vm2768, %v2756, %v2771
  %v2773 = vsel %vm2767, %v2770, %v2772
  %v2774 = vsel %vm2766, %v2753, %v2756
  %v2775 = vsel %vm2769, %v2762, 920167782
  %v2776 = vsel %vm2768, %v2759, %v2775
  %v2777 = vsel %vm2767, %v2774, %v2776
  %v2778 = vsel %vm2766, %v2756, %v2759
  %v2779 = vsel %vm2769, %v2765, 1326507024
  %v2780 = vsel %vm2768, %v2762, %v2779
  %v2781 = vsel %vm2767, %v2778, %v2780
  %v2782 = vshll.u32 %v2742, 8
  %v2783 = vmul.u32.u64.compose %v2782, %v2781
  %v2784 = vextract.low.u32 %v2783
  %v2785 = vextract.high.u32 %v2783
  %v2786 = vmul.u32.u64.compose %v2782, %v2777
  %v2787 = vextract.low.u32 %v2786
  %v2788 = vextract.high.u32 %v2786
  %v2789 = vmul.u32 %v2782, %v2773
  %v2790 = vadd.s32 %v2785, %v2787
  %vm2791 = vc.u32 %v2785, %v2787
  %v2792 = vadd.s32 %v2788, 1
  %v2793 = vsel %vm2791, %v2792, %v2788
  %v2794 = vadd.s32 %v2789, %v2793
  %v2795 = vadd.s32 %v2794, 536870912
  %v2796 = vshrl.u32 %v2795, 30
  %v2797 = vshll.u32 %v2796, 30
  %v2798 = vsub.s32 %v2794, %v2797
  %vm2799 = vcmp.lt.s32.totalorder %v2798, 0
  %v2800 = vsub.s32 0, %v2798
  %v2801 = vsel %vm2799, %v2800, %v2798
  %v2802 = vclz %v2801
  %v2803 = vsub.s32 %v2802, 2
  %vm2804 = vcmp.gt.s32.totalorder 0, %v2803
  %v2805 = vsel %vm2804, 0, %v2803
  %v2806 = vsub.s32 32, %v2805
  %v2807 = vshll.u32 %v2798, %v2805
  %v2808 = vshrl.u32 %v2790, %v2806
  %v2809 = vor.u32 %v2807, %v2808
  %v2810 = vsub.s32 4294967266, %v2805
  %v2811 = vadd.s32 %v2810, 127
  %v2812 = vshll.u32 %v2811, 23
  %v2813 = vor.u32 4788187, %v2812
  %v2814 = vand.u32 2147483647, %v2813
  %v2816 = vcvt.s32.f32 %v2809
  %v2817 = vmul.f32 %v2816, %v2814
  %v2818 = vxor.u32 %v2817, 2147483648
  %v2819 = vsel %vm2736, %v2818, %v2817
  %v2820 = vsub.s32 4, %v2796
  %v2821 = vsel %vm2736, %v2820, %v2796
  %v2822 = vsel %vm2735, %v356, %v2819
  %v2823 = vsel %vm2735, 0, %v2821
  %v2824 = vcosq.f32.pop %v2822
  %v2825 = vsinq.f32.pop %v2822
  %vm2826 = vweird.f32 %v356
  %v2827 = vand.u32 %v2823, 3
  %vm2828 = vcmp.lt.s32.totalorder %v2827, 2
  %vm2829 = vcmp.eq.s32.totalorder %v2827, 0
  %v2830 = vxor.u32 %v2825, 2147483648
  %v2831 = vsel %vm2829, %v2824, %v2830
  %vm2832 = vcmp.eq.s32.totalorder %v2827, 2
  %v2833 = vxor.u32 %v2824, 2147483648
  %v2834 = vsel %vm2832, %v2833, %v2825
  %v2835 = vsel %vm2828, %v2831, %v2834
  %v2836 = vsel %vm2826, nan, %v2835
  %v2837 = vand.u32 2147483647, %v357
  %vm2838 = vcmp.le.f32.partialorder %v2837, 0.7853982
  %vm2839 = vcmp.lt.s32.totalorder %v357, 0
  %v2840 = vand.u32 %v357, 2139095040
  %v2841 = vshrl.u32 %v2840, 23
  %v2842 = vsub.s32 %v2841, 127
  %v2843 = vand.u32 2147483647, %v357
  %v2844 = vand.u32 %v2843, 8388607
  %v2845 = vor.u32 %v2844, 8388608
  %v2846 = vsub.s32 0, %v2845
  %v2847 = vadd.s32 %v2842, 1
  %vm2848 = vcmp.gt.s32.totalorder %v2847, 0
  %v2849 = vsel %vm2848, %v2847, 0
  %v2850 = vshrl.u32 %v2849, 5
  %v2851 = vand.u32 %v2849, 31
  %v2852 = vsub.s32 32, %v2851
  %v2853 = vshrl.u32 683565275, %v2852
  %v2854 = vshll.u32 683565275, %v2851
  %v2855 = vshrl.u32 2475754826, %v2852
  %v2856 = vor.u32 %v2854, %v2855
  %v2857 = vshll.u32 2475754826, %v2851
  %v2858 = vshrl.u32 2131351028, %v2852
  %v2859 = vor.u32 %v2857, %v2858
  %v2860 = vshll.u32 2131351028, %v2851
  %v2861 = vshrl.u32 2102212464, %v2852
  %v2862 = vor.u32 %v2860, %v2861
  %v2863 = vshll.u32 2102212464, %v2851
  %v2864 = vshrl.u32 920167782, %v2852
  %v2865 = vor.u32 %v2863, %v2864
  %v2866 = vshll.u32 920167782, %v2851
  %v2867 = vshrl.u32 1326507024, %v2852
  %v2868 = vor.u32 %v2866, %v2867
  %vm2869 = vcmp.lt.s32.totalorder %v2850, 1
  %vm2870 = vcmp.lt.s32.totalorder %v2850, 2
  %vm2871 = vcmp.lt.s32.totalorder %v2850, 3
  %vm2872 = vcmp.lt.s32.totalorder %v2850, 4
  %v2873 = vsel %vm2869, %v2853, %v2856
  %v2874 = vsel %vm2872, %v2862, 2102212464
  %v2875 = vsel %vm2871, %v2859, %v2874
  %v2876 = vsel %vm2870, %v2873, %v2875
  %v2877 = vsel %vm2869, %v2856, %v2859
  %v2878 = vsel %vm2872, %v2865, 920167782
  %v2879 = vsel %vm2871, %v2862, %v2878
  %v2880 = vsel %vm2870, %v2877, %v2879
  %v2881 = vsel %vm2869, %v2859, %v2862
  %v2882 = vsel %vm2872, %v2868, 1326507024
  %v2883 = vsel %vm2871, %v2865, %v2882
  %v2884 = vsel %vm2870, %v2881, %v2883
  %v2885 = vshll.u32 %v2845, 8
  %v2886 = vmul.u32.u64.compose %v2885, %v2884
  %v2887 = vextract.low.u32 %v2886
  %v2888 = vextract.high.u32 %v2886
  %v2889 = vmul.u32.u64.compose %v2885, %v2880
  %v2890 = vextract.low.u32 %v2889
  %v2891 = vextract.high.u32 %v2889
  %v2892 = vmul.u32 %v2885, %v2876
  %v2893 = vadd.s32 %v2888, %v2890
  %vm2894 = vc.u32 %v2888, %v2890
  %v2895 = vadd.s32 %v2891, 1
  %v2896 = vsel %vm2894, %v2895, %v2891
  %v2897 = vadd.s32 %v2892, %v2896
  %v2898 = vadd.s32 %v2897, 536870912
  %v2899 = vshrl.u32 %v2898, 30
  %v2900 = vshll.u32 %v2899, 30
  %v2901 = vsub.s32 %v2897, %v2900
  %vm2902 = vcmp.lt.s32.totalorder %v2901, 0
  %v2903 = vsub.s32 0, %v2901
  %v2904 = vsel %vm2902, %v2903, %v2901
  %v2905 = vclz %v2904
  %v2906 = vsub.s32 %v2905, 2
  %vm2907 = vcmp.gt.s32.totalorder 0, %v2906
  %v2908 = vsel %vm2907, 0, %v2906
  %v2909 = vsub.s32 32, %v2908
  %v2910 = vshll.u32 %v2901, %v2908
  %v2911 = vshrl.u32 %v2893, %v2909
  %v2912 = vor.u32 %v2910, %v2911
  %v2913 = vsub.s32 4294967266, %v2908
  %v2914 = vadd.s32 %v2913, 127
  %v2915 = vshll.u32 %v2914, 23
  %v2916 = vor.u32 4788187, %v2915
  %v2917 = vand.u32 2147483647, %v2916
  %v2919 = vcvt.s32.f32 %v2912
  %v2920 = vmul.f32 %v2919, %v2917
  %v2921 = vxor.u32 %v2920, 2147483648
  %v2922 = vsel %vm2839, %v2921, %v2920
  %v2923 = vsub.s32 4, %v2899
  %v2924 = vsel %vm2839, %v2923, %v2899
  %v2925 = vsel %vm2838, %v357, %v2922
  %v2926 = vsel %vm2838, 0, %v2924
  %v2927 = vcosq.f32.pop %v2925
  %v2928 = vsinq.f32.pop %v2925
  %vm2929 = vweird.f32 %v357
  %v2930 = vand.u32 %v2926, 3
  %vm2931 = vcmp.lt.s32.totalorder %v2930, 2
  %vm2932 = vcmp.eq.s32.totalorder %v2930, 0
  %v2933 = vxor.u32 %v2928, 2147483648
  %v2934 = vsel %vm2932, %v2927, %v2933
  %vm2935 = vcmp.eq.s32.totalorder %v2930, 2
  %v2936 = vxor.u32 %v2927, 2147483648
  %v2937 = vsel %vm2935, %v2936, %v2928
  %v2938 = vsel %vm2931, %v2934, %v2937
  %v2939 = vsel %vm2929, nan, %v2938
  %v2940 = vand.u32 2147483647, %v358
  %vm2941 = vcmp.le.f32.partialorder %v2940, 0.7853982
  %vm2942 = vcmp.lt.s32.totalorder %v358, 0
  %v2943 = vand.u32 %v358, 2139095040
  %v2944 = vshrl.u32 %v2943, 23
  %v2945 = vsub.s32 %v2944, 127
  %v2946 = vand.u32 2147483647, %v358
  %v2947 = vand.u32 %v2946, 8388607
  %v2948 = vor.u32 %v2947, 8388608
  %v2949 = vsub.s32 0, %v2948
  %v2950 = vadd.s32 %v2945, 1
  %vm2951 = vcmp.gt.s32.totalorder %v2950, 0
  %v2952 = vsel %vm2951, %v2950, 0
  %v2953 = vshrl.u32 %v2952, 5
  %v2954 = vand.u32 %v2952, 31
  %v2955 = vsub.s32 32, %v2954
  %v2956 = vshrl.u32 683565275, %v2955
  %v2957 = vshll.u32 683565275, %v2954
  %v2958 = vshrl.u32 2475754826, %v2955
  %v2959 = vor.u32 %v2957, %v2958
  %v2960 = vshll.u32 2475754826, %v2954
  %v2961 = vshrl.u32 2131351028, %v2955
  %v2962 = vor.u32 %v2960, %v2961
  %v2963 = vshll.u32 2131351028, %v2954
  %v2964 = vshrl.u32 2102212464, %v2955
  %v2965 = vor.u32 %v2963, %v2964
  %v2966 = vshll.u32 2102212464, %v2954
  %v2967 = vshrl.u32 920167782, %v2955
  %v2968 = vor.u32 %v2966, %v2967
  %v2969 = vshll.u32 920167782, %v2954
  %v2970 = vshrl.u32 1326507024, %v2955
  %v2971 = vor.u32 %v2969, %v2970
  %vm2972 = vcmp.lt.s32.totalorder %v2953, 1
  %vm2973 = vcmp.lt.s32.totalorder %v2953, 2
  %vm2974 = vcmp.lt.s32.totalorder %v2953, 3
  %vm2975 = vcmp.lt.s32.totalorder %v2953, 4
  %v2976 = vsel %vm2972, %v2956, %v2959
  %v2977 = vsel %vm2975, %v2965, 2102212464
  %v2978 = vsel %vm2974, %v2962, %v2977
  %v2979 = vsel %vm2973, %v2976, %v2978
  %v2980 = vsel %vm2972, %v2959, %v2962
  %v2981 = vsel %vm2975, %v2968, 920167782
  %v2982 = vsel %vm2974, %v2965, %v2981
  %v2983 = vsel %vm2973, %v2980, %v2982
  %v2984 = vsel %vm2972, %v2962, %v2965
  %v2985 = vsel %vm2975, %v2971, 1326507024
  %v2986 = vsel %vm2974, %v2968, %v2985
  %v2987 = vsel %vm2973, %v2984, %v2986
  %v2988 = vshll.u32 %v2948, 8
  %v2989 = vmul.u32.u64.compose %v2988, %v2987
  %v2990 = vextract.low.u32 %v2989
  %v2991 = vextract.high.u32 %v2989
  %v2992 = vmul.u32.u64.compose %v2988, %v2983
  %v2993 = vextract.low.u32 %v2992
  %v2994 = vextract.high.u32 %v2992
  %v2995 = vmul.u32 %v2988, %v2979
  %v2996 = vadd.s32 %v2991, %v2993
  %vm2997 = vc.u32 %v2991, %v2993
  %v2998 = vadd.s32 %v2994, 1
  %v2999 = vsel %vm2997, %v2998, %v2994
  %v3000 = vadd.s32 %v2995, %v2999
  %v3001 = vadd.s32 %v3000, 536870912
  %v3002 = vshrl.u32 %v3001, 30
  %v3003 = vshll.u32 %v3002, 30
  %v3004 = vsub.s32 %v3000, %v3003
  %vm3005 = vcmp.lt.s32.totalorder %v3004, 0
  %v3006 = vsub.s32 0, %v3004
  %v3007 = vsel %vm3005, %v3006, %v3004
  %v3008 = vclz %v3007
  %v3009 = vsub.s32 %v3008, 2
  %vm3010 = vcmp.gt.s32.totalorder 0, %v3009
  %v3011 = vsel %vm3010, 0, %v3009
  %v3012 = vsub.s32 32, %v3011
  %v3013 = vshll.u32 %v3004, %v3011
  %v3014 = vshrl.u32 %v2996, %v3012
  %v3015 = vor.u32 %v3013, %v3014
  %v3016 = vsub.s32 4294967266, %v3011
  %v3017 = vadd.s32 %v3016, 127
  %v3018 = vshll.u32 %v3017, 23
  %v3019 = vor.u32 4788187, %v3018
  %v3020 = vand.u32 2147483647, %v3019
  %v3022 = vcvt.s32.f32 %v3015
  %v3023 = vmul.f32 %v3022, %v3020
  %v3024 = vxor.u32 %v3023, 2147483648
  %v3025 = vsel %vm2942, %v3024, %v3023
  %v3026 = vsub.s32 4, %v3002
  %v3027 = vsel %vm2942, %v3026, %v3002
  %v3028 = vsel %vm2941, %v358, %v3025
  %v3029 = vsel %vm2941, 0, %v3027
  %v3030 = vcosq.f32.pop %v3028
  %v3031 = vsinq.f32.pop %v3028
  %vm3032 = vweird.f32 %v358
  %v3033 = vand.u32 %v3029, 3
  %vm3034 = vcmp.lt.s32.totalorder %v3033, 2
  %vm3035 = vcmp.eq.s32.totalorder %v3033, 0
  %v3036 = vxor.u32 %v3031, 2147483648
  %v3037 = vsel %vm3035, %v3030, %v3036
  %vm3038 = vcmp.eq.s32.totalorder %v3033, 2
  %v3039 = vxor.u32 %v3030, 2147483648
  %v3040 = vsel %vm3038, %v3039, %v3031
  %v3041 = vsel %vm3034, %v3037, %v3040
  %v3042 = vsel %vm3032, nan, %v3041
  %v3043 = vand.u32 2147483647, %v359
  %vm3044 = vcmp.le.f32.partialorder %v3043, 0.7853982
  %vm3045 = vcmp.lt.s32.totalorder %v359, 0
  %v3046 = vand.u32 %v359, 2139095040
  %v3047 = vshrl.u32 %v3046, 23
  %v3048 = vsub.s32 %v3047, 127
  %v3049 = vand.u32 2147483647, %v359
  %v3050 = vand.u32 %v3049, 8388607
  %v3051 = vor.u32 %v3050, 8388608
  %v3052 = vsub.s32 0, %v3051
  %v3053 = vadd.s32 %v3048, 1
  %vm3054 = vcmp.gt.s32.totalorder %v3053, 0
  %v3055 = vsel %vm3054, %v3053, 0
  %v3056 = vshrl.u32 %v3055, 5
  %v3057 = vand.u32 %v3055, 31
  %v3058 = vsub.s32 32, %v3057
  %v3059 = vshrl.u32 683565275, %v3058
  %v3060 = vshll.u32 683565275, %v3057
  %v3061 = vshrl.u32 2475754826, %v3058
  %v3062 = vor.u32 %v3060, %v3061
  %v3063 = vshll.u32 2475754826, %v3057
  %v3064 = vshrl.u32 2131351028, %v3058
  %v3065 = vor.u32 %v3063, %v3064
  %v3066 = vshll.u32 2131351028, %v3057
  %v3067 = vshrl.u32 2102212464, %v3058
  %v3068 = vor.u32 %v3066, %v3067
  %v3069 = vshll.u32 2102212464, %v3057
  %v3070 = vshrl.u32 920167782, %v3058
  %v3071 = vor.u32 %v3069, %v3070
  %v3072 = vshll.u32 920167782, %v3057
  %v3073 = vshrl.u32 1326507024, %v3058
  %v3074 = vor.u32 %v3072, %v3073
  %vm3075 = vcmp.lt.s32.totalorder %v3056, 1
  %vm3076 = vcmp.lt.s32.totalorder %v3056, 2
  %vm3077 = vcmp.lt.s32.totalorder %v3056, 3
  %vm3078 = vcmp.lt.s32.totalorder %v3056, 4
  %v3079 = vsel %vm3075, %v3059, %v3062
  %v3080 = vsel %vm3078, %v3068, 2102212464
  %v3081 = vsel %vm3077, %v3065, %v3080
  %v3082 = vsel %vm3076, %v3079, %v3081
  %v3083 = vsel %vm3075, %v3062, %v3065
  %v3084 = vsel %vm3078, %v3071, 920167782
  %v3085 = vsel %vm3077, %v3068, %v3084
  %v3086 = vsel %vm3076, %v3083, %v3085
  %v3087 = vsel %vm3075, %v3065, %v3068
  %v3088 = vsel %vm3078, %v3074, 1326507024
  %v3089 = vsel %vm3077, %v3071, %v3088
  %v3090 = vsel %vm3076, %v3087, %v3089
  %v3091 = vshll.u32 %v3051, 8
  %v3092 = vmul.u32.u64.compose %v3091, %v3090
  %v3093 = vextract.low.u32 %v3092
  %v3094 = vextract.high.u32 %v3092
  %v3095 = vmul.u32.u64.compose %v3091, %v3086
  %v3096 = vextract.low.u32 %v3095
  %v3097 = vextract.high.u32 %v3095
  %v3098 = vmul.u32 %v3091, %v3082
  %v3099 = vadd.s32 %v3094, %v3096
  %vm3100 = vc.u32 %v3094, %v3096
  %v3101 = vadd.s32 %v3097, 1
  %v3102 = vsel %vm3100, %v3101, %v3097
  %v3103 = vadd.s32 %v3098, %v3102
  %v3104 = vadd.s32 %v3103, 536870912
  %v3105 = vshrl.u32 %v3104, 30
  %v3106 = vshll.u32 %v3105, 30
  %v3107 = vsub.s32 %v3103, %v3106
  %vm3108 = vcmp.lt.s32.totalorder %v3107, 0
  %v3109 = vsub.s32 0, %v3107
  %v3110 = vsel %vm3108, %v3109, %v3107
  %v3111 = vclz %v3110
  %v3112 = vsub.s32 %v3111, 2
  %vm3113 = vcmp.gt.s32.totalorder 0, %v3112
  %v3114 = vsel %vm3113, 0, %v3112
  %v3115 = vsub.s32 32, %v3114
  %v3116 = vshll.u32 %v3107, %v3114
  %v3117 = vshrl.u32 %v3099, %v3115
  %v3118 = vor.u32 %v3116, %v3117
  %v3119 = vsub.s32 4294967266, %v3114
  %v3120 = vadd.s32 %v3119, 127
  %v3121 = vshll.u32 %v3120, 23
  %v3122 = vor.u32 4788187, %v3121
  %v3123 = vand.u32 2147483647, %v3122
  %v3125 = vcvt.s32.f32 %v3118
  %v3126 = vmul.f32 %v3125, %v3123
  %v3127 = vxor.u32 %v3126, 2147483648
  %v3128 = vsel %vm3045, %v3127, %v3126
  %v3129 = vsub.s32 4, %v3105
  %v3130 = vsel %vm3045, %v3129, %v3105
  %v3131 = vsel %vm3044, %v359, %v3128
  %v3132 = vsel %vm3044, 0, %v3130
  %v3133 = vcosq.f32.pop %v3131
  %v3134 = vsinq.f32.pop %v3131
  %vm3135 = vweird.f32 %v359
  %v3136 = vand.u32 %v3132, 3
  %vm3137 = vcmp.lt.s32.totalorder %v3136, 2
  %vm3138 = vcmp.eq.s32.totalorder %v3136, 0
  %v3139 = vxor.u32 %v3134, 2147483648
  %v3140 = vsel %vm3138, %v3133, %v3139
  %vm3141 = vcmp.eq.s32.totalorder %v3136, 2
  %v3142 = vxor.u32 %v3133, 2147483648
  %v3143 = vsel %vm3141, %v3142, %v3134
  %v3144 = vsel %vm3137, %v3140, %v3143
  %v3145 = vsel %vm3135, nan, %v3144
  %v3146 = vand.u32 2147483647, %v360
  %vm3147 = vcmp.le.f32.partialorder %v3146, 0.7853982
  %vm3148 = vcmp.lt.s32.totalorder %v360, 0
  %v3149 = vand.u32 %v360, 2139095040
  %v3150 = vshrl.u32 %v3149, 23
  %v3151 = vsub.s32 %v3150, 127
  %v3152 = vand.u32 2147483647, %v360
  %v3153 = vand.u32 %v3152, 8388607
  %v3154 = vor.u32 %v3153, 8388608
  %v3155 = vsub.s32 0, %v3154
  %v3156 = vadd.s32 %v3151, 1
  %vm3157 = vcmp.gt.s32.totalorder %v3156, 0
  %v3158 = vsel %vm3157, %v3156, 0
  %v3159 = vshrl.u32 %v3158, 5
  %v3160 = vand.u32 %v3158, 31
  %v3161 = vsub.s32 32, %v3160
  %v3162 = vshrl.u32 683565275, %v3161
  %v3163 = vshll.u32 683565275, %v3160
  %v3164 = vshrl.u32 2475754826, %v3161
  %v3165 = vor.u32 %v3163, %v3164
  %v3166 = vshll.u32 2475754826, %v3160
  %v3167 = vshrl.u32 2131351028, %v3161
  %v3168 = vor.u32 %v3166, %v3167
  %v3169 = vshll.u32 2131351028, %v3160
  %v3170 = vshrl.u32 2102212464, %v3161
  %v3171 = vor.u32 %v3169, %v3170
  %v3172 = vshll.u32 2102212464, %v3160
  %v3173 = vshrl.u32 920167782, %v3161
  %v3174 = vor.u32 %v3172, %v3173
  %v3175 = vshll.u32 920167782, %v3160
  %v3176 = vshrl.u32 1326507024, %v3161
  %v3177 = vor.u32 %v3175, %v3176
  %vm3178 = vcmp.lt.s32.totalorder %v3159, 1
  %vm3179 = vcmp.lt.s32.totalorder %v3159, 2
  %vm3180 = vcmp.lt.s32.totalorder %v3159, 3
  %vm3181 = vcmp.lt.s32.totalorder %v3159, 4
  %v3182 = vsel %vm3178, %v3162, %v3165
  %v3183 = vsel %vm3181, %v3171, 2102212464
  %v3184 = vsel %vm3180, %v3168, %v3183
  %v3185 = vsel %vm3179, %v3182, %v3184
  %v3186 = vsel %vm3178, %v3165, %v3168
  %v3187 = vsel %vm3181, %v3174, 920167782
  %v3188 = vsel %vm3180, %v3171, %v3187
  %v3189 = vsel %vm3179, %v3186, %v3188
  %v3190 = vsel %vm3178, %v3168, %v3171
  %v3191 = vsel %vm3181, %v3177, 1326507024
  %v3192 = vsel %vm3180, %v3174, %v3191
  %v3193 = vsel %vm3179, %v3190, %v3192
  %v3194 = vshll.u32 %v3154, 8
  %v3195 = vmul.u32.u64.compose %v3194, %v3193
  %v3196 = vextract.low.u32 %v3195
  %v3197 = vextract.high.u32 %v3195
  %v3198 = vmul.u32.u64.compose %v3194, %v3189
  %v3199 = vextract.low.u32 %v3198
  %v3200 = vextract.high.u32 %v3198
  %v3201 = vmul.u32 %v3194, %v3185
  %v3202 = vadd.s32 %v3197, %v3199
  %vm3203 = vc.u32 %v3197, %v3199
  %v3204 = vadd.s32 %v3200, 1
  %v3205 = vsel %vm3203, %v3204, %v3200
  %v3206 = vadd.s32 %v3201, %v3205
  %v3207 = vadd.s32 %v3206, 536870912
  %v3208 = vshrl.u32 %v3207, 30
  %v3209 = vshll.u32 %v3208, 30
  %v3210 = vsub.s32 %v3206, %v3209
  %vm3211 = vcmp.lt.s32.totalorder %v3210, 0
  %v3212 = vsub.s32 0, %v3210
  %v3213 = vsel %vm3211, %v3212, %v3210
  %v3214 = vclz %v3213
  %v3215 = vsub.s32 %v3214, 2
  %vm3216 = vcmp.gt.s32.totalorder 0, %v3215
  %v3217 = vsel %vm3216, 0, %v3215
  %v3218 = vsub.s32 32, %v3217
  %v3219 = vshll.u32 %v3210, %v3217
  %v3220 = vshrl.u32 %v3202, %v3218
  %v3221 = vor.u32 %v3219, %v3220
  %v3222 = vsub.s32 4294967266, %v3217
  %v3223 = vadd.s32 %v3222, 127
  %v3224 = vshll.u32 %v3223, 23
  %v3225 = vor.u32 4788187, %v3224
  %v3226 = vand.u32 2147483647, %v3225
  %v3228 = vcvt.s32.f32 %v3221
  %v3229 = vmul.f32 %v3228, %v3226
  %v3230 = vxor.u32 %v3229, 2147483648
  %v3231 = vsel %vm3148, %v3230, %v3229
  %v3232 = vsub.s32 4, %v3208
  %v3233 = vsel %vm3148, %v3232, %v3208
  %v3234 = vsel %vm3147, %v360, %v3231
  %v3235 = vsel %vm3147, 0, %v3233
  %v3236 = vcosq.f32.pop %v3234
  %v3237 = vsinq.f32.pop %v3234
  %vm3238 = vweird.f32 %v360
  %v3239 = vand.u32 %v3235, 3
  %vm3240 = vcmp.lt.s32.totalorder %v3239, 2
  %vm3241 = vcmp.eq.s32.totalorder %v3239, 0
  %v3242 = vxor.u32 %v3237, 2147483648
  %v3243 = vsel %vm3241, %v3236, %v3242
  %vm3244 = vcmp.eq.s32.totalorder %v3239, 2
  %v3245 = vxor.u32 %v3236, 2147483648
  %v3246 = vsel %vm3244, %v3245, %v3237
  %v3247 = vsel %vm3240, %v3243, %v3246
  %v3248 = vsel %vm3238, nan, %v3247
  %v3249 = vand.u32 2147483647, %v361
  %vm3250 = vcmp.le.f32.partialorder %v3249, 0.7853982
  %vm3251 = vcmp.lt.s32.totalorder %v361, 0
  %v3252 = vand.u32 %v361, 2139095040
  %v3253 = vshrl.u32 %v3252, 23
  %v3254 = vsub.s32 %v3253, 127
  %v3255 = vand.u32 2147483647, %v361
  %v3256 = vand.u32 %v3255, 8388607
  %v3257 = vor.u32 %v3256, 8388608
  %v3258 = vsub.s32 0, %v3257
  %v3259 = vadd.s32 %v3254, 1
  %vm3260 = vcmp.gt.s32.totalorder %v3259, 0
  %v3261 = vsel %vm3260, %v3259, 0
  %v3262 = vshrl.u32 %v3261, 5
  %v3263 = vand.u32 %v3261, 31
  %v3264 = vsub.s32 32, %v3263
  %v3265 = vshrl.u32 683565275, %v3264
  %v3266 = vshll.u32 683565275, %v3263
  %v3267 = vshrl.u32 2475754826, %v3264
  %v3268 = vor.u32 %v3266, %v3267
  %v3269 = vshll.u32 2475754826, %v3263
  %v3270 = vshrl.u32 2131351028, %v3264
  %v3271 = vor.u32 %v3269, %v3270
  %v3272 = vshll.u32 2131351028, %v3263
  %v3273 = vshrl.u32 2102212464, %v3264
  %v3274 = vor.u32 %v3272, %v3273
  %v3275 = vshll.u32 2102212464, %v3263
  %v3276 = vshrl.u32 920167782, %v3264
  %v3277 = vor.u32 %v3275, %v3276
  %v3278 = vshll.u32 920167782, %v3263
  %v3279 = vshrl.u32 1326507024, %v3264
  %v3280 = vor.u32 %v3278, %v3279
  %vm3281 = vcmp.lt.s32.totalorder %v3262, 1
  %vm3282 = vcmp.lt.s32.totalorder %v3262, 2
  %vm3283 = vcmp.lt.s32.totalorder %v3262, 3
  %vm3284 = vcmp.lt.s32.totalorder %v3262, 4
  %v3285 = vsel %vm3281, %v3265, %v3268
  %v3286 = vsel %vm3284, %v3274, 2102212464
  %v3287 = vsel %vm3283, %v3271, %v3286
  %v3288 = vsel %vm3282, %v3285, %v3287
  %v3289 = vsel %vm3281, %v3268, %v3271
  %v3290 = vsel %vm3284, %v3277, 920167782
  %v3291 = vsel %vm3283, %v3274, %v3290
  %v3292 = vsel %vm3282, %v3289, %v3291
  %v3293 = vsel %vm3281, %v3271, %v3274
  %v3294 = vsel %vm3284, %v3280, 1326507024
  %v3295 = vsel %vm3283, %v3277, %v3294
  %v3296 = vsel %vm3282, %v3293, %v3295
  %v3297 = vshll.u32 %v3257, 8
  %v3298 = vmul.u32.u64.compose %v3297, %v3296
  %v3299 = vextract.low.u32 %v3298
  %v3300 = vextract.high.u32 %v3298
  %v3301 = vmul.u32.u64.compose %v3297, %v3292
  %v3302 = vextract.low.u32 %v3301
  %v3303 = vextract.high.u32 %v3301
  %v3304 = vmul.u32 %v3297, %v3288
  %v3305 = vadd.s32 %v3300, %v3302
  %vm3306 = vc.u32 %v3300, %v3302
  %v3307 = vadd.s32 %v3303, 1
  %v3308 = vsel %vm3306, %v3307, %v3303
  %v3309 = vadd.s32 %v3304, %v3308
  %v3310 = vadd.s32 %v3309, 536870912
  %v3311 = vshrl.u32 %v3310, 30
  %v3312 = vshll.u32 %v3311, 30
  %v3313 = vsub.s32 %v3309, %v3312
  %vm3314 = vcmp.lt.s32.totalorder %v3313, 0
  %v3315 = vsub.s32 0, %v3313
  %v3316 = vsel %vm3314, %v3315, %v3313
  %v3317 = vclz %v3316
  %v3318 = vsub.s32 %v3317, 2
  %vm3319 = vcmp.gt.s32.totalorder 0, %v3318
  %v3320 = vsel %vm3319, 0, %v3318
  %v3321 = vsub.s32 32, %v3320
  %v3322 = vshll.u32 %v3313, %v3320
  %v3323 = vshrl.u32 %v3305, %v3321
  %v3324 = vor.u32 %v3322, %v3323
  %v3325 = vsub.s32 4294967266, %v3320
  %v3326 = vadd.s32 %v3325, 127
  %v3327 = vshll.u32 %v3326, 23
  %v3328 = vor.u32 4788187, %v3327
  %v3329 = vand.u32 2147483647, %v3328
  %v3331 = vcvt.s32.f32 %v3324
  %v3332 = vmul.f32 %v3331, %v3329
  %v3333 = vxor.u32 %v3332, 2147483648
  %v3334 = vsel %vm3251, %v3333, %v3332
  %v3335 = vsub.s32 4, %v3311
  %v3336 = vsel %vm3251, %v3335, %v3311
  %v3337 = vsel %vm3250, %v361, %v3334
  %v3338 = vsel %vm3250, 0, %v3336
  %v3339 = vcosq.f32.pop %v3337
  %v3340 = vsinq.f32.pop %v3337
  %vm3341 = vweird.f32 %v361
  %v3342 = vand.u32 %v3338, 3
  %vm3343 = vcmp.lt.s32.totalorder %v3342, 2
  %vm3344 = vcmp.eq.s32.totalorder %v3342, 0
  %v3345 = vxor.u32 %v3340, 2147483648
  %v3346 = vsel %vm3344, %v3339, %v3345
  %vm3347 = vcmp.eq.s32.totalorder %v3342, 2
  %v3348 = vxor.u32 %v3339, 2147483648
  %v3349 = vsel %vm3347, %v3348, %v3340
  %v3350 = vsel %vm3343, %v3346, %v3349
  %v3351 = vsel %vm3341, nan, %v3350
  %v3352 = vand.u32 2147483647, %v362
  %vm3353 = vcmp.le.f32.partialorder %v3352, 0.7853982
  %vm3354 = vcmp.lt.s32.totalorder %v362, 0
  %v3355 = vand.u32 %v362, 2139095040
  %v3356 = vshrl.u32 %v3355, 23
  %v3357 = vsub.s32 %v3356, 127
  %v3358 = vand.u32 2147483647, %v362
  %v3359 = vand.u32 %v3358, 8388607
  %v3360 = vor.u32 %v3359, 8388608
  %v3361 = vsub.s32 0, %v3360
  %v3362 = vadd.s32 %v3357, 1
  %vm3363 = vcmp.gt.s32.totalorder %v3362, 0
  %v3364 = vsel %vm3363, %v3362, 0
  %v3365 = vshrl.u32 %v3364, 5
  %v3366 = vand.u32 %v3364, 31
  %v3367 = vsub.s32 32, %v3366
  %v3368 = vshrl.u32 683565275, %v3367
  %v3369 = vshll.u32 683565275, %v3366
  %v3370 = vshrl.u32 2475754826, %v3367
  %v3371 = vor.u32 %v3369, %v3370
  %v3372 = vshll.u32 2475754826, %v3366
  %v3373 = vshrl.u32 2131351028, %v3367
  %v3374 = vor.u32 %v3372, %v3373
  %v3375 = vshll.u32 2131351028, %v3366
  %v3376 = vshrl.u32 2102212464, %v3367
  %v3377 = vor.u32 %v3375, %v3376
  %v3378 = vshll.u32 2102212464, %v3366
  %v3379 = vshrl.u32 920167782, %v3367
  %v3380 = vor.u32 %v3378, %v3379
  %v3381 = vshll.u32 920167782, %v3366
  %v3382 = vshrl.u32 1326507024, %v3367
  %v3383 = vor.u32 %v3381, %v3382
  %vm3384 = vcmp.lt.s32.totalorder %v3365, 1
  %vm3385 = vcmp.lt.s32.totalorder %v3365, 2
  %vm3386 = vcmp.lt.s32.totalorder %v3365, 3
  %vm3387 = vcmp.lt.s32.totalorder %v3365, 4
  %v3388 = vsel %vm3384, %v3368, %v3371
  %v3389 = vsel %vm3387, %v3377, 2102212464
  %v3390 = vsel %vm3386, %v3374, %v3389
  %v3391 = vsel %vm3385, %v3388, %v3390
  %v3392 = vsel %vm3384, %v3371, %v3374
  %v3393 = vsel %vm3387, %v3380, 920167782
  %v3394 = vsel %vm3386, %v3377, %v3393
  %v3395 = vsel %vm3385, %v3392, %v3394
  %v3396 = vsel %vm3384, %v3374, %v3377
  %v3397 = vsel %vm3387, %v3383, 1326507024
  %v3398 = vsel %vm3386, %v3380, %v3397
  %v3399 = vsel %vm3385, %v3396, %v3398
  %v3400 = vshll.u32 %v3360, 8
  %v3401 = vmul.u32.u64.compose %v3400, %v3399
  %v3402 = vextract.low.u32 %v3401
  %v3403 = vextract.high.u32 %v3401
  %v3404 = vmul.u32.u64.compose %v3400, %v3395
  %v3405 = vextract.low.u32 %v3404
  %v3406 = vextract.high.u32 %v3404
  %v3407 = vmul.u32 %v3400, %v3391
  %v3408 = vadd.s32 %v3403, %v3405
  %vm3409 = vc.u32 %v3403, %v3405
  %v3410 = vadd.s32 %v3406, 1
  %v3411 = vsel %vm3409, %v3410, %v3406
  %v3412 = vadd.s32 %v3407, %v3411
  %v3413 = vadd.s32 %v3412, 536870912
  %v3414 = vshrl.u32 %v3413, 30
  %v3415 = vshll.u32 %v3414, 30
  %v3416 = vsub.s32 %v3412, %v3415
  %vm3417 = vcmp.lt.s32.totalorder %v3416, 0
  %v3418 = vsub.s32 0, %v3416
  %v3419 = vsel %vm3417, %v3418, %v3416
  %v3420 = vclz %v3419
  %v3421 = vsub.s32 %v3420, 2
  %vm3422 = vcmp.gt.s32.totalorder 0, %v3421
  %v3423 = vsel %vm3422, 0, %v3421
  %v3424 = vsub.s32 32, %v3423
  %v3425 = vshll.u32 %v3416, %v3423
  %v3426 = vshrl.u32 %v3408, %v3424
  %v3427 = vor.u32 %v3425, %v3426
  %v3428 = vsub.s32 4294967266, %v3423
  %v3429 = vadd.s32 %v3428, 127
  %v3430 = vshll.u32 %v3429, 23
  %v3431 = vor.u32 4788187, %v3430
  %v3432 = vand.u32 2147483647, %v3431
  %v3434 = vcvt.s32.f32 %v3427
  %v3435 = vmul.f32 %v3434, %v3432
  %v3436 = vxor.u32 %v3435, 2147483648
  %v3437 = vsel %vm3354, %v3436, %v3435
  %v3438 = vsub.s32 4, %v3414
  %v3439 = vsel %vm3354, %v3438, %v3414
  %v3440 = vsel %vm3353, %v362, %v3437
  %v3441 = vsel %vm3353, 0, %v3439
  %v3442 = vcosq.f32.pop %v3440
  %v3443 = vsinq.f32.pop %v3440
  %vm3444 = vweird.f32 %v362
  %v3445 = vand.u32 %v3441, 3
  %vm3446 = vcmp.lt.s32.totalorder %v3445, 2
  %vm3447 = vcmp.eq.s32.totalorder %v3445, 0
  %v3448 = vxor.u32 %v3443, 2147483648
  %v3449 = vsel %vm3447, %v3442, %v3448
  %vm3450 = vcmp.eq.s32.totalorder %v3445, 2
  %v3451 = vxor.u32 %v3442, 2147483648
  %v3452 = vsel %vm3450, %v3451, %v3443
  %v3453 = vsel %vm3446, %v3449, %v3452
  %v3454 = vsel %vm3444, nan, %v3453
  %v3455 = vand.u32 2147483647, %v363
  %vm3456 = vcmp.le.f32.partialorder %v3455, 0.7853982
  %vm3457 = vcmp.lt.s32.totalorder %v363, 0
  %v3458 = vand.u32 %v363, 2139095040
  %v3459 = vshrl.u32 %v3458, 23
  %v3460 = vsub.s32 %v3459, 127
  %v3461 = vand.u32 2147483647, %v363
  %v3462 = vand.u32 %v3461, 8388607
  %v3463 = vor.u32 %v3462, 8388608
  %v3464 = vsub.s32 0, %v3463
  %v3465 = vadd.s32 %v3460, 1
  %vm3466 = vcmp.gt.s32.totalorder %v3465, 0
  %v3467 = vsel %vm3466, %v3465, 0
  %v3468 = vshrl.u32 %v3467, 5
  %v3469 = vand.u32 %v3467, 31
  %v3470 = vsub.s32 32, %v3469
  %v3471 = vshrl.u32 683565275, %v3470
  %v3472 = vshll.u32 683565275, %v3469
  %v3473 = vshrl.u32 2475754826, %v3470
  %v3474 = vor.u32 %v3472, %v3473
  %v3475 = vshll.u32 2475754826, %v3469
  %v3476 = vshrl.u32 2131351028, %v3470
  %v3477 = vor.u32 %v3475, %v3476
  %v3478 = vshll.u32 2131351028, %v3469
  %v3479 = vshrl.u32 2102212464, %v3470
  %v3480 = vor.u32 %v3478, %v3479
  %v3481 = vshll.u32 2102212464, %v3469
  %v3482 = vshrl.u32 920167782, %v3470
  %v3483 = vor.u32 %v3481, %v3482
  %v3484 = vshll.u32 920167782, %v3469
  %v3485 = vshrl.u32 1326507024, %v3470
  %v3486 = vor.u32 %v3484, %v3485
  %vm3487 = vcmp.lt.s32.totalorder %v3468, 1
  %vm3488 = vcmp.lt.s32.totalorder %v3468, 2
  %vm3489 = vcmp.lt.s32.totalorder %v3468, 3
  %vm3490 = vcmp.lt.s32.totalorder %v3468, 4
  %v3491 = vsel %vm3487, %v3471, %v3474
  %v3492 = vsel %vm3490, %v3480, 2102212464
  %v3493 = vsel %vm3489, %v3477, %v3492
  %v3494 = vsel %vm3488, %v3491, %v3493
  %v3495 = vsel %vm3487, %v3474, %v3477
  %v3496 = vsel %vm3490, %v3483, 920167782
  %v3497 = vsel %vm3489, %v3480, %v3496
  %v3498 = vsel %vm3488, %v3495, %v3497
  %v3499 = vsel %vm3487, %v3477, %v3480
  %v3500 = vsel %vm3490, %v3486, 1326507024
  %v3501 = vsel %vm3489, %v3483, %v3500
  %v3502 = vsel %vm3488, %v3499, %v3501
  %v3503 = vshll.u32 %v3463, 8
  %v3504 = vmul.u32.u64.compose %v3503, %v3502
  %v3505 = vextract.low.u32 %v3504
  %v3506 = vextract.high.u32 %v3504
  %v3507 = vmul.u32.u64.compose %v3503, %v3498
  %v3508 = vextract.low.u32 %v3507
  %v3509 = vextract.high.u32 %v3507
  %v3510 = vmul.u32 %v3503, %v3494
  %v3511 = vadd.s32 %v3506, %v3508
  %vm3512 = vc.u32 %v3506, %v3508
  %v3513 = vadd.s32 %v3509, 1
  %v3514 = vsel %vm3512, %v3513, %v3509
  %v3515 = vadd.s32 %v3510, %v3514
  %v3516 = vadd.s32 %v3515, 536870912
  %v3517 = vshrl.u32 %v3516, 30
  %v3518 = vshll.u32 %v3517, 30
  %v3519 = vsub.s32 %v3515, %v3518
  %vm3520 = vcmp.lt.s32.totalorder %v3519, 0
  %v3521 = vsub.s32 0, %v3519
  %v3522 = vsel %vm3520, %v3521, %v3519
  %v3523 = vclz %v3522
  %v3524 = vsub.s32 %v3523, 2
  %vm3525 = vcmp.gt.s32.totalorder 0, %v3524
  %v3526 = vsel %vm3525, 0, %v3524
  %v3527 = vsub.s32 32, %v3526
  %v3528 = vshll.u32 %v3519, %v3526
  %v3529 = vshrl.u32 %v3511, %v3527
  %v3530 = vor.u32 %v3528, %v3529
  %v3531 = vsub.s32 4294967266, %v3526
  %v3532 = vadd.s32 %v3531, 127
  %v3533 = vshll.u32 %v3532, 23
  %v3534 = vor.u32 4788187, %v3533
  %v3535 = vand.u32 2147483647, %v3534
  %v3537 = vcvt.s32.f32 %v3530
  %v3538 = vmul.f32 %v3537, %v3535
  %v3539 = vxor.u32 %v3538, 2147483648
  %v3540 = vsel %vm3457, %v3539, %v3538
  %v3541 = vsub.s32 4, %v3517
  %v3542 = vsel %vm3457, %v3541, %v3517
  %v3543 = vsel %vm3456, %v363, %v3540
  %v3544 = vsel %vm3456, 0, %v3542
  %v3545 = vcosq.f32.pop %v3543
  %v3546 = vsinq.f32.pop %v3543
  %vm3547 = vweird.f32 %v363
  %v3548 = vand.u32 %v3544, 3
  %vm3549 = vcmp.lt.s32.totalorder %v3548, 2
  %vm3550 = vcmp.eq.s32.totalorder %v3548, 0
  %v3551 = vxor.u32 %v3546, 2147483648
  %v3552 = vsel %vm3550, %v3545, %v3551
  %vm3553 = vcmp.eq.s32.totalorder %v3548, 2
  %v3554 = vxor.u32 %v3545, 2147483648
  %v3555 = vsel %vm3553, %v3554, %v3546
  %v3556 = vsel %vm3549, %v3552, %v3555
  %v3557 = vsel %vm3547, nan, %v3556
  %v3558 = vand.u32 2147483647, %v364
  %vm3559 = vcmp.le.f32.partialorder %v3558, 0.7853982
  %vm3560 = vcmp.lt.s32.totalorder %v364, 0
  %v3561 = vand.u32 %v364, 2139095040
  %v3562 = vshrl.u32 %v3561, 23
  %v3563 = vsub.s32 %v3562, 127
  %v3564 = vand.u32 2147483647, %v364
  %v3565 = vand.u32 %v3564, 8388607
  %v3566 = vor.u32 %v3565, 8388608
  %v3567 = vsub.s32 0, %v3566
  %v3568 = vadd.s32 %v3563, 1
  %vm3569 = vcmp.gt.s32.totalorder %v3568, 0
  %v3570 = vsel %vm3569, %v3568, 0
  %v3571 = vshrl.u32 %v3570, 5
  %v3572 = vand.u32 %v3570, 31
  %v3573 = vsub.s32 32, %v3572
  %v3574 = vshrl.u32 683565275, %v3573
  %v3575 = vshll.u32 683565275, %v3572
  %v3576 = vshrl.u32 2475754826, %v3573
  %v3577 = vor.u32 %v3575, %v3576
  %v3578 = vshll.u32 2475754826, %v3572
  %v3579 = vshrl.u32 2131351028, %v3573
  %v3580 = vor.u32 %v3578, %v3579
  %v3581 = vshll.u32 2131351028, %v3572
  %v3582 = vshrl.u32 2102212464, %v3573
  %v3583 = vor.u32 %v3581, %v3582
  %v3584 = vshll.u32 2102212464, %v3572
  %v3585 = vshrl.u32 920167782, %v3573
  %v3586 = vor.u32 %v3584, %v3585
  %v3587 = vshll.u32 920167782, %v3572
  %v3588 = vshrl.u32 1326507024, %v3573
  %v3589 = vor.u32 %v3587, %v3588
  %vm3590 = vcmp.lt.s32.totalorder %v3571, 1
  %vm3591 = vcmp.lt.s32.totalorder %v3571, 2
  %vm3592 = vcmp.lt.s32.totalorder %v3571, 3
  %vm3593 = vcmp.lt.s32.totalorder %v3571, 4
  %v3594 = vsel %vm3590, %v3574, %v3577
  %v3595 = vsel %vm3593, %v3583, 2102212464
  %v3596 = vsel %vm3592, %v3580, %v3595
  %v3597 = vsel %vm3591, %v3594, %v3596
  %v3598 = vsel %vm3590, %v3577, %v3580
  %v3599 = vsel %vm3593, %v3586, 920167782
  %v3600 = vsel %vm3592, %v3583, %v3599
  %v3601 = vsel %vm3591, %v3598, %v3600
  %v3602 = vsel %vm3590, %v3580, %v3583
  %v3603 = vsel %vm3593, %v3589, 1326507024
  %v3604 = vsel %vm3592, %v3586, %v3603
  %v3605 = vsel %vm3591, %v3602, %v3604
  %v3606 = vshll.u32 %v3566, 8
  %v3607 = vmul.u32.u64.compose %v3606, %v3605
  %v3608 = vextract.low.u32 %v3607
  %v3609 = vextract.high.u32 %v3607
  %v3610 = vmul.u32.u64.compose %v3606, %v3601
  %v3611 = vextract.low.u32 %v3610
  %v3612 = vextract.high.u32 %v3610
  %v3613 = vmul.u32 %v3606, %v3597
  %v3614 = vadd.s32 %v3609, %v3611
  %vm3615 = vc.u32 %v3609, %v3611
  %v3616 = vadd.s32 %v3612, 1
  %v3617 = vsel %vm3615, %v3616, %v3612
  %v3618 = vadd.s32 %v3613, %v3617
  %v3619 = vadd.s32 %v3618, 536870912
  %v3620 = vshrl.u32 %v3619, 30
  %v3621 = vshll.u32 %v3620, 30
  %v3622 = vsub.s32 %v3618, %v3621
  %vm3623 = vcmp.lt.s32.totalorder %v3622, 0
  %v3624 = vsub.s32 0, %v3622
  %v3625 = vsel %vm3623, %v3624, %v3622
  %v3626 = vclz %v3625
  %v3627 = vsub.s32 %v3626, 2
  %vm3628 = vcmp.gt.s32.totalorder 0, %v3627
  %v3629 = vsel %vm3628, 0, %v3627
  %v3630 = vsub.s32 32, %v3629
  %v3631 = vshll.u32 %v3622, %v3629
  %v3632 = vshrl.u32 %v3614, %v3630
  %v3633 = vor.u32 %v3631, %v3632
  %v3634 = vsub.s32 4294967266, %v3629
  %v3635 = vadd.s32 %v3634, 127
  %v3636 = vshll.u32 %v3635, 23
  %v3637 = vor.u32 4788187, %v3636
  %v3638 = vand.u32 2147483647, %v3637
  %v3640 = vcvt.s32.f32 %v3633
  %v3641 = vmul.f32 %v3640, %v3638
  %v3642 = vxor.u32 %v3641, 2147483648
  %v3643 = vsel %vm3560, %v3642, %v3641
  %v3644 = vsub.s32 4, %v3620
  %v3645 = vsel %vm3560, %v3644, %v3620
  %v3646 = vsel %vm3559, %v364, %v3643
  %v3647 = vsel %vm3559, 0, %v3645
  %v3648 = vcosq.f32.pop %v3646
  %v3649 = vsinq.f32.pop %v3646
  %vm3650 = vweird.f32 %v364
  %v3651 = vand.u32 %v3647, 3
  %vm3652 = vcmp.lt.s32.totalorder %v3651, 2
  %vm3653 = vcmp.eq.s32.totalorder %v3651, 0
  %v3654 = vxor.u32 %v3649, 2147483648
  %v3655 = vsel %vm3653, %v3648, %v3654
  %vm3656 = vcmp.eq.s32.totalorder %v3651, 2
  %v3657 = vxor.u32 %v3648, 2147483648
  %v3658 = vsel %vm3656, %v3657, %v3649
  %v3659 = vsel %vm3652, %v3655, %v3658
  %v3660 = vsel %vm3650, nan, %v3659
  %3661 = vadd.xlane.f32.xlu0 %v467
  %v3662 = vpop.xlane.xlu0 %3661
  %3663 = vadd.xlane.f32.xlu0 %v570
  %v3664 = vpop.xlane.xlu0 %3663
  %3665 = vadd.xlane.f32.xlu0 %v673
  %v3666 = vpop.xlane.xlu0 %3665
  %vm3667 = vcmask 1045504
  %v3668 = vsel %vm3667, %v776, 0.0
  %3669 = vadd.xlane.f32.xlu0 %v3668
  %v3670 = vpop.xlane.xlu0 %3669
  %3671 = vadd.xlane.f32.xlu0 %v879
  %v3672 = vpop.xlane.xlu0 %3671
  %3673 = vadd.xlane.f32.xlu0 %v982
  %v3674 = vpop.xlane.xlu0 %3673
  %3675 = vadd.xlane.f32.xlu0 %v1085
  %v3676 = vpop.xlane.xlu0 %3675
  %v3677 = vsel %vm3667, %v1188, 0.0
  %3678 = vadd.xlane.f32.xlu0 %v3677
  %v3679 = vpop.xlane.xlu0 %3678
  %3680 = vadd.xlane.f32.xlu0 %v1291
  %v3681 = vpop.xlane.xlu0 %3680
  %3682 = vadd.xlane.f32.xlu0 %v1394
  %v3683 = vpop.xlane.xlu0 %3682
  %3684 = vadd.xlane.f32.xlu0 %v1497
  %v3685 = vpop.xlane.xlu0 %3684
  %v3686 = vsel %vm3667, %v1600, 0.0
  %3687 = vadd.xlane.f32.xlu0 %v3686
  %v3688 = vpop.xlane.xlu0 %3687
  %3689 = vadd.xlane.f32.xlu0 %v1703
  %v3690 = vpop.xlane.xlu0 %3689
  %3691 = vadd.xlane.f32.xlu0 %v1806
  %v3692 = vpop.xlane.xlu0 %3691
  %3693 = vadd.xlane.f32.xlu0 %v1909
  %v3694 = vpop.xlane.xlu0 %3693
  %v3695 = vsel %vm3667, %v2012, 0.0
  %3696 = vadd.xlane.f32.xlu0 %v3695
  %v3697 = vpop.xlane.xlu0 %3696
  %3698 = vadd.xlane.f32.xlu0 %v2115
  %v3699 = vpop.xlane.xlu0 %3698
  %3700 = vadd.xlane.f32.xlu0 %v2218
  %v3701 = vpop.xlane.xlu0 %3700
  %3702 = vadd.xlane.f32.xlu0 %v2321
  %v3703 = vpop.xlane.xlu0 %3702
  %v3704 = vsel %vm3667, %v2424, 0.0
  %3705 = vadd.xlane.f32.xlu0 %v3704
  %v3706 = vpop.xlane.xlu0 %3705
  %3707 = vadd.xlane.f32.xlu0 %v2527
  %v3708 = vpop.xlane.xlu0 %3707
  %3709 = vadd.xlane.f32.xlu0 %v2630
  %v3710 = vpop.xlane.xlu0 %3709
  %3711 = vadd.xlane.f32.xlu0 %v2733
  %v3712 = vpop.xlane.xlu0 %3711
  %v3713 = vsel %vm3667, %v2836, 0.0
  %3714 = vadd.xlane.f32.xlu0 %v3713
  %v3715 = vpop.xlane.xlu0 %3714
  %3716 = vadd.xlane.f32.xlu0 %v2939
  %v3717 = vpop.xlane.xlu0 %3716
  %3718 = vadd.xlane.f32.xlu0 %v3042
  %v3719 = vpop.xlane.xlu0 %3718
  %3720 = vadd.xlane.f32.xlu0 %v3145
  %v3721 = vpop.xlane.xlu0 %3720
  %v3722 = vsel %vm3667, %v3248, 0.0
  %3723 = vadd.xlane.f32.xlu0 %v3722
  %v3724 = vpop.xlane.xlu0 %3723
  %3725 = vadd.xlane.f32.xlu0 %v3351
  %v3726 = vpop.xlane.xlu0 %3725
  %3727 = vadd.xlane.f32.xlu0 %v3454
  %v3728 = vpop.xlane.xlu0 %3727
  %3729 = vadd.xlane.f32.xlu0 %v3557
  %v3730 = vpop.xlane.xlu0 %3729
  %v3731 = vsel %vm3667, %v3660, 0.0
  %3732 = vadd.xlane.f32.xlu0 %v3731
  %v3733 = vpop.xlane.xlu0 %3732
  %v3734 = vld [vmem:[%s3] sm:$0xff]
  %v3767 = vlaneseq
  %v3768 = vand.u32 %v3767, 127
  %v3769 = vlaneseq
  %v3770 = vshrl.u32 %v3769, 7
  %v3771 = vsub.s32 %v3768, %v3770
  %v3772 = vrot.slane %v3662, %v3771
  %v3773 = vadd.s32 %v3768, 4294967288
  %v3774 = vlaneseq
  %v3775 = vshrl.u32 %v3774, 7
  %v3776 = vsub.s32 %v3773, %v3775
  %v3777 = vrot.slane %v3664, %v3776
  %vm3778 = vcmask 130112
  %v3779 = vsel %vm3778, %v3777, %v3772
  %v3780 = vadd.s32 %v3768, 4294967280
  %v3781 = vlaneseq
  %v3782 = vshrl.u32 %v3781, 7
  %v3783 = vsub.s32 %v3780, %v3782
  %v3784 = vrot.slane %v3666, %v3783
  %vm3785 = vcmask 195712
  %v3786 = vsel %vm3785, %v3784, %v3779
  %v3787 = vadd.s32 %v3768, 4294967272
  %v3788 = vlaneseq
  %v3789 = vshrl.u32 %v3788, 7
  %v3790 = vsub.s32 %v3787, %v3789
  %v3791 = vrot.slane %v3670, %v3790
  %vm3792 = vcmask 261312
  %v3793 = vsel %vm3792, %v3791, %v3786
  %v3794 = vlaneseq
  %v3795 = vshrl.u32 %v3794, 7
  %v3796 = vsub.s32 %v3768, %v3795
  %v3797 = vrot.slane %v3672, %v3796
  %v3798 = vlaneseq
  %v3799 = vshrl.u32 %v3798, 7
  %v3800 = vsub.s32 %v3773, %v3799
  %v3801 = vrot.slane %v3674, %v3800
  %v3802 = vsel %vm3778, %v3801, %v3797
  %v3803 = vlaneseq
  %v3804 = vshrl.u32 %v3803, 7
  %v3805 = vsub.s32 %v3780, %v3804
  %v3806 = vrot.slane %v3676, %v3805
  %v3807 = vsel %vm3785, %v3806, %v3802
  %v3808 = vlaneseq
  %v3809 = vshrl.u32 %v3808, 7
  %v3810 = vsub.s32 %v3787, %v3809
  %v3811 = vrot.slane %v3679, %v3810
  %v3812 = vsel %vm3792, %v3811, %v3807
  %v3813 = vlaneseq
  %v3814 = vshrl.u32 %v3813, 7
  %v3815 = vsub.s32 %v3768, %v3814
  %v3816 = vrot.slane %v3681, %v3815
  %v3817 = vlaneseq
  %v3818 = vshrl.u32 %v3817, 7
  %v3819 = vsub.s32 %v3773, %v3818
  %v3820 = vrot.slane %v3683, %v3819
  %v3821 = vsel %vm3778, %v3820, %v3816
  %v3822 = vlaneseq
  %v3823 = vshrl.u32 %v3822, 7
  %v3824 = vsub.s32 %v3780, %v3823
  %v3825 = vrot.slane %v3685, %v3824
  %v3826 = vsel %vm3785, %v3825, %v3821
  %v3827 = vlaneseq
  %v3828 = vshrl.u32 %v3827, 7
  %v3829 = vsub.s32 %v3787, %v3828
  %v3830 = vrot.slane %v3688, %v3829
  %v3831 = vsel %vm3792, %v3830, %v3826
  %v3832 = vlaneseq
  %v3833 = vshrl.u32 %v3832, 7
  %v3834 = vsub.s32 %v3768, %v3833
  %v3835 = vrot.slane %v3690, %v3834
  %v3836 = vlaneseq
  %v3837 = vshrl.u32 %v3836, 7
  %v3838 = vsub.s32 %v3773, %v3837
  %v3839 = vrot.slane %v3692, %v3838
  %v3840 = vsel %vm3778, %v3839, %v3835
  %v3841 = vlaneseq
  %v3842 = vshrl.u32 %v3841, 7
  %v3843 = vsub.s32 %v3780, %v3842
  %v3844 = vrot.slane %v3694, %v3843
  %v3845 = vsel %vm3785, %v3844, %v3840
  %v3846 = vlaneseq
  %v3847 = vshrl.u32 %v3846, 7
  %v3848 = vsub.s32 %v3787, %v3847
  %v3849 = vrot.slane %v3697, %v3848
  %v3850 = vsel %vm3792, %v3849, %v3845
  %v3851 = vlaneseq
  %v3852 = vshrl.u32 %v3851, 7
  %v3853 = vsub.s32 %v3768, %v3852
  %v3854 = vrot.slane %v3699, %v3853
  %v3855 = vlaneseq
  %v3856 = vshrl.u32 %v3855, 7
  %v3857 = vsub.s32 %v3773, %v3856
  %v3858 = vrot.slane %v3701, %v3857
  %v3859 = vsel %vm3778, %v3858, %v3854
  %v3860 = vlaneseq
  %v3861 = vshrl.u32 %v3860, 7
  %v3862 = vsub.s32 %v3780, %v3861
  %v3863 = vrot.slane %v3703, %v3862
  %v3864 = vsel %vm3785, %v3863, %v3859
  %v3865 = vlaneseq
  %v3866 = vshrl.u32 %v3865, 7
  %v3867 = vsub.s32 %v3787, %v3866
  %v3868 = vrot.slane %v3706, %v3867
  %v3869 = vsel %vm3792, %v3868, %v3864
  %v3870 = vlaneseq
  %v3871 = vshrl.u32 %v3870, 7
  %v3872 = vsub.s32 %v3768, %v3871
  %v3873 = vrot.slane %v3708, %v3872
  %v3874 = vlaneseq
  %v3875 = vshrl.u32 %v3874, 7
  %v3876 = vsub.s32 %v3773, %v3875
  %v3877 = vrot.slane %v3710, %v3876
  %v3878 = vsel %vm3778, %v3877, %v3873
  %v3879 = vlaneseq
  %v3880 = vshrl.u32 %v3879, 7
  %v3881 = vsub.s32 %v3780, %v3880
  %v3882 = vrot.slane %v3712, %v3881
  %v3883 = vsel %vm3785, %v3882, %v3878
  %v3884 = vlaneseq
  %v3885 = vshrl.u32 %v3884, 7
  %v3886 = vsub.s32 %v3787, %v3885
  %v3887 = vrot.slane %v3715, %v3886
  %v3888 = vsel %vm3792, %v3887, %v3883
  %v3889 = vlaneseq
  %v3890 = vshrl.u32 %v3889, 7
  %v3891 = vsub.s32 %v3768, %v3890
  %v3892 = vrot.slane %v3717, %v3891
  %v3893 = vlaneseq
  %v3894 = vshrl.u32 %v3893, 7
  %v3895 = vsub.s32 %v3773, %v3894
  %v3896 = vrot.slane %v3719, %v3895
  %v3897 = vsel %vm3778, %v3896, %v3892
  %v3898 = vlaneseq
  %v3899 = vshrl.u32 %v3898, 7
  %v3900 = vsub.s32 %v3780, %v3899
  %v3901 = vrot.slane %v3721, %v3900
  %v3902 = vsel %vm3785, %v3901, %v3897
  %v3903 = vlaneseq
  %v3904 = vshrl.u32 %v3903, 7
  %v3905 = vsub.s32 %v3787, %v3904
  %v3906 = vrot.slane %v3724, %v3905
  %v3907 = vsel %vm3792, %v3906, %v3902
  %v3908 = vlaneseq
  %v3909 = vshrl.u32 %v3908, 7
  %v3910 = vsub.s32 %v3768, %v3909
  %v3911 = vrot.slane %v3726, %v3910
  %v3912 = vlaneseq
  %v3913 = vshrl.u32 %v3912, 7
  %v3914 = vsub.s32 %v3773, %v3913
  %v3915 = vrot.slane %v3728, %v3914
  %v3916 = vsel %vm3778, %v3915, %v3911
  %v3917 = vlaneseq
  %v3918 = vshrl.u32 %v3917, 7
  %v3919 = vsub.s32 %v3780, %v3918
  %v3920 = vrot.slane %v3730, %v3919
  %v3921 = vsel %vm3785, %v3920, %v3916
  %v3922 = vlaneseq
  %v3923 = vshrl.u32 %v3922, 7
  %v3924 = vsub.s32 %v3787, %v3923
  %v3925 = vrot.slane %v3733, %v3924
  %v3926 = vsel %vm3792, %v3925, %v3921
  %vm3927 = vcmask 1041409
  %v3928 = vsel %vm3927, %v3812, %v3793
  %vm3929 = vcmask 1042434
  %v3930 = vsel %vm3929, %v3831, %v3928
  %vm3931 = vcmask 1043459
  %v3932 = vsel %vm3931, %v3850, %v3930
  %vm3933 = vcmask 1044484
  %v3934 = vsel %vm3933, %v3869, %v3932
  %vm3935 = vcmask 1045509
  %v3936 = vsel %vm3935, %v3888, %v3934
  %vm3937 = vcmask 1046534
  %v3938 = vsel %vm3937, %v3907, %v3936
  %vm3939 = vcmask 1047559
  %v3940 = vsel %vm3939, %v3926, %v3938
  %vm3942 = vcmask 244736
  %v3943 = vsel %vm3942, %v3940, 0.0
  %3944 = vadd.xlane.f32.xlu0 %v3943
  %v3945 = vpop.xlane.xlu0 %3944
  %v3946 = vadd.f32 %v3734, %v3945
  %vm3947 = vcmask 7168
  %3948 = vst.msk [vmem:[%s3] sm:$0xff] %vm3947, %v3946
  // Predicated region
  $region18: #{self_intermediate_scattering.1} parent=0 // pred_check
    _
  $region19: #{self_intermediate_scattering.1} parent=0 // pred_check_branch
    %3950 = sbr.rel (0) target = $region21
  $region20: #{self_intermediate_scattering.1} parent=0 // pred_region
    _
  $region21: #{self_intermediate_scattering.1} parent=0 // pred_fallthru
    _
  // Predicated region
  $region22: #{self_intermediate_scattering.1} parent=0 // pred_check
    _
  $region23: #{self_intermediate_scattering.1} parent=0 // pred_check_branch
    %3952 = sbr.rel (0) target = $region25
  $region24: #{self_intermediate_scattering.1} parent=0 // pred_region
    _
  $region25: #{self_intermediate_scattering.1} parent=0 // pred_fallthru
    _

</llo_original>
